<compile_context>
chip_gen: v7x
topology: tpu7x:2x2x1
jax: 0.10.0
libtpu: 0.0.40
codegen_flags: <defaults>
</compile_context>

<pallas_src>
import jax
import jax.numpy as jnp
from jax.experimental import pallas as pl
from jax.experimental.pallas import tpu as pltpu

EMB_SIZE = 1024            # self.emd_size in the module
HALF = EMB_SIZE // 2       # 512
OUT_WIDTH = 2 * EMB_SIZE + 2 * HALF   # 3072 = 24 * 128 (lane dense)


def _round_up(x, m):
    return (x + m - 1) // m * m


def _physical_vmem_bytes():
    """Trace-time VMEM capacity query; conservative 64 MiB fallback (v7x-safe)."""
    try:
        return int(pltpu.get_tpu_info().vmem_capacity_bytes)
    except Exception:
        return 64 << 20


def aggre_kernel(ecfp_ref, smiles_ref, adduct_ref, mz_ref,
                 w_ecfp_ref, w_sm_ref, b_ecfp_ref, b_sm_ref,
                 out_ref):
    """Writes one (TB, 3072) row block:
       [ecfp @ W_e + b_e | smiles @ W_s + b_s | adduct_emb | m_z.repeat(512)].
    """
    emb = w_ecfp_ref.shape[1]          # 1024
    half = adduct_ref.shape[1]         # 512
    tb = mz_ref.shape[0]               # batch tile

    # MXU matmuls, bf16 operands, f32 accumulation.
    ecfp_out = jnp.dot(ecfp_ref[...], w_ecfp_ref[...],
                       preferred_element_type=jnp.float32) + b_ecfp_ref[...]
    sm_out = jnp.dot(smiles_ref[...], w_sm_ref[...],
                     preferred_element_type=jnp.float32) + b_sm_ref[...]

    # Fused concat: all column offsets / widths are multiples of 128.
    out_ref[:, 0:emb] = ecfp_out.astype(out_ref.dtype)
    out_ref[:, emb:2 * emb] = sm_out.astype(out_ref.dtype)
    out_ref[:, 2 * emb:2 * emb + half] = adduct_ref[...].astype(out_ref.dtype)
    out_ref[:, 2 * emb + half:2 * emb + 2 * half] = jnp.broadcast_to(
        mz_ref[...], (tb, half)).astype(out_ref.dtype)


def aggre_forward(params, smiles_embedding, m_z, adduct, ecfp,
                  out_dtype=jnp.float32):
    """JAX wrapper reproducing Aggre.forward with the whole (B,3072) row built
    in one Pallas kernel (matmuls + concat fused)."""
    B = ecfp.shape[0]

    # ---- tiny gather stays in XLA (adduct_len=3); its result is a kernel input.
    adduct_vecs = jnp.take(params["adduct_emb"], adduct, axis=0).astype(jnp.float32)
    mz_col = m_z.astype(jnp.float32).reshape(B, 1)

    # ---- bf16 operands for the MXU (f32 accumulate inside the kernel) ------
    ecfp_bf = ecfp.astype(jnp.bfloat16)
    smiles_bf = smiles_embedding.astype(jnp.bfloat16)
    w_ecfp_bf = params["w_ecfp"].astype(jnp.bfloat16)
    w_sm_bf = params["w_smiles"].astype(jnp.bfloat16)
    b_ecfp = params["b_ecfp"].astype(jnp.float32).reshape(1, EMB_SIZE)
    b_sm = params["b_smiles"].astype(jnp.float32).reshape(1, EMB_SIZE)

    # ---- pad K dims to multiples of 128 (free: zero rows/cols are inert) ---
    Ke, Ks = ecfp_bf.shape[1], smiles_bf.shape[1]
    Kep, Ksp = _round_up(Ke, 128), _round_up(Ks, 128)
    if Kep != Ke:
        ecfp_bf = jnp.pad(ecfp_bf, ((0, 0), (0, Kep - Ke)))
        w_ecfp_bf = jnp.pad(w_ecfp_bf, ((0, Kep - Ke), (0, 0)))
    if Ksp != Ks:
        smiles_bf = jnp.pad(smiles_bf, ((0, 0), (0, Ksp - Ks)))
        w_sm_bf = jnp.pad(w_sm_bf, ((0, Ksp - Ks), (0, 0)))

    # ---- generation-aware batch tiling --------------------------------------
    phys_vmem = _physical_vmem_bytes()
    big_vmem = phys_vmem >= (100 << 20)       # v5e / v6e: 128 MiB physical VMEM
    max_tb = 1024 if big_vmem else 512        # v7x (64 MiB) / unknown: smaller tile
    TB = B if B <= max_tb else max_tb         # max_tb is a multiple of 128
    grid = (pl.cdiv(B, TB),)

    # Weights/biases: constant block index -> fetched once, resident in VMEM.
    # Activations / adduct / m_z / output: tiled over batch, double-buffered.
    in_specs = [
        pl.BlockSpec((TB, Kep), lambda i: (i, 0)),             # ecfp tile (bf16)
        pl.BlockSpec((TB, Ksp), lambda i: (i, 0)),             # smiles tile (bf16)
        pl.BlockSpec((TB, HALF), lambda i: (i, 0)),            # adduct embeddings (f32)
        pl.BlockSpec((TB, 1), lambda i: (i, 0)),               # m_z column (f32)
        pl.BlockSpec((Kep, EMB_SIZE), lambda i: (0, 0)),       # W_ecfp (resident)
        pl.BlockSpec((Ksp, EMB_SIZE), lambda i: (0, 0)),       # W_smiles (resident)
        pl.BlockSpec((1, EMB_SIZE), lambda i: (0, 0)),         # b_ecfp
        pl.BlockSpec((1, EMB_SIZE), lambda i: (0, 0)),         # b_smiles
    ]
    out_specs = pl.BlockSpec((TB, OUT_WIDTH), lambda i: (i, 0))

    # ---- VMEM budget (double-buffered worst case) + cap per generation -----
    out_itemsize = jnp.dtype(out_dtype).itemsize
    w_bytes = (Kep + Ksp) * EMB_SIZE * 2                       # bf16 weights
    bias_bytes = 2 * EMB_SIZE * 4
    tile_in_bytes = TB * (Kep + Ksp) * 2 + TB * HALF * 4 + TB * 128 * 4
    tile_out_bytes = TB * OUT_WIDTH * out_itemsize
    vmem_need = (2 * (w_bytes + bias_bytes)
                 + 2 * (tile_in_bytes + tile_out_bytes) + (8 << 20))
    vmem_cap = (96 << 20) if big_vmem else (48 << 20)
    vmem_limit = int(min(max(vmem_need, 16 << 20), vmem_cap))

    # ---- advisory cost estimate (reflects fused 3072-wide output) ----------
    flops = 2 * B * (Kep + Ksp) * EMB_SIZE
    bytes_accessed = (w_bytes + bias_bytes
                      + B * (Kep + Ksp) * 2                    # bf16 activations
                      + B * HALF * 4 + B * 4                   # adduct vecs + m_z
                      + B * OUT_WIDTH * out_itemsize)          # fused output
    cost = pl.CostEstimate(flops=flops, transcendentals=0,
                           bytes_accessed=bytes_accessed)

    # Multi-step grids are batch-parallel (lets v7x's 2 TensorCores split the
    # batch); single-tile small-B stays "arbitrary".
    dims = ("parallel",) if grid[0] > 1 else ("arbitrary",)

    return pl.pallas_call(
        aggre_kernel,
        out_shape=jax.ShapeDtypeStruct((B, OUT_WIDTH), out_dtype),
        grid_spec=pltpu.PrefetchScalarGridSpec(
            num_scalar_prefetch=0,
            grid=grid,
            in_specs=in_specs,
            out_specs=out_specs,
        ),
        compiler_params=pltpu.CompilerParams(
            dimension_semantics=dims,
            vmem_limit_bytes=vmem_limit,
        ),
        cost_estimate=cost,
    )(ecfp_bf, smiles_bf, adduct_vecs, mz_col, w_ecfp_bf, w_sm_bf, b_ecfp, b_sm)


def init_params(key, smiles_reflect_dim, adduct_len=3, ecfp_len=1024):
    """Deterministic synthetic parameters matching the module's __init__ shapes."""
    k1, k2, k3, k4, k5 = jax.random.split(key, 5)
    return {
        # nn.Embedding(adduct_len, 512)
        "adduct_emb": jax.random.normal(k1, (adduct_len, HALF), jnp.float32),
        # nn.Linear(ecfp_len, 1024): stored as (in, out)
        "w_ecfp": jax.random.normal(k2, (ecfp_len, EMB_SIZE), jnp.float32)
                  * (1.0 / jnp.sqrt(ecfp_len)),
        "b_ecfp": jax.random.normal(k3, (1, EMB_SIZE), jnp.float32) * 0.01,
        # nn.Linear(smiles_reflect_dim, 1024): stored as (in, out)
        "w_smiles": jax.random.normal(k4, (smiles_reflect_dim, EMB_SIZE), jnp.float32)
                    * (1.0 / jnp.sqrt(smiles_reflect_dim)),
        "b_smiles": jax.random.normal(k5, (1, EMB_SIZE), jnp.float32) * 0.01,
    }


def aggre_reference(params, smiles_embedding, m_z, adduct, ecfp,
                    compute_dtype=jnp.float32):
    """Pure-JAX reference mirroring the PyTorch forward.

    compute_dtype lets us build a bf16-input / f32-accumulate reference that
    matches the kernel's MXU path for a tight tolerance check.
    """
    adduct_v = jnp.take(params["adduct_emb"], adduct, axis=0)
    ecfp_v = jnp.dot(ecfp.astype(compute_dtype),
                     params["w_ecfp"].astype(compute_dtype),
                     preferred_element_type=jnp.float32) + params["b_ecfp"]
    sm_v = jnp.dot(smiles_embedding.astype(compute_dtype),
                   params["w_smiles"].astype(compute_dtype),
                   preferred_element_type=jnp.float32) + params["b_smiles"]
    mz_v = jnp.repeat(m_z.astype(jnp.float32).reshape(-1, 1), HALF, axis=1)
    return jnp.concatenate([ecfp_v, sm_v, adduct_v, mz_v], axis=1)


if __name__ == "__main__":
    B = 8
    SMILES_DIM = 200          # deliberately not a multiple of 128 -> exercises K pad
    ECFP_LEN = 1024
    ADDUCT_LEN = 3

    key = jax.random.PRNGKey(0)
    kp, ks, km, ka, ke = jax.random.split(key, 5)

    params = init_params(kp, SMILES_DIM, ADDUCT_LEN, ECFP_LEN)
    smiles_embedding = jax.random.normal(ks, (B, SMILES_DIM), jnp.float32)
    m_z = jax.random.uniform(km, (B,), jnp.float32, 50.0, 500.0)
    adduct = jax.random.randint(ka, (B,), 0, ADDUCT_LEN)
    ecfp = (jax.random.uniform(ke, (B, ECFP_LEN)) > 0.5).astype(jnp.float32)

    fwd = jax.jit(aggre_forward)
    out = fwd(params, smiles_embedding, m_z, adduct, ecfp)
    out = jax.block_until_ready(out)
    assert out.shape == (B, OUT_WIDTH), out.shape

    # Tight check against a bf16-input / f32-accumulate reference (same
    # quantization as the kernel's MXU path).
    ref_bf16 = aggre_reference(params, smiles_embedding, m_z, adduct, ecfp,
                               compute_dtype=jnp.bfloat16)
    assert jnp.allclose(out, ref_bf16, atol=1e-2, rtol=1e-2), \
        "mismatch vs bf16-matched reference"

    # Loose check against the pure-f32 PyTorch-equivalent reference.
    ref_f32 = aggre_reference(params, smiles_embedding, m_z, adduct, ecfp,
                              compute_dtype=jnp.float32)
    assert jnp.allclose(out, ref_f32, atol=5e-2, rtol=5e-2), \
        "mismatch vs f32 reference"

    # The adduct / m_z columns pass through the kernel untouched -> exact.
    assert jnp.array_equal(out[:, 2 * EMB_SIZE:], ref_f32[:, 2 * EMB_SIZE:]), \
        "adduct / m_z passthrough columns must be exact"

    print("KERNEL_OK")
</pallas_src>

<mosaic_0001>
module attributes {stable_mosaic.version = 11 : i64} {
  func.func @aggre_kernel(%arg0: i32, %arg1: memref<8x1024xbf16, #tpu.memory_space<vmem>>, %arg2: memref<8x256xbf16, #tpu.memory_space<vmem>>, %arg3: memref<8x512xf32, #tpu.memory_space<vmem>>, %arg4: memref<8x1xf32, #tpu.memory_space<vmem>>, %arg5: memref<1024x1024xbf16, #tpu.memory_space<vmem>>, %arg6: memref<256x1024xbf16, #tpu.memory_space<vmem>>, %arg7: memref<1x1024xf32, #tpu.memory_space<vmem>>, %arg8: memref<1x1024xf32, #tpu.memory_space<vmem>>, %arg9: memref<8x3072xf32, #tpu.memory_space<vmem>>) attributes {dimension_semantics = [#tpu.dimension_semantics<arbitrary>], iteration_bounds = array<i64: 1>, scalar_prefetch = 0 : i64, scratch_operands = 0 : i64, tpu.core_type = #tpu.core_type<tc>, window_params = [{transform_indices = @transform_0, window_bounds = array<i64: 8, 1024>}, {transform_indices = @transform_1, window_bounds = array<i64: 8, 256>}, {transform_indices = @transform_2, window_bounds = array<i64: 8, 512>}, {transform_indices = @transform_3, window_bounds = array<i64: 8, 1>}, {pipeline_mode = #tpu.pipeline_mode<synchronous>, transform_indices = @transform_4, window_bounds = array<i64: 1024, 1024>}, {pipeline_mode = #tpu.pipeline_mode<synchronous>, transform_indices = @transform_5, window_bounds = array<i64: 256, 1024>}, {pipeline_mode = #tpu.pipeline_mode<synchronous>, transform_indices = @transform_6, window_bounds = array<i64: 1, 1024>}, {pipeline_mode = #tpu.pipeline_mode<synchronous>, transform_indices = @transform_7, window_bounds = array<i64: 1, 1024>}, {transform_indices = @transform_8, window_bounds = array<i64: 8, 3072>}]} {
    %c0 = arith.constant 0 : index
    %c0_0 = arith.constant 0 : index
    %0 = vector.load %arg1[%c0, %c0_0] : memref<8x1024xbf16, #tpu.memory_space<vmem>>, vector<8x1024xbf16>
    %c0_1 = arith.constant 0 : index
    %c0_2 = arith.constant 0 : index
    %1 = vector.load %arg5[%c0_1, %c0_2] : memref<1024x1024xbf16, #tpu.memory_space<vmem>>, vector<1024x1024xbf16>
    %cst = arith.constant dense<0.000000e+00> : vector<8x1024xf32>
    %2 = tpu.matmul %0, %1, %cst {dimension_numbers = #tpu.dot_dimension_numbers<[1], [0], [0], [1], [0, 0, 1, 1], [], []>} : vector<8x1024xbf16>, vector<1024x1024xbf16>, vector<8x1024xf32> -> vector<8x1024xf32>
    %c0_3 = arith.constant 0 : index
    %c0_4 = arith.constant 0 : index
    %3 = vector.load %arg7[%c0_3, %c0_4] : memref<1x1024xf32, #tpu.memory_space<vmem>>, vector<1x1024xf32>
    %4 = vector.broadcast %3 : vector<1x1024xf32> to vector<8x1024xf32>
    %5 = arith.addf %2, %4 : vector<8x1024xf32>
    %c0_5 = arith.constant 0 : index
    %c0_6 = arith.constant 0 : index
    %6 = vector.load %arg2[%c0_5, %c0_6] : memref<8x256xbf16, #tpu.memory_space<vmem>>, vector<8x256xbf16>
    %c0_7 = arith.constant 0 : index
    %c0_8 = arith.constant 0 : index
    %7 = vector.load %arg6[%c0_7, %c0_8] : memref<256x1024xbf16, #tpu.memory_space<vmem>>, vector<256x1024xbf16>
    %cst_9 = arith.constant dense<0.000000e+00> : vector<8x1024xf32>
    %8 = tpu.matmul %6, %7, %cst_9 {dimension_numbers = #tpu.dot_dimension_numbers<[1], [0], [0], [1], [0, 0, 1, 1], [], []>} : vector<8x256xbf16>, vector<256x1024xbf16>, vector<8x1024xf32> -> vector<8x1024xf32>
    %c0_10 = arith.constant 0 : index
    %c0_11 = arith.constant 0 : index
    %9 = vector.load %arg8[%c0_10, %c0_11] : memref<1x1024xf32, #tpu.memory_space<vmem>>, vector<1x1024xf32>
    %10 = vector.broadcast %9 : vector<1x1024xf32> to vector<8x1024xf32>
    %11 = arith.addf %8, %10 : vector<8x1024xf32>
    %c0_12 = arith.constant 0 : index
    %c0_13 = arith.constant 0 : index
    %12 = vector.load %arg9[%c0_12, %c0_13] : memref<8x3072xf32, #tpu.memory_space<vmem>>, vector<8x1024xf32>
    tpu.vector_store %arg9[%c0_12, %c0_13], %5 {strides = array<i32>} : memref<8x3072xf32, #tpu.memory_space<vmem>>, vector<8x1024xf32>,
    %c0_14 = arith.constant 0 : index
    %c1024 = arith.constant 1024 : index
    %13 = vector.load %arg9[%c0_14, %c1024] : memref<8x3072xf32, #tpu.memory_space<vmem>>, vector<8x1024xf32>
    tpu.vector_store %arg9[%c0_14, %c1024], %11 {strides = array<i32>} : memref<8x3072xf32, #tpu.memory_space<vmem>>, vector<8x1024xf32>,
    %c0_15 = arith.constant 0 : index
    %c0_16 = arith.constant 0 : index
    %14 = vector.load %arg3[%c0_15, %c0_16] : memref<8x512xf32, #tpu.memory_space<vmem>>, vector<8x512xf32>
    %c0_17 = arith.constant 0 : index
    %c2048 = arith.constant 2048 : index
    %15 = vector.load %arg9[%c0_17, %c2048] : memref<8x3072xf32, #tpu.memory_space<vmem>>, vector<8x512xf32>
    tpu.vector_store %arg9[%c0_17, %c2048], %14 {strides = array<i32>} : memref<8x3072xf32, #tpu.memory_space<vmem>>, vector<8x512xf32>,
    %c0_18 = arith.constant 0 : index
    %c0_19 = arith.constant 0 : index
    %16 = vector.load %arg4[%c0_18, %c0_19] : memref<8x1xf32, #tpu.memory_space<vmem>>, vector<8x1xf32>
    %17 = vector.shape_cast %16 : vector<8x1xf32> to vector<8x1xf32>
    %18 = vector.broadcast %17 : vector<8x1xf32> to vector<8x512xf32>
    %c0_20 = arith.constant 0 : index
    %c2560 = arith.constant 2560 : index
    %19 = vector.load %arg9[%c0_20, %c2560] : memref<8x3072xf32, #tpu.memory_space<vmem>>, vector<8x512xf32>
    tpu.vector_store %arg9[%c0_20, %c2560], %18 {strides = array<i32>} : memref<8x3072xf32, #tpu.memory_space<vmem>>, vector<8x512xf32>,
    return
  }
  func.func @transform_0(%arg0: i32) -> (i32, i32) {
    %c0_i32 = arith.constant 0 : i32
    %c0_i32_0 = arith.constant 0 : i32
    return %arg0, %c0_i32 : i32, i32
  }
  func.func @transform_1(%arg0: i32) -> (i32, i32) {
    %c0_i32 = arith.constant 0 : i32
    %c0_i32_0 = arith.constant 0 : i32
    return %arg0, %c0_i32 : i32, i32
  }
  func.func @transform_2(%arg0: i32) -> (i32, i32) {
    %c0_i32 = arith.constant 0 : i32
    %c0_i32_0 = arith.constant 0 : i32
    return %arg0, %c0_i32 : i32, i32
  }
  func.func @transform_3(%arg0: i32) -> (i32, i32) {
    %c0_i32 = arith.constant 0 : i32
    %c0_i32_0 = arith.constant 0 : i32
    return %arg0, %c0_i32 : i32, i32
  }
  func.func @transform_4(%arg0: i32) -> (i32, i32) {
    %c0_i32 = arith.constant 0 : i32
    %c0_i32_0 = arith.constant 0 : i32
    %c0_i32_1 = arith.constant 0 : i32
    return %c0_i32, %c0_i32_0 : i32, i32
  }
  func.func @transform_5(%arg0: i32) -> (i32, i32) {
    %c0_i32 = arith.constant 0 : i32
    %c0_i32_0 = arith.constant 0 : i32
    %c0_i32_1 = arith.constant 0 : i32
    return %c0_i32, %c0_i32_0 : i32, i32
  }
  func.func @transform_6(%arg0: i32) -> (i32, i32) {
    %c0_i32 = arith.constant 0 : i32
    %c0_i32_0 = arith.constant 0 : i32
    %c0_i32_1 = arith.constant 0 : i32
    return %c0_i32, %c0_i32_0 : i32, i32
  }
  func.func @transform_7(%arg0: i32) -> (i32, i32) {
    %c0_i32 = arith.constant 0 : i32
    %c0_i32_0 = arith.constant 0 : i32
    %c0_i32_1 = arith.constant 0 : i32
    return %c0_i32, %c0_i32_0 : i32, i32
  }
  func.func @transform_8(%arg0: i32) -> (i32, i32) {
    %c0_i32 = arith.constant 0 : i32
    %c0_i32_0 = arith.constant 0 : i32
    return %arg0, %c0_i32 : i32, i32
  }
}

</mosaic_0001>

<llo_original>
// kernel: aggre_forward.1
$region0: #{aggre_forward.1}
  #allocation0 [shape = 'u32[]', space=smem, size = 0x4, offset = 0x4, fixed_abs, tag = 'smem constant byte address 0x4 - core index']
  #allocation1 [shape = 'u32[144,128]{1,0:T(1,128)}', space=vmem, size = 0x12000, scoped, tag = 'internal scratch']
  %s0 = inlined_call_operand.vmem [shape: bf16[8,1024], index: 0, kind: input, shape index: {}]
  %s1 = inlined_call_operand.vmem [shape: bf16[8,256], index: 1, kind: input, shape index: {}]
  %s2 = inlined_call_operand.vmem [shape: f32[8,512], index: 2, kind: input, shape index: {}]
  %s3 = inlined_call_operand.vmem [shape: f32[8,1], index: 3, kind: input, shape index: {}]
  %s4 = inlined_call_operand.vmem [shape: bf16[1024,1024], index: 4, kind: input, shape index: {}]
  %s5 = inlined_call_operand.vmem [shape: bf16[256,1024], index: 5, kind: input, shape index: {}]
  %s6 = inlined_call_operand.vmem [shape: f32[1,1024], index: 6, kind: input, shape index: {}]
  %s7 = inlined_call_operand.vmem [shape: f32[1,1024], index: 7, kind: input, shape index: {}]
  %s8 = inlined_call_operand.hbm [shape: f32[8,3072], index: 8, kind: output, shape index: {}]
  %s9 = sld [smem:[#allocation0]]
  $region42: #{aggre_forward.1} parent=0
    _
  %s11 = ssub.s32 1, %s9
  %s12 = scalar_select 0, %s11, %s9
  $region1: #{aggre_forward.1} parent=0
    #allocation2 [shape = 'u8[98304]{0}', space=vmem, size = 0x18000, scoped, tag = 'output window, operand 0, single buffered']
    #allocation3 [shape = 's32[1]{0}', space=sflag, size = 0x4, scoped, tag = 'scoped memory for aggre_forward.1']
    %13 = vsyncpa [#allocation3], 0
    // Predicated region
    $region2: #{aggre_forward.1} parent=1 // pred_check
      _
    $region3: #{aggre_forward.1} parent=1 // pred_check_branch
      %15 = sbr.rel (0) target = $region5
    $region4: #{aggre_forward.1} parent=1 // pred_region
      _
    $region5: #{aggre_forward.1} parent=1 // pred_fallthru
      _
    // Predicated region
    $region6: #{aggre_forward.1} parent=1 // pred_check
      _
    $region7: #{aggre_forward.1} parent=1 // pred_check_branch
      %17 = sbr.rel (0) target = $region9
    $region8: #{aggre_forward.1} parent=1 // pred_region
      _
    $region9: #{aggre_forward.1} parent=1 // pred_fallthru
      _
    // Predicated region
    $region10: #{aggre_forward.1} parent=1 // pred_check
      _
    $region11: #{aggre_forward.1} parent=1 // pred_check_branch
      %19 = sbr.rel (0) target = $region13
    $region12: #{aggre_forward.1} parent=1 // pred_region
      _
    $region13: #{aggre_forward.1} parent=1 // pred_fallthru
      _
    // Predicated region
    $region14: #{aggre_forward.1} parent=1 // pred_check
      _
    $region15: #{aggre_forward.1} parent=1 // pred_check_branch
      %21 = sbr.rel (0) target = $region17
    $region16: #{aggre_forward.1} parent=1 // pred_region
      _
    $region17: #{aggre_forward.1} parent=1 // pred_fallthru
      _
    // Predicated region
    $region18: #{aggre_forward.1} parent=1 // pred_check
      _
    $region19: #{aggre_forward.1} parent=1 // pred_check_branch
      %23 = sbr.rel (0) target = $region21
    $region20: #{aggre_forward.1} parent=1 // pred_region
      _
    $region21: #{aggre_forward.1} parent=1 // pred_fallthru
      _
    // Predicated region
    $region22: #{aggre_forward.1} parent=1 // pred_check
      _
    $region23: #{aggre_forward.1} parent=1 // pred_check_branch
      %25 = sbr.rel (0) target = $region25
    $region24: #{aggre_forward.1} parent=1 // pred_region
      _
    $region25: #{aggre_forward.1} parent=1 // pred_fallthru
      _
    // Predicated region
    $region26: #{aggre_forward.1} parent=1 // pred_check
      _
    $region27: #{aggre_forward.1} parent=1 // pred_check_branch
      %27 = sbr.rel (0) target = $region29
    $region28: #{aggre_forward.1} parent=1 // pred_region
      _
    $region29: #{aggre_forward.1} parent=1 // pred_fallthru
      _
    // Predicated region
    $region30: #{aggre_forward.1} parent=1 // pred_check
      _
    $region31: #{aggre_forward.1} parent=1 // pred_check_branch
      %29 = sbr.rel (0) target = $region33
    $region32: #{aggre_forward.1} parent=1 // pred_region
      _
    $region33: #{aggre_forward.1} parent=1 // pred_fallthru
      _
    %v30 = vld [vmem:[%s0] sm:$0xff]
    %v31 = vld [vmem:[%s0 + $0x8] sm:$0xff]
    %v32 = vld [vmem:[%s0 + $0x10] sm:$0xff]
    %v33 = vld [vmem:[%s0 + $0x18] sm:$0xff]
    %v34 = vld [vmem:[%s4] sm:$0xff]
    %v35 = vld [vmem:[%s4 + $0x8] sm:$0xff]
    %v36 = vld [vmem:[%s4 + $0x10] sm:$0xff]
    %v37 = vld [vmem:[%s4 + $0x18] sm:$0xff]
    %v38 = vld [vmem:[%s4 + $0x20] sm:$0xff]
    %v39 = vld [vmem:[%s4 + $0x28] sm:$0xff]
    %v40 = vld [vmem:[%s4 + $0x30] sm:$0xff]
    %v41 = vld [vmem:[%s4 + $0x38] sm:$0xff]
    %v42 = vld [vmem:[%s4 + $0x40] sm:$0xff]
    %v43 = vld [vmem:[%s4 + $0x48] sm:$0xff]
    %v44 = vld [vmem:[%s4 + $0x50] sm:$0xff]
    %v45 = vld [vmem:[%s4 + $0x58] sm:$0xff]
    %v46 = vld [vmem:[%s4 + $0x60] sm:$0xff]
    %v47 = vld [vmem:[%s4 + $0x68] sm:$0xff]
    %v48 = vld [vmem:[%s4 + $0x70] sm:$0xff]
    %v49 = vld [vmem:[%s4 + $0x78] sm:$0xff]
    %v50 = vld [vmem:[%s4 + $0x80] sm:$0xff]
    %v51 = vld [vmem:[%s4 + $0x88] sm:$0xff]
    %v52 = vld [vmem:[%s4 + $0x90] sm:$0xff]
    %v53 = vld [vmem:[%s4 + $0x98] sm:$0xff]
    %v54 = vld [vmem:[%s4 + $0xa0] sm:$0xff]
    %v55 = vld [vmem:[%s4 + $0xa8] sm:$0xff]
    %v56 = vld [vmem:[%s4 + $0xb0] sm:$0xff]
    %v57 = vld [vmem:[%s4 + $0xb8] sm:$0xff]
    %v58 = vld [vmem:[%s4 + $0xc0] sm:$0xff]
    %v59 = vld [vmem:[%s4 + $0xc8] sm:$0xff]
    %v60 = vld [vmem:[%s4 + $0xd0] sm:$0xff]
    %v61 = vld [vmem:[%s4 + $0xd8] sm:$0xff]
    %v62 = vld [vmem:[%s4 + $0xe0] sm:$0xff]
    %v63 = vld [vmem:[%s4 + $0xe8] sm:$0xff]
    %v64 = vld [vmem:[%s4 + $0xf0] sm:$0xff]
    %v65 = vld [vmem:[%s4 + $0xf8] sm:$0xff]
    %v66 = vld [vmem:[%s4 + $0x100] sm:$0xff]
    %v67 = vld [vmem:[%s4 + $0x108] sm:$0xff]
    %v68 = vld [vmem:[%s4 + $0x110] sm:$0xff]
    %v69 = vld [vmem:[%s4 + $0x118] sm:$0xff]
    %v70 = vld [vmem:[%s4 + $0x120] sm:$0xff]
    %v71 = vld [vmem:[%s4 + $0x128] sm:$0xff]
    %v72 = vld [vmem:[%s4 + $0x130] sm:$0xff]
    %v73 = vld [vmem:[%s4 + $0x138] sm:$0xff]
    %v74 = vld [vmem:[%s4 + $0x140] sm:$0xff]
    %v75 = vld [vmem:[%s4 + $0x148] sm:$0xff]
    %v76 = vld [vmem:[%s4 + $0x150] sm:$0xff]
    %v77 = vld [vmem:[%s4 + $0x158] sm:$0xff]
    %v78 = vld [vmem:[%s4 + $0x160] sm:$0xff]
    %v79 = vld [vmem:[%s4 + $0x168] sm:$0xff]
    %v80 = vld [vmem:[%s4 + $0x170] sm:$0xff]
    %v81 = vld [vmem:[%s4 + $0x178] sm:$0xff]
    %v82 = vld [vmem:[%s4 + $0x180] sm:$0xff]
    %v83 = vld [vmem:[%s4 + $0x188] sm:$0xff]
    %v84 = vld [vmem:[%s4 + $0x190] sm:$0xff]
    %v85 = vld [vmem:[%s4 + $0x198] sm:$0xff]
    %v86 = vld [vmem:[%s4 + $0x1a0] sm:$0xff]
    %v87 = vld [vmem:[%s4 + $0x1a8] sm:$0xff]
    %v88 = vld [vmem:[%s4 + $0x1b0] sm:$0xff]
    %v89 = vld [vmem:[%s4 + $0x1b8] sm:$0xff]
    %v90 = vld [vmem:[%s4 + $0x1c0] sm:$0xff]
    %v91 = vld [vmem:[%s4 + $0x1c8] sm:$0xff]
    %v92 = vld [vmem:[%s4 + $0x1d0] sm:$0xff]
    %v93 = vld [vmem:[%s4 + $0x1d8] sm:$0xff]
    %v94 = vld [vmem:[%s4 + $0x1e0] sm:$0xff]
    %v95 = vld [vmem:[%s4 + $0x1e8] sm:$0xff]
    %v96 = vld [vmem:[%s4 + $0x1f0] sm:$0xff]
    %v97 = vld [vmem:[%s4 + $0x1f8] sm:$0xff]
    %v98 = vld [vmem:[%s4 + $0x200] sm:$0xff]
    %v99 = vld [vmem:[%s4 + $0x208] sm:$0xff]
    %v100 = vld [vmem:[%s4 + $0x210] sm:$0xff]
    %v101 = vld [vmem:[%s4 + $0x218] sm:$0xff]
    %v102 = vld [vmem:[%s4 + $0x220] sm:$0xff]
    %v103 = vld [vmem:[%s4 + $0x228] sm:$0xff]
    %v104 = vld [vmem:[%s4 + $0x230] sm:$0xff]
    %v105 = vld [vmem:[%s4 + $0x238] sm:$0xff]
    %v106 = vld [vmem:[%s4 + $0x240] sm:$0xff]
    %v107 = vld [vmem:[%s4 + $0x248] sm:$0xff]
    %v108 = vld [vmem:[%s4 + $0x250] sm:$0xff]
    %v109 = vld [vmem:[%s4 + $0x258] sm:$0xff]
    %v110 = vld [vmem:[%s4 + $0x260] sm:$0xff]
    %v111 = vld [vmem:[%s4 + $0x268] sm:$0xff]
    %v112 = vld [vmem:[%s4 + $0x270] sm:$0xff]
    %v113 = vld [vmem:[%s4 + $0x278] sm:$0xff]
    %v114 = vld [vmem:[%s4 + $0x280] sm:$0xff]
    %v115 = vld [vmem:[%s4 + $0x288] sm:$0xff]
    %v116 = vld [vmem:[%s4 + $0x290] sm:$0xff]
    %v117 = vld [vmem:[%s4 + $0x298] sm:$0xff]
    %v118 = vld [vmem:[%s4 + $0x2a0] sm:$0xff]
    %v119 = vld [vmem:[%s4 + $0x2a8] sm:$0xff]
    %v120 = vld [vmem:[%s4 + $0x2b0] sm:$0xff]
    %v121 = vld [vmem:[%s4 + $0x2b8] sm:$0xff]
    %v122 = vld [vmem:[%s4 + $0x2c0] sm:$0xff]
    %v123 = vld [vmem:[%s4 + $0x2c8] sm:$0xff]
    %v124 = vld [vmem:[%s4 + $0x2d0] sm:$0xff]
    %v125 = vld [vmem:[%s4 + $0x2d8] sm:$0xff]
    %v126 = vld [vmem:[%s4 + $0x2e0] sm:$0xff]
    %v127 = vld [vmem:[%s4 + $0x2e8] sm:$0xff]
    %v128 = vld [vmem:[%s4 + $0x2f0] sm:$0xff]
    %v129 = vld [vmem:[%s4 + $0x2f8] sm:$0xff]
    %v130 = vld [vmem:[%s4 + $0x300] sm:$0xff]
    %v131 = vld [vmem:[%s4 + $0x308] sm:$0xff]
    %v132 = vld [vmem:[%s4 + $0x310] sm:$0xff]
    %v133 = vld [vmem:[%s4 + $0x318] sm:$0xff]
    %v134 = vld [vmem:[%s4 + $0x320] sm:$0xff]
    %v135 = vld [vmem:[%s4 + $0x328] sm:$0xff]
    %v136 = vld [vmem:[%s4 + $0x330] sm:$0xff]
    %v137 = vld [vmem:[%s4 + $0x338] sm:$0xff]
    %v138 = vld [vmem:[%s4 + $0x340] sm:$0xff]
    %v139 = vld [vmem:[%s4 + $0x348] sm:$0xff]
    %v140 = vld [vmem:[%s4 + $0x350] sm:$0xff]
    %v141 = vld [vmem:[%s4 + $0x358] sm:$0xff]
    %v142 = vld [vmem:[%s4 + $0x360] sm:$0xff]
    %v143 = vld [vmem:[%s4 + $0x368] sm:$0xff]
    %v144 = vld [vmem:[%s4 + $0x370] sm:$0xff]
    %v145 = vld [vmem:[%s4 + $0x378] sm:$0xff]
    %v146 = vld [vmem:[%s4 + $0x380] sm:$0xff]
    %v147 = vld [vmem:[%s4 + $0x388] sm:$0xff]
    %v148 = vld [vmem:[%s4 + $0x390] sm:$0xff]
    %v149 = vld [vmem:[%s4 + $0x398] sm:$0xff]
    %v150 = vld [vmem:[%s4 + $0x3a0] sm:$0xff]
    %v151 = vld [vmem:[%s4 + $0x3a8] sm:$0xff]
    %v152 = vld [vmem:[%s4 + $0x3b0] sm:$0xff]
    %v153 = vld [vmem:[%s4 + $0x3b8] sm:$0xff]
    %v154 = vld [vmem:[%s4 + $0x3c0] sm:$0xff]
    %v155 = vld [vmem:[%s4 + $0x3c8] sm:$0xff]
    %v156 = vld [vmem:[%s4 + $0x3d0] sm:$0xff]
    %v157 = vld [vmem:[%s4 + $0x3d8] sm:$0xff]
    %v158 = vld [vmem:[%s4 + $0x3e0] sm:$0xff]
    %v159 = vld [vmem:[%s4 + $0x3e8] sm:$0xff]
    %v160 = vld [vmem:[%s4 + $0x3f0] sm:$0xff]
    %v161 = vld [vmem:[%s4 + $0x3f8] sm:$0xff]
    %v162 = vld [vmem:[%s4 + $0x400] sm:$0xff]
    %v163 = vld [vmem:[%s4 + $0x408] sm:$0xff]
    %v164 = vld [vmem:[%s4 + $0x410] sm:$0xff]
    %v165 = vld [vmem:[%s4 + $0x418] sm:$0xff]
    %v166 = vld [vmem:[%s4 + $0x420] sm:$0xff]
    %v167 = vld [vmem:[%s4 + $0x428] sm:$0xff]
    %v168 = vld [vmem:[%s4 + $0x430] sm:$0xff]
    %v169 = vld [vmem:[%s4 + $0x438] sm:$0xff]
    %v170 = vld [vmem:[%s4 + $0x440] sm:$0xff]
    %v171 = vld [vmem:[%s4 + $0x448] sm:$0xff]
    %v172 = vld [vmem:[%s4 + $0x450] sm:$0xff]
    %v173 = vld [vmem:[%s4 + $0x458] sm:$0xff]
    %v174 = vld [vmem:[%s4 + $0x460] sm:$0xff]
    %v175 = vld [vmem:[%s4 + $0x468] sm:$0xff]
    %v176 = vld [vmem:[%s4 + $0x470] sm:$0xff]
    %v177 = vld [vmem:[%s4 + $0x478] sm:$0xff]
    %v178 = vld [vmem:[%s4 + $0x480] sm:$0xff]
    %v179 = vld [vmem:[%s4 + $0x488] sm:$0xff]
    %v180 = vld [vmem:[%s4 + $0x490] sm:$0xff]
    %v181 = vld [vmem:[%s4 + $0x498] sm:$0xff]
    %v182 = vld [vmem:[%s4 + $0x4a0] sm:$0xff]
    %v183 = vld [vmem:[%s4 + $0x4a8] sm:$0xff]
    %v184 = vld [vmem:[%s4 + $0x4b0] sm:$0xff]
    %v185 = vld [vmem:[%s4 + $0x4b8] sm:$0xff]
    %v186 = vld [vmem:[%s4 + $0x4c0] sm:$0xff]
    %v187 = vld [vmem:[%s4 + $0x4c8] sm:$0xff]
    %v188 = vld [vmem:[%s4 + $0x4d0] sm:$0xff]
    %v189 = vld [vmem:[%s4 + $0x4d8] sm:$0xff]
    %v190 = vld [vmem:[%s4 + $0x4e0] sm:$0xff]
    %v191 = vld [vmem:[%s4 + $0x4e8] sm:$0xff]
    %v192 = vld [vmem:[%s4 + $0x4f0] sm:$0xff]
    %v193 = vld [vmem:[%s4 + $0x4f8] sm:$0xff]
    %v194 = vld [vmem:[%s4 + $0x500] sm:$0xff]
    %v195 = vld [vmem:[%s4 + $0x508] sm:$0xff]
    %v196 = vld [vmem:[%s4 + $0x510] sm:$0xff]
    %v197 = vld [vmem:[%s4 + $0x518] sm:$0xff]
    %v198 = vld [vmem:[%s4 + $0x520] sm:$0xff]
    %v199 = vld [vmem:[%s4 + $0x528] sm:$0xff]
    %v200 = vld [vmem:[%s4 + $0x530] sm:$0xff]
    %v201 = vld [vmem:[%s4 + $0x538] sm:$0xff]
    %v202 = vld [vmem:[%s4 + $0x540] sm:$0xff]
    %v203 = vld [vmem:[%s4 + $0x548] sm:$0xff]
    %v204 = vld [vmem:[%s4 + $0x550] sm:$0xff]
    %v205 = vld [vmem:[%s4 + $0x558] sm:$0xff]
    %v206 = vld [vmem:[%s4 + $0x560] sm:$0xff]
    %v207 = vld [vmem:[%s4 + $0x568] sm:$0xff]
    %v208 = vld [vmem:[%s4 + $0x570] sm:$0xff]
    %v209 = vld [vmem:[%s4 + $0x578] sm:$0xff]
    %v210 = vld [vmem:[%s4 + $0x580] sm:$0xff]
    %v211 = vld [vmem:[%s4 + $0x588] sm:$0xff]
    %v212 = vld [vmem:[%s4 + $0x590] sm:$0xff]
    %v213 = vld [vmem:[%s4 + $0x598] sm:$0xff]
    %v214 = vld [vmem:[%s4 + $0x5a0] sm:$0xff]
    %v215 = vld [vmem:[%s4 + $0x5a8] sm:$0xff]
    %v216 = vld [vmem:[%s4 + $0x5b0] sm:$0xff]
    %v217 = vld [vmem:[%s4 + $0x5b8] sm:$0xff]
    %v218 = vld [vmem:[%s4 + $0x5c0] sm:$0xff]
    %v219 = vld [vmem:[%s4 + $0x5c8] sm:$0xff]
    %v220 = vld [vmem:[%s4 + $0x5d0] sm:$0xff]
    %v221 = vld [vmem:[%s4 + $0x5d8] sm:$0xff]
    %v222 = vld [vmem:[%s4 + $0x5e0] sm:$0xff]
    %v223 = vld [vmem:[%s4 + $0x5e8] sm:$0xff]
    %v224 = vld [vmem:[%s4 + $0x5f0] sm:$0xff]
    %v225 = vld [vmem:[%s4 + $0x5f8] sm:$0xff]
    %v226 = vld [vmem:[%s4 + $0x600] sm:$0xff]
    %v227 = vld [vmem:[%s4 + $0x608] sm:$0xff]
    %v228 = vld [vmem:[%s4 + $0x610] sm:$0xff]
    %v229 = vld [vmem:[%s4 + $0x618] sm:$0xff]
    %v230 = vld [vmem:[%s4 + $0x620] sm:$0xff]
    %v231 = vld [vmem:[%s4 + $0x628] sm:$0xff]
    %v232 = vld [vmem:[%s4 + $0x630] sm:$0xff]
    %v233 = vld [vmem:[%s4 + $0x638] sm:$0xff]
    %v234 = vld [vmem:[%s4 + $0x640] sm:$0xff]
    %v235 = vld [vmem:[%s4 + $0x648] sm:$0xff]
    %v236 = vld [vmem:[%s4 + $0x650] sm:$0xff]
    %v237 = vld [vmem:[%s4 + $0x658] sm:$0xff]
    %v238 = vld [vmem:[%s4 + $0x660] sm:$0xff]
    %v239 = vld [vmem:[%s4 + $0x668] sm:$0xff]
    %v240 = vld [vmem:[%s4 + $0x670] sm:$0xff]
    %v241 = vld [vmem:[%s4 + $0x678] sm:$0xff]
    %v242 = vld [vmem:[%s4 + $0x680] sm:$0xff]
    %v243 = vld [vmem:[%s4 + $0x688] sm:$0xff]
    %v244 = vld [vmem:[%s4 + $0x690] sm:$0xff]
    %v245 = vld [vmem:[%s4 + $0x698] sm:$0xff]
    %v246 = vld [vmem:[%s4 + $0x6a0] sm:$0xff]
    %v247 = vld [vmem:[%s4 + $0x6a8] sm:$0xff]
    %v248 = vld [vmem:[%s4 + $0x6b0] sm:$0xff]
    %v249 = vld [vmem:[%s4 + $0x6b8] sm:$0xff]
    %v250 = vld [vmem:[%s4 + $0x6c0] sm:$0xff]
    %v251 = vld [vmem:[%s4 + $0x6c8] sm:$0xff]
    %v252 = vld [vmem:[%s4 + $0x6d0] sm:$0xff]
    %v253 = vld [vmem:[%s4 + $0x6d8] sm:$0xff]
    %v254 = vld [vmem:[%s4 + $0x6e0] sm:$0xff]
    %v255 = vld [vmem:[%s4 + $0x6e8] sm:$0xff]
    %v256 = vld [vmem:[%s4 + $0x6f0] sm:$0xff]
    %v257 = vld [vmem:[%s4 + $0x6f8] sm:$0xff]
    %v258 = vld [vmem:[%s4 + $0x700] sm:$0xff]
    %v259 = vld [vmem:[%s4 + $0x708] sm:$0xff]
    %v260 = vld [vmem:[%s4 + $0x710] sm:$0xff]
    %v261 = vld [vmem:[%s4 + $0x718] sm:$0xff]
    %v262 = vld [vmem:[%s4 + $0x720] sm:$0xff]
    %v263 = vld [vmem:[%s4 + $0x728] sm:$0xff]
    %v264 = vld [vmem:[%s4 + $0x730] sm:$0xff]
    %v265 = vld [vmem:[%s4 + $0x738] sm:$0xff]
    %v266 = vld [vmem:[%s4 + $0x740] sm:$0xff]
    %v267 = vld [vmem:[%s4 + $0x748] sm:$0xff]
    %v268 = vld [vmem:[%s4 + $0x750] sm:$0xff]
    %v269 = vld [vmem:[%s4 + $0x758] sm:$0xff]
    %v270 = vld [vmem:[%s4 + $0x760] sm:$0xff]
    %v271 = vld [vmem:[%s4 + $0x768] sm:$0xff]
    %v272 = vld [vmem:[%s4 + $0x770] sm:$0xff]
    %v273 = vld [vmem:[%s4 + $0x778] sm:$0xff]
    %v274 = vld [vmem:[%s4 + $0x780] sm:$0xff]
    %v275 = vld [vmem:[%s4 + $0x788] sm:$0xff]
    %v276 = vld [vmem:[%s4 + $0x790] sm:$0xff]
    %v277 = vld [vmem:[%s4 + $0x798] sm:$0xff]
    %v278 = vld [vmem:[%s4 + $0x7a0] sm:$0xff]
    %v279 = vld [vmem:[%s4 + $0x7a8] sm:$0xff]
    %v280 = vld [vmem:[%s4 + $0x7b0] sm:$0xff]
    %v281 = vld [vmem:[%s4 + $0x7b8] sm:$0xff]
    %v282 = vld [vmem:[%s4 + $0x7c0] sm:$0xff]
    %v283 = vld [vmem:[%s4 + $0x7c8] sm:$0xff]
    %v284 = vld [vmem:[%s4 + $0x7d0] sm:$0xff]
    %v285 = vld [vmem:[%s4 + $0x7d8] sm:$0xff]
    %v286 = vld [vmem:[%s4 + $0x7e0] sm:$0xff]
    %v287 = vld [vmem:[%s4 + $0x7e8] sm:$0xff]
    %v288 = vld [vmem:[%s4 + $0x7f0] sm:$0xff]
    %v289 = vld [vmem:[%s4 + $0x7f8] sm:$0xff]
    %v290 = vld [vmem:[%s4 + $0x800] sm:$0xff]
    %v291 = vld [vmem:[%s4 + $0x808] sm:$0xff]
    %v292 = vld [vmem:[%s4 + $0x810] sm:$0xff]
    %v293 = vld [vmem:[%s4 + $0x818] sm:$0xff]
    %v294 = vld [vmem:[%s4 + $0x820] sm:$0xff]
    %v295 = vld [vmem:[%s4 + $0x828] sm:$0xff]
    %v296 = vld [vmem:[%s4 + $0x830] sm:$0xff]
    %v297 = vld [vmem:[%s4 + $0x838] sm:$0xff]
    %v298 = vld [vmem:[%s4 + $0x840] sm:$0xff]
    %v299 = vld [vmem:[%s4 + $0x848] sm:$0xff]
    %v300 = vld [vmem:[%s4 + $0x850] sm:$0xff]
    %v301 = vld [vmem:[%s4 + $0x858] sm:$0xff]
    %v302 = vld [vmem:[%s4 + $0x860] sm:$0xff]
    %v303 = vld [vmem:[%s4 + $0x868] sm:$0xff]
    %v304 = vld [vmem:[%s4 + $0x870] sm:$0xff]
    %v305 = vld [vmem:[%s4 + $0x878] sm:$0xff]
    %v306 = vld [vmem:[%s4 + $0x880] sm:$0xff]
    %v307 = vld [vmem:[%s4 + $0x888] sm:$0xff]
    %v308 = vld [vmem:[%s4 + $0x890] sm:$0xff]
    %v309 = vld [vmem:[%s4 + $0x898] sm:$0xff]
    %v310 = vld [vmem:[%s4 + $0x8a0] sm:$0xff]
    %v311 = vld [vmem:[%s4 + $0x8a8] sm:$0xff]
    %v312 = vld [vmem:[%s4 + $0x8b0] sm:$0xff]
    %v313 = vld [vmem:[%s4 + $0x8b8] sm:$0xff]
    %v314 = vld [vmem:[%s4 + $0x8c0] sm:$0xff]
    %v315 = vld [vmem:[%s4 + $0x8c8] sm:$0xff]
    %v316 = vld [vmem:[%s4 + $0x8d0] sm:$0xff]
    %v317 = vld [vmem:[%s4 + $0x8d8] sm:$0xff]
    %v318 = vld [vmem:[%s4 + $0x8e0] sm:$0xff]
    %v319 = vld [vmem:[%s4 + $0x8e8] sm:$0xff]
    %v320 = vld [vmem:[%s4 + $0x8f0] sm:$0xff]
    %v321 = vld [vmem:[%s4 + $0x8f8] sm:$0xff]
    %v322 = vld [vmem:[%s4 + $0x900] sm:$0xff]
    %v323 = vld [vmem:[%s4 + $0x908] sm:$0xff]
    %v324 = vld [vmem:[%s4 + $0x910] sm:$0xff]
    %v325 = vld [vmem:[%s4 + $0x918] sm:$0xff]
    %v326 = vld [vmem:[%s4 + $0x920] sm:$0xff]
    %v327 = vld [vmem:[%s4 + $0x928] sm:$0xff]
    %v328 = vld [vmem:[%s4 + $0x930] sm:$0xff]
    %v329 = vld [vmem:[%s4 + $0x938] sm:$0xff]
    %v330 = vld [vmem:[%s4 + $0x940] sm:$0xff]
    %v331 = vld [vmem:[%s4 + $0x948] sm:$0xff]
    %v332 = vld [vmem:[%s4 + $0x950] sm:$0xff]
    %v333 = vld [vmem:[%s4 + $0x958] sm:$0xff]
    %v334 = vld [vmem:[%s4 + $0x960] sm:$0xff]
    %v335 = vld [vmem:[%s4 + $0x968] sm:$0xff]
    %v336 = vld [vmem:[%s4 + $0x970] sm:$0xff]
    %v337 = vld [vmem:[%s4 + $0x978] sm:$0xff]
    %v338 = vld [vmem:[%s4 + $0x980] sm:$0xff]
    %v339 = vld [vmem:[%s4 + $0x988] sm:$0xff]
    %v340 = vld [vmem:[%s4 + $0x990] sm:$0xff]
    %v341 = vld [vmem:[%s4 + $0x998] sm:$0xff]
    %v342 = vld [vmem:[%s4 + $0x9a0] sm:$0xff]
    %v343 = vld [vmem:[%s4 + $0x9a8] sm:$0xff]
    %v344 = vld [vmem:[%s4 + $0x9b0] sm:$0xff]
    %v345 = vld [vmem:[%s4 + $0x9b8] sm:$0xff]
    %v346 = vld [vmem:[%s4 + $0x9c0] sm:$0xff]
    %v347 = vld [vmem:[%s4 + $0x9c8] sm:$0xff]
    %v348 = vld [vmem:[%s4 + $0x9d0] sm:$0xff]
    %v349 = vld [vmem:[%s4 + $0x9d8] sm:$0xff]
    %v350 = vld [vmem:[%s4 + $0x9e0] sm:$0xff]
    %v351 = vld [vmem:[%s4 + $0x9e8] sm:$0xff]
    %v352 = vld [vmem:[%s4 + $0x9f0] sm:$0xff]
    %v353 = vld [vmem:[%s4 + $0x9f8] sm:$0xff]
    %v354 = vld [vmem:[%s4 + $0xa00] sm:$0xff]
    %v355 = vld [vmem:[%s4 + $0xa08] sm:$0xff]
    %v356 = vld [vmem:[%s4 + $0xa10] sm:$0xff]
    %v357 = vld [vmem:[%s4 + $0xa18] sm:$0xff]
    %v358 = vld [vmem:[%s4 + $0xa20] sm:$0xff]
    %v359 = vld [vmem:[%s4 + $0xa28] sm:$0xff]
    %v360 = vld [vmem:[%s4 + $0xa30] sm:$0xff]
    %v361 = vld [vmem:[%s4 + $0xa38] sm:$0xff]
    %v362 = vld [vmem:[%s4 + $0xa40] sm:$0xff]
    %v363 = vld [vmem:[%s4 + $0xa48] sm:$0xff]
    %v364 = vld [vmem:[%s4 + $0xa50] sm:$0xff]
    %v365 = vld [vmem:[%s4 + $0xa58] sm:$0xff]
    %v366 = vld [vmem:[%s4 + $0xa60] sm:$0xff]
    %v367 = vld [vmem:[%s4 + $0xa68] sm:$0xff]
    %v368 = vld [vmem:[%s4 + $0xa70] sm:$0xff]
    %v369 = vld [vmem:[%s4 + $0xa78] sm:$0xff]
    %v370 = vld [vmem:[%s4 + $0xa80] sm:$0xff]
    %v371 = vld [vmem:[%s4 + $0xa88] sm:$0xff]
    %v372 = vld [vmem:[%s4 + $0xa90] sm:$0xff]
    %v373 = vld [vmem:[%s4 + $0xa98] sm:$0xff]
    %v374 = vld [vmem:[%s4 + $0xaa0] sm:$0xff]
    %v375 = vld [vmem:[%s4 + $0xaa8] sm:$0xff]
    %v376 = vld [vmem:[%s4 + $0xab0] sm:$0xff]
    %v377 = vld [vmem:[%s4 + $0xab8] sm:$0xff]
    %v378 = vld [vmem:[%s4 + $0xac0] sm:$0xff]
    %v379 = vld [vmem:[%s4 + $0xac8] sm:$0xff]
    %v380 = vld [vmem:[%s4 + $0xad0] sm:$0xff]
    %v381 = vld [vmem:[%s4 + $0xad8] sm:$0xff]
    %v382 = vld [vmem:[%s4 + $0xae0] sm:$0xff]
    %v383 = vld [vmem:[%s4 + $0xae8] sm:$0xff]
    %v384 = vld [vmem:[%s4 + $0xaf0] sm:$0xff]
    %v385 = vld [vmem:[%s4 + $0xaf8] sm:$0xff]
    %v386 = vld [vmem:[%s4 + $0xb00] sm:$0xff]
    %v387 = vld [vmem:[%s4 + $0xb08] sm:$0xff]
    %v388 = vld [vmem:[%s4 + $0xb10] sm:$0xff]
    %v389 = vld [vmem:[%s4 + $0xb18] sm:$0xff]
    %v390 = vld [vmem:[%s4 + $0xb20] sm:$0xff]
    %v391 = vld [vmem:[%s4 + $0xb28] sm:$0xff]
    %v392 = vld [vmem:[%s4 + $0xb30] sm:$0xff]
    %v393 = vld [vmem:[%s4 + $0xb38] sm:$0xff]
    %v394 = vld [vmem:[%s4 + $0xb40] sm:$0xff]
    %v395 = vld [vmem:[%s4 + $0xb48] sm:$0xff]
    %v396 = vld [vmem:[%s4 + $0xb50] sm:$0xff]
    %v397 = vld [vmem:[%s4 + $0xb58] sm:$0xff]
    %v398 = vld [vmem:[%s4 + $0xb60] sm:$0xff]
    %v399 = vld [vmem:[%s4 + $0xb68] sm:$0xff]
    %v400 = vld [vmem:[%s4 + $0xb70] sm:$0xff]
    %v401 = vld [vmem:[%s4 + $0xb78] sm:$0xff]
    %v402 = vld [vmem:[%s4 + $0xb80] sm:$0xff]
    %v403 = vld [vmem:[%s4 + $0xb88] sm:$0xff]
    %v404 = vld [vmem:[%s4 + $0xb90] sm:$0xff]
    %v405 = vld [vmem:[%s4 + $0xb98] sm:$0xff]
    %v406 = vld [vmem:[%s4 + $0xba0] sm:$0xff]
    %v407 = vld [vmem:[%s4 + $0xba8] sm:$0xff]
    %v408 = vld [vmem:[%s4 + $0xbb0] sm:$0xff]
    %v409 = vld [vmem:[%s4 + $0xbb8] sm:$0xff]
    %v410 = vld [vmem:[%s4 + $0xbc0] sm:$0xff]
    %v411 = vld [vmem:[%s4 + $0xbc8] sm:$0xff]
    %v412 = vld [vmem:[%s4 + $0xbd0] sm:$0xff]
    %v413 = vld [vmem:[%s4 + $0xbd8] sm:$0xff]
    %v414 = vld [vmem:[%s4 + $0xbe0] sm:$0xff]
    %v415 = vld [vmem:[%s4 + $0xbe8] sm:$0xff]
    %v416 = vld [vmem:[%s4 + $0xbf0] sm:$0xff]
    %v417 = vld [vmem:[%s4 + $0xbf8] sm:$0xff]
    %v418 = vld [vmem:[%s4 + $0xc00] sm:$0xff]
    %v419 = vld [vmem:[%s4 + $0xc08] sm:$0xff]
    %v420 = vld [vmem:[%s4 + $0xc10] sm:$0xff]
    %v421 = vld [vmem:[%s4 + $0xc18] sm:$0xff]
    %v422 = vld [vmem:[%s4 + $0xc20] sm:$0xff]
    %v423 = vld [vmem:[%s4 + $0xc28] sm:$0xff]
    %v424 = vld [vmem:[%s4 + $0xc30] sm:$0xff]
    %v425 = vld [vmem:[%s4 + $0xc38] sm:$0xff]
    %v426 = vld [vmem:[%s4 + $0xc40] sm:$0xff]
    %v427 = vld [vmem:[%s4 + $0xc48] sm:$0xff]
    %v428 = vld [vmem:[%s4 + $0xc50] sm:$0xff]
    %v429 = vld [vmem:[%s4 + $0xc58] sm:$0xff]
    %v430 = vld [vmem:[%s4 + $0xc60] sm:$0xff]
    %v431 = vld [vmem:[%s4 + $0xc68] sm:$0xff]
    %v432 = vld [vmem:[%s4 + $0xc70] sm:$0xff]
    %v433 = vld [vmem:[%s4 + $0xc78] sm:$0xff]
    %v434 = vld [vmem:[%s4 + $0xc80] sm:$0xff]
    %v435 = vld [vmem:[%s4 + $0xc88] sm:$0xff]
    %v436 = vld [vmem:[%s4 + $0xc90] sm:$0xff]
    %v437 = vld [vmem:[%s4 + $0xc98] sm:$0xff]
    %v438 = vld [vmem:[%s4 + $0xca0] sm:$0xff]
    %v439 = vld [vmem:[%s4 + $0xca8] sm:$0xff]
    %v440 = vld [vmem:[%s4 + $0xcb0] sm:$0xff]
    %v441 = vld [vmem:[%s4 + $0xcb8] sm:$0xff]
    %v442 = vld [vmem:[%s4 + $0xcc0] sm:$0xff]
    %v443 = vld [vmem:[%s4 + $0xcc8] sm:$0xff]
    %v444 = vld [vmem:[%s4 + $0xcd0] sm:$0xff]
    %v445 = vld [vmem:[%s4 + $0xcd8] sm:$0xff]
    %v446 = vld [vmem:[%s4 + $0xce0] sm:$0xff]
    %v447 = vld [vmem:[%s4 + $0xce8] sm:$0xff]
    %v448 = vld [vmem:[%s4 + $0xcf0] sm:$0xff]
    %v449 = vld [vmem:[%s4 + $0xcf8] sm:$0xff]
    %v450 = vld [vmem:[%s4 + $0xd00] sm:$0xff]
    %v451 = vld [vmem:[%s4 + $0xd08] sm:$0xff]
    %v452 = vld [vmem:[%s4 + $0xd10] sm:$0xff]
    %v453 = vld [vmem:[%s4 + $0xd18] sm:$0xff]
    %v454 = vld [vmem:[%s4 + $0xd20] sm:$0xff]
    %v455 = vld [vmem:[%s4 + $0xd28] sm:$0xff]
    %v456 = vld [vmem:[%s4 + $0xd30] sm:$0xff]
    %v457 = vld [vmem:[%s4 + $0xd38] sm:$0xff]
    %v458 = vld [vmem:[%s4 + $0xd40] sm:$0xff]
    %v459 = vld [vmem:[%s4 + $0xd48] sm:$0xff]
    %v460 = vld [vmem:[%s4 + $0xd50] sm:$0xff]
    %v461 = vld [vmem:[%s4 + $0xd58] sm:$0xff]
    %v462 = vld [vmem:[%s4 + $0xd60] sm:$0xff]
    %v463 = vld [vmem:[%s4 + $0xd68] sm:$0xff]
    %v464 = vld [vmem:[%s4 + $0xd70] sm:$0xff]
    %v465 = vld [vmem:[%s4 + $0xd78] sm:$0xff]
    %v466 = vld [vmem:[%s4 + $0xd80] sm:$0xff]
    %v467 = vld [vmem:[%s4 + $0xd88] sm:$0xff]
    %v468 = vld [vmem:[%s4 + $0xd90] sm:$0xff]
    %v469 = vld [vmem:[%s4 + $0xd98] sm:$0xff]
    %v470 = vld [vmem:[%s4 + $0xda0] sm:$0xff]
    %v471 = vld [vmem:[%s4 + $0xda8] sm:$0xff]
    %v472 = vld [vmem:[%s4 + $0xdb0] sm:$0xff]
    %v473 = vld [vmem:[%s4 + $0xdb8] sm:$0xff]
    %v474 = vld [vmem:[%s4 + $0xdc0] sm:$0xff]
    %v475 = vld [vmem:[%s4 + $0xdc8] sm:$0xff]
    %v476 = vld [vmem:[%s4 + $0xdd0] sm:$0xff]
    %v477 = vld [vmem:[%s4 + $0xdd8] sm:$0xff]
    %v478 = vld [vmem:[%s4 + $0xde0] sm:$0xff]
    %v479 = vld [vmem:[%s4 + $0xde8] sm:$0xff]
    %v480 = vld [vmem:[%s4 + $0xdf0] sm:$0xff]
    %v481 = vld [vmem:[%s4 + $0xdf8] sm:$0xff]
    %v482 = vld [vmem:[%s4 + $0xe00] sm:$0xff]
    %v483 = vld [vmem:[%s4 + $0xe08] sm:$0xff]
    %v484 = vld [vmem:[%s4 + $0xe10] sm:$0xff]
    %v485 = vld [vmem:[%s4 + $0xe18] sm:$0xff]
    %v486 = vld [vmem:[%s4 + $0xe20] sm:$0xff]
    %v487 = vld [vmem:[%s4 + $0xe28] sm:$0xff]
    %v488 = vld [vmem:[%s4 + $0xe30] sm:$0xff]
    %v489 = vld [vmem:[%s4 + $0xe38] sm:$0xff]
    %v490 = vld [vmem:[%s4 + $0xe40] sm:$0xff]
    %v491 = vld [vmem:[%s4 + $0xe48] sm:$0xff]
    %v492 = vld [vmem:[%s4 + $0xe50] sm:$0xff]
    %v493 = vld [vmem:[%s4 + $0xe58] sm:$0xff]
    %v494 = vld [vmem:[%s4 + $0xe60] sm:$0xff]
    %v495 = vld [vmem:[%s4 + $0xe68] sm:$0xff]
    %v496 = vld [vmem:[%s4 + $0xe70] sm:$0xff]
    %v497 = vld [vmem:[%s4 + $0xe78] sm:$0xff]
    %v498 = vld [vmem:[%s4 + $0xe80] sm:$0xff]
    %v499 = vld [vmem:[%s4 + $0xe88] sm:$0xff]
    %v500 = vld [vmem:[%s4 + $0xe90] sm:$0xff]
    %v501 = vld [vmem:[%s4 + $0xe98] sm:$0xff]
    %v502 = vld [vmem:[%s4 + $0xea0] sm:$0xff]
    %v503 = vld [vmem:[%s4 + $0xea8] sm:$0xff]
    %v504 = vld [vmem:[%s4 + $0xeb0] sm:$0xff]
    %v505 = vld [vmem:[%s4 + $0xeb8] sm:$0xff]
    %v506 = vld [vmem:[%s4 + $0xec0] sm:$0xff]
    %v507 = vld [vmem:[%s4 + $0xec8] sm:$0xff]
    %v508 = vld [vmem:[%s4 + $0xed0] sm:$0xff]
    %v509 = vld [vmem:[%s4 + $0xed8] sm:$0xff]
    %v510 = vld [vmem:[%s4 + $0xee0] sm:$0xff]
    %v511 = vld [vmem:[%s4 + $0xee8] sm:$0xff]
    %v512 = vld [vmem:[%s4 + $0xef0] sm:$0xff]
    %v513 = vld [vmem:[%s4 + $0xef8] sm:$0xff]
    %v514 = vld [vmem:[%s4 + $0xf00] sm:$0xff]
    %v515 = vld [vmem:[%s4 + $0xf08] sm:$0xff]
    %v516 = vld [vmem:[%s4 + $0xf10] sm:$0xff]
    %v517 = vld [vmem:[%s4 + $0xf18] sm:$0xff]
    %v518 = vld [vmem:[%s4 + $0xf20] sm:$0xff]
    %v519 = vld [vmem:[%s4 + $0xf28] sm:$0xff]
    %v520 = vld [vmem:[%s4 + $0xf30] sm:$0xff]
    %v521 = vld [vmem:[%s4 + $0xf38] sm:$0xff]
    %v522 = vld [vmem:[%s4 + $0xf40] sm:$0xff]
    %v523 = vld [vmem:[%s4 + $0xf48] sm:$0xff]
    %v524 = vld [vmem:[%s4 + $0xf50] sm:$0xff]
    %v525 = vld [vmem:[%s4 + $0xf58] sm:$0xff]
    %v526 = vld [vmem:[%s4 + $0xf60] sm:$0xff]
    %v527 = vld [vmem:[%s4 + $0xf68] sm:$0xff]
    %v528 = vld [vmem:[%s4 + $0xf70] sm:$0xff]
    %v529 = vld [vmem:[%s4 + $0xf78] sm:$0xff]
    %v530 = vld [vmem:[%s4 + $0xf80] sm:$0xff]
    %v531 = vld [vmem:[%s4 + $0xf88] sm:$0xff]
    %v532 = vld [vmem:[%s4 + $0xf90] sm:$0xff]
    %v533 = vld [vmem:[%s4 + $0xf98] sm:$0xff]
    %v534 = vld [vmem:[%s4 + $0xfa0] sm:$0xff]
    %v535 = vld [vmem:[%s4 + $0xfa8] sm:$0xff]
    %v536 = vld [vmem:[%s4 + $0xfb0] sm:$0xff]
    %v537 = vld [vmem:[%s4 + $0xfb8] sm:$0xff]
    %v538 = vld [vmem:[%s4 + $0xfc0] sm:$0xff]
    %v539 = vld [vmem:[%s4 + $0xfc8] sm:$0xff]
    %v540 = vld [vmem:[%s4 + $0xfd0] sm:$0xff]
    %v541 = vld [vmem:[%s4 + $0xfd8] sm:$0xff]
    %v542 = vld [vmem:[%s4 + $0xfe0] sm:$0xff]
    %v543 = vld [vmem:[%s4 + $0xfe8] sm:$0xff]
    %v544 = vld [vmem:[%s4 + $0xff0] sm:$0xff]
    %v545 = vld [vmem:[%s4 + $0xff8] sm:$0xff]
    %v546 = vld [vmem:[%s6] sm:$0xff]
    %v548 = vlaneseq
    %v549 = vshrl.u32 %v548, 7
    %v550 = vsub.s32 0, %v549
    %v551 = vrot.slane %v546, %v550
    %v552 = vlaneseq
    %v553 = vshrl.u32 %v552, 7
    %v554 = vsub.s32 1, %v553
    %v555 = vrot.slane %v546, %v554
    %v556 = vlaneseq
    %v557 = vshrl.u32 %v556, 7
    %v558 = vsub.s32 2, %v557
    %v559 = vrot.slane %v546, %v558
    %v560 = vlaneseq
    %v561 = vshrl.u32 %v560, 7
    %v562 = vsub.s32 3, %v561
    %v563 = vrot.slane %v546, %v562
    %v564 = vlaneseq
    %v565 = vshrl.u32 %v564, 7
    %v566 = vsub.s32 4, %v565
    %v567 = vrot.slane %v546, %v566
    %v568 = vlaneseq
    %v569 = vshrl.u32 %v568, 7
    %v570 = vsub.s32 5, %v569
    %v571 = vrot.slane %v546, %v570
    %v572 = vlaneseq
    %v573 = vshrl.u32 %v572, 7
    %v574 = vsub.s32 6, %v573
    %v575 = vrot.slane %v546, %v574
    %v576 = vlaneseq
    %v577 = vshrl.u32 %v576, 7
    %v578 = vsub.s32 7, %v577
    %v579 = vrot.slane %v546, %v578
    %v592 = vunpack.c.l.b16 %v30
    %v593 = vunpack.c.h.b16 %v30
    %v594 = vunpack.c.l.b16 %v31
    %v595 = vunpack.c.h.b16 %v31
    %v596 = vunpack.c.l.b16 %v32
    %v597 = vunpack.c.h.b16 %v32
    %v598 = vunpack.c.l.b16 %v33
    %v599 = vunpack.c.h.b16 %v33
    %v600 = vpack.c.b16 %v592, %v592
    %v601 = vpack.c.b16 %v593, %v593
    %v602 = vpack.c.b16 %v594, %v594
    %v603 = vpack.c.b16 %v595, %v595
    %v604 = vpack.c.b16 %v596, %v596
    %v605 = vpack.c.b16 %v597, %v597
    %v606 = vpack.c.b16 %v598, %v598
    %v607 = vpack.c.b16 %v599, %v599
    %v1128 = vunpack.c.l.b16 %v34
    %v1129 = vunpack.c.h.b16 %v34
    %v1130 = vunpack.c.l.b16 %v35
    %v1131 = vunpack.c.h.b16 %v35
    %v1132 = vunpack.c.l.b16 %v36
    %v1133 = vunpack.c.h.b16 %v36
    %v1134 = vunpack.c.l.b16 %v37
    %v1135 = vunpack.c.h.b16 %v37
    %v1136 = vunpack.c.l.b16 %v38
    %v1137 = vunpack.c.h.b16 %v38
    %v1138 = vunpack.c.l.b16 %v39
    %v1139 = vunpack.c.h.b16 %v39
    %v1140 = vunpack.c.l.b16 %v40
    %v1141 = vunpack.c.h.b16 %v40
    %v1142 = vunpack.c.l.b16 %v41
    %v1143 = vunpack.c.h.b16 %v41
    %v1144 = vunpack.c.l.b16 %v42
    %v1145 = vunpack.c.h.b16 %v42
    %v1146 = vunpack.c.l.b16 %v43
    %v1147 = vunpack.c.h.b16 %v43
    %v1148 = vunpack.c.l.b16 %v44
    %v1149 = vunpack.c.h.b16 %v44
    %v1150 = vunpack.c.l.b16 %v45
    %v1151 = vunpack.c.h.b16 %v45
    %v1152 = vunpack.c.l.b16 %v46
    %v1153 = vunpack.c.h.b16 %v46
    %v1154 = vunpack.c.l.b16 %v47
    %v1155 = vunpack.c.h.b16 %v47
    %v1156 = vunpack.c.l.b16 %v48
    %v1157 = vunpack.c.h.b16 %v48
    %v1158 = vunpack.c.l.b16 %v49
    %v1159 = vunpack.c.h.b16 %v49
    %v1160 = vunpack.c.l.b16 %v50
    %v1161 = vunpack.c.h.b16 %v50
    %v1162 = vunpack.c.l.b16 %v51
    %v1163 = vunpack.c.h.b16 %v51
    %v1164 = vunpack.c.l.b16 %v52
    %v1165 = vunpack.c.h.b16 %v52
    %v1166 = vunpack.c.l.b16 %v53
    %v1167 = vunpack.c.h.b16 %v53
    %v1168 = vunpack.c.l.b16 %v54
    %v1169 = vunpack.c.h.b16 %v54
    %v1170 = vunpack.c.l.b16 %v55
    %v1171 = vunpack.c.h.b16 %v55
    %v1172 = vunpack.c.l.b16 %v56
    %v1173 = vunpack.c.h.b16 %v56
    %v1174 = vunpack.c.l.b16 %v57
    %v1175 = vunpack.c.h.b16 %v57
    %v1176 = vunpack.c.l.b16 %v58
    %v1177 = vunpack.c.h.b16 %v58
    %v1178 = vunpack.c.l.b16 %v59
    %v1179 = vunpack.c.h.b16 %v59
    %v1180 = vunpack.c.l.b16 %v60
    %v1181 = vunpack.c.h.b16 %v60
    %v1182 = vunpack.c.l.b16 %v61
    %v1183 = vunpack.c.h.b16 %v61
    %v1184 = vunpack.c.l.b16 %v62
    %v1185 = vunpack.c.h.b16 %v62
    %v1186 = vunpack.c.l.b16 %v63
    %v1187 = vunpack.c.h.b16 %v63
    %v1188 = vunpack.c.l.b16 %v64
    %v1189 = vunpack.c.h.b16 %v64
    %v1190 = vunpack.c.l.b16 %v65
    %v1191 = vunpack.c.h.b16 %v65
    %v1192 = vunpack.c.l.b16 %v66
    %v1193 = vunpack.c.h.b16 %v66
    %v1194 = vunpack.c.l.b16 %v67
    %v1195 = vunpack.c.h.b16 %v67
    %v1196 = vunpack.c.l.b16 %v68
    %v1197 = vunpack.c.h.b16 %v68
    %v1198 = vunpack.c.l.b16 %v69
    %v1199 = vunpack.c.h.b16 %v69
    %v1200 = vunpack.c.l.b16 %v70
    %v1201 = vunpack.c.h.b16 %v70
    %v1202 = vunpack.c.l.b16 %v71
    %v1203 = vunpack.c.h.b16 %v71
    %v1204 = vunpack.c.l.b16 %v72
    %v1205 = vunpack.c.h.b16 %v72
    %v1206 = vunpack.c.l.b16 %v73
    %v1207 = vunpack.c.h.b16 %v73
    %v1208 = vunpack.c.l.b16 %v74
    %v1209 = vunpack.c.h.b16 %v74
    %v1210 = vunpack.c.l.b16 %v75
    %v1211 = vunpack.c.h.b16 %v75
    %v1212 = vunpack.c.l.b16 %v76
    %v1213 = vunpack.c.h.b16 %v76
    %v1214 = vunpack.c.l.b16 %v77
    %v1215 = vunpack.c.h.b16 %v77
    %v1216 = vunpack.c.l.b16 %v78
    %v1217 = vunpack.c.h.b16 %v78
    %v1218 = vunpack.c.l.b16 %v79
    %v1219 = vunpack.c.h.b16 %v79
    %v1220 = vunpack.c.l.b16 %v80
    %v1221 = vunpack.c.h.b16 %v80
    %v1222 = vunpack.c.l.b16 %v81
    %v1223 = vunpack.c.h.b16 %v81
    %v1224 = vunpack.c.l.b16 %v82
    %v1225 = vunpack.c.h.b16 %v82
    %v1226 = vunpack.c.l.b16 %v83
    %v1227 = vunpack.c.h.b16 %v83
    %v1228 = vunpack.c.l.b16 %v84
    %v1229 = vunpack.c.h.b16 %v84
    %v1230 = vunpack.c.l.b16 %v85
    %v1231 = vunpack.c.h.b16 %v85
    %v1232 = vunpack.c.l.b16 %v86
    %v1233 = vunpack.c.h.b16 %v86
    %v1234 = vunpack.c.l.b16 %v87
    %v1235 = vunpack.c.h.b16 %v87
    %v1236 = vunpack.c.l.b16 %v88
    %v1237 = vunpack.c.h.b16 %v88
    %v1238 = vunpack.c.l.b16 %v89
    %v1239 = vunpack.c.h.b16 %v89
    %v1240 = vunpack.c.l.b16 %v90
    %v1241 = vunpack.c.h.b16 %v90
    %v1242 = vunpack.c.l.b16 %v91
    %v1243 = vunpack.c.h.b16 %v91
    %v1244 = vunpack.c.l.b16 %v92
    %v1245 = vunpack.c.h.b16 %v92
    %v1246 = vunpack.c.l.b16 %v93
    %v1247 = vunpack.c.h.b16 %v93
    %v1248 = vunpack.c.l.b16 %v94
    %v1249 = vunpack.c.h.b16 %v94
    %v1250 = vunpack.c.l.b16 %v95
    %v1251 = vunpack.c.h.b16 %v95
    %v1252 = vunpack.c.l.b16 %v96
    %v1253 = vunpack.c.h.b16 %v96
    %v1254 = vunpack.c.l.b16 %v97
    %v1255 = vunpack.c.h.b16 %v97
    %v1256 = vunpack.c.l.b16 %v98
    %v1257 = vunpack.c.h.b16 %v98
    %v1258 = vunpack.c.l.b16 %v99
    %v1259 = vunpack.c.h.b16 %v99
    %v1260 = vunpack.c.l.b16 %v100
    %v1261 = vunpack.c.h.b16 %v100
    %v1262 = vunpack.c.l.b16 %v101
    %v1263 = vunpack.c.h.b16 %v101
    %v1264 = vunpack.c.l.b16 %v102
    %v1265 = vunpack.c.h.b16 %v102
    %v1266 = vunpack.c.l.b16 %v103
    %v1267 = vunpack.c.h.b16 %v103
    %v1268 = vunpack.c.l.b16 %v104
    %v1269 = vunpack.c.h.b16 %v104
    %v1270 = vunpack.c.l.b16 %v105
    %v1271 = vunpack.c.h.b16 %v105
    %v1272 = vunpack.c.l.b16 %v106
    %v1273 = vunpack.c.h.b16 %v106
    %v1274 = vunpack.c.l.b16 %v107
    %v1275 = vunpack.c.h.b16 %v107
    %v1276 = vunpack.c.l.b16 %v108
    %v1277 = vunpack.c.h.b16 %v108
    %v1278 = vunpack.c.l.b16 %v109
    %v1279 = vunpack.c.h.b16 %v109
    %v1280 = vunpack.c.l.b16 %v110
    %v1281 = vunpack.c.h.b16 %v110
    %v1282 = vunpack.c.l.b16 %v111
    %v1283 = vunpack.c.h.b16 %v111
    %v1284 = vunpack.c.l.b16 %v112
    %v1285 = vunpack.c.h.b16 %v112
    %v1286 = vunpack.c.l.b16 %v113
    %v1287 = vunpack.c.h.b16 %v113
    %v1288 = vunpack.c.l.b16 %v114
    %v1289 = vunpack.c.h.b16 %v114
    %v1290 = vunpack.c.l.b16 %v115
    %v1291 = vunpack.c.h.b16 %v115
    %v1292 = vunpack.c.l.b16 %v116
    %v1293 = vunpack.c.h.b16 %v116
    %v1294 = vunpack.c.l.b16 %v117
    %v1295 = vunpack.c.h.b16 %v117
    %v1296 = vunpack.c.l.b16 %v118
    %v1297 = vunpack.c.h.b16 %v118
    %v1298 = vunpack.c.l.b16 %v119
    %v1299 = vunpack.c.h.b16 %v119
    %v1300 = vunpack.c.l.b16 %v120
    %v1301 = vunpack.c.h.b16 %v120
    %v1302 = vunpack.c.l.b16 %v121
    %v1303 = vunpack.c.h.b16 %v121
    %v1304 = vunpack.c.l.b16 %v122
    %v1305 = vunpack.c.h.b16 %v122
    %v1306 = vunpack.c.l.b16 %v123
    %v1307 = vunpack.c.h.b16 %v123
    %v1308 = vunpack.c.l.b16 %v124
    %v1309 = vunpack.c.h.b16 %v124
    %v1310 = vunpack.c.l.b16 %v125
    %v1311 = vunpack.c.h.b16 %v125
    %v1312 = vunpack.c.l.b16 %v126
    %v1313 = vunpack.c.h.b16 %v126
    %v1314 = vunpack.c.l.b16 %v127
    %v1315 = vunpack.c.h.b16 %v127
    %v1316 = vunpack.c.l.b16 %v128
    %v1317 = vunpack.c.h.b16 %v128
    %v1318 = vunpack.c.l.b16 %v129
    %v1319 = vunpack.c.h.b16 %v129
    %v1320 = vunpack.c.l.b16 %v130
    %v1321 = vunpack.c.h.b16 %v130
    %v1322 = vunpack.c.l.b16 %v131
    %v1323 = vunpack.c.h.b16 %v131
    %v1324 = vunpack.c.l.b16 %v132
    %v1325 = vunpack.c.h.b16 %v132
    %v1326 = vunpack.c.l.b16 %v133
    %v1327 = vunpack.c.h.b16 %v133
    %v1328 = vunpack.c.l.b16 %v134
    %v1329 = vunpack.c.h.b16 %v134
    %v1330 = vunpack.c.l.b16 %v135
    %v1331 = vunpack.c.h.b16 %v135
    %v1332 = vunpack.c.l.b16 %v136
    %v1333 = vunpack.c.h.b16 %v136
    %v1334 = vunpack.c.l.b16 %v137
    %v1335 = vunpack.c.h.b16 %v137
    %v1336 = vunpack.c.l.b16 %v138
    %v1337 = vunpack.c.h.b16 %v138
    %v1338 = vunpack.c.l.b16 %v139
    %v1339 = vunpack.c.h.b16 %v139
    %v1340 = vunpack.c.l.b16 %v140
    %v1341 = vunpack.c.h.b16 %v140
    %v1342 = vunpack.c.l.b16 %v141
    %v1343 = vunpack.c.h.b16 %v141
    %v1344 = vunpack.c.l.b16 %v142
    %v1345 = vunpack.c.h.b16 %v142
    %v1346 = vunpack.c.l.b16 %v143
    %v1347 = vunpack.c.h.b16 %v143
    %v1348 = vunpack.c.l.b16 %v144
    %v1349 = vunpack.c.h.b16 %v144
    %v1350 = vunpack.c.l.b16 %v145
    %v1351 = vunpack.c.h.b16 %v145
    %v1352 = vunpack.c.l.b16 %v146
    %v1353 = vunpack.c.h.b16 %v146
    %v1354 = vunpack.c.l.b16 %v147
    %v1355 = vunpack.c.h.b16 %v147
    %v1356 = vunpack.c.l.b16 %v148
    %v1357 = vunpack.c.h.b16 %v148
    %v1358 = vunpack.c.l.b16 %v149
    %v1359 = vunpack.c.h.b16 %v149
    %v1360 = vunpack.c.l.b16 %v150
    %v1361 = vunpack.c.h.b16 %v150
    %v1362 = vunpack.c.l.b16 %v151
    %v1363 = vunpack.c.h.b16 %v151
    %v1364 = vunpack.c.l.b16 %v152
    %v1365 = vunpack.c.h.b16 %v152
    %v1366 = vunpack.c.l.b16 %v153
    %v1367 = vunpack.c.h.b16 %v153
    %v1368 = vunpack.c.l.b16 %v154
    %v1369 = vunpack.c.h.b16 %v154
    %v1370 = vunpack.c.l.b16 %v155
    %v1371 = vunpack.c.h.b16 %v155
    %v1372 = vunpack.c.l.b16 %v156
    %v1373 = vunpack.c.h.b16 %v156
    %v1374 = vunpack.c.l.b16 %v157
    %v1375 = vunpack.c.h.b16 %v157
    %v1376 = vunpack.c.l.b16 %v158
    %v1377 = vunpack.c.h.b16 %v158
    %v1378 = vunpack.c.l.b16 %v159
    %v1379 = vunpack.c.h.b16 %v159
    %v1380 = vunpack.c.l.b16 %v160
    %v1381 = vunpack.c.h.b16 %v160
    %v1382 = vunpack.c.l.b16 %v161
    %v1383 = vunpack.c.h.b16 %v161
    %v1384 = vunpack.c.l.b16 %v162
    %v1385 = vunpack.c.h.b16 %v162
    %v1386 = vunpack.c.l.b16 %v163
    %v1387 = vunpack.c.h.b16 %v163
    %v1388 = vunpack.c.l.b16 %v164
    %v1389 = vunpack.c.h.b16 %v164
    %v1390 = vunpack.c.l.b16 %v165
    %v1391 = vunpack.c.h.b16 %v165
    %v1392 = vunpack.c.l.b16 %v166
    %v1393 = vunpack.c.h.b16 %v166
    %v1394 = vunpack.c.l.b16 %v167
    %v1395 = vunpack.c.h.b16 %v167
    %v1396 = vunpack.c.l.b16 %v168
    %v1397 = vunpack.c.h.b16 %v168
    %v1398 = vunpack.c.l.b16 %v169
    %v1399 = vunpack.c.h.b16 %v169
    %v1400 = vunpack.c.l.b16 %v170
    %v1401 = vunpack.c.h.b16 %v170
    %v1402 = vunpack.c.l.b16 %v171
    %v1403 = vunpack.c.h.b16 %v171
    %v1404 = vunpack.c.l.b16 %v172
    %v1405 = vunpack.c.h.b16 %v172
    %v1406 = vunpack.c.l.b16 %v173
    %v1407 = vunpack.c.h.b16 %v173
    %v1408 = vunpack.c.l.b16 %v174
    %v1409 = vunpack.c.h.b16 %v174
    %v1410 = vunpack.c.l.b16 %v175
    %v1411 = vunpack.c.h.b16 %v175
    %v1412 = vunpack.c.l.b16 %v176
    %v1413 = vunpack.c.h.b16 %v176
    %v1414 = vunpack.c.l.b16 %v177
    %v1415 = vunpack.c.h.b16 %v177
    %v1416 = vunpack.c.l.b16 %v178
    %v1417 = vunpack.c.h.b16 %v178
    %v1418 = vunpack.c.l.b16 %v179
    %v1419 = vunpack.c.h.b16 %v179
    %v1420 = vunpack.c.l.b16 %v180
    %v1421 = vunpack.c.h.b16 %v180
    %v1422 = vunpack.c.l.b16 %v181
    %v1423 = vunpack.c.h.b16 %v181
    %v1424 = vunpack.c.l.b16 %v182
    %v1425 = vunpack.c.h.b16 %v182
    %v1426 = vunpack.c.l.b16 %v183
    %v1427 = vunpack.c.h.b16 %v183
    %v1428 = vunpack.c.l.b16 %v184
    %v1429 = vunpack.c.h.b16 %v184
    %v1430 = vunpack.c.l.b16 %v185
    %v1431 = vunpack.c.h.b16 %v185
    %v1432 = vunpack.c.l.b16 %v186
    %v1433 = vunpack.c.h.b16 %v186
    %v1434 = vunpack.c.l.b16 %v187
    %v1435 = vunpack.c.h.b16 %v187
    %v1436 = vunpack.c.l.b16 %v188
    %v1437 = vunpack.c.h.b16 %v188
    %v1438 = vunpack.c.l.b16 %v189
    %v1439 = vunpack.c.h.b16 %v189
    %v1440 = vunpack.c.l.b16 %v190
    %v1441 = vunpack.c.h.b16 %v190
    %v1442 = vunpack.c.l.b16 %v191
    %v1443 = vunpack.c.h.b16 %v191
    %v1444 = vunpack.c.l.b16 %v192
    %v1445 = vunpack.c.h.b16 %v192
    %v1446 = vunpack.c.l.b16 %v193
    %v1447 = vunpack.c.h.b16 %v193
    %v1448 = vunpack.c.l.b16 %v194
    %v1449 = vunpack.c.h.b16 %v194
    %v1450 = vunpack.c.l.b16 %v195
    %v1451 = vunpack.c.h.b16 %v195
    %v1452 = vunpack.c.l.b16 %v196
    %v1453 = vunpack.c.h.b16 %v196
    %v1454 = vunpack.c.l.b16 %v197
    %v1455 = vunpack.c.h.b16 %v197
    %v1456 = vunpack.c.l.b16 %v198
    %v1457 = vunpack.c.h.b16 %v198
    %v1458 = vunpack.c.l.b16 %v199
    %v1459 = vunpack.c.h.b16 %v199
    %v1460 = vunpack.c.l.b16 %v200
    %v1461 = vunpack.c.h.b16 %v200
    %v1462 = vunpack.c.l.b16 %v201
    %v1463 = vunpack.c.h.b16 %v201
    %v1464 = vunpack.c.l.b16 %v202
    %v1465 = vunpack.c.h.b16 %v202
    %v1466 = vunpack.c.l.b16 %v203
    %v1467 = vunpack.c.h.b16 %v203
    %v1468 = vunpack.c.l.b16 %v204
    %v1469 = vunpack.c.h.b16 %v204
    %v1470 = vunpack.c.l.b16 %v205
    %v1471 = vunpack.c.h.b16 %v205
    %v1472 = vunpack.c.l.b16 %v206
    %v1473 = vunpack.c.h.b16 %v206
    %v1474 = vunpack.c.l.b16 %v207
    %v1475 = vunpack.c.h.b16 %v207
    %v1476 = vunpack.c.l.b16 %v208
    %v1477 = vunpack.c.h.b16 %v208
    %v1478 = vunpack.c.l.b16 %v209
    %v1479 = vunpack.c.h.b16 %v209
    %v1480 = vunpack.c.l.b16 %v210
    %v1481 = vunpack.c.h.b16 %v210
    %v1482 = vunpack.c.l.b16 %v211
    %v1483 = vunpack.c.h.b16 %v211
    %v1484 = vunpack.c.l.b16 %v212
    %v1485 = vunpack.c.h.b16 %v212
    %v1486 = vunpack.c.l.b16 %v213
    %v1487 = vunpack.c.h.b16 %v213
    %v1488 = vunpack.c.l.b16 %v214
    %v1489 = vunpack.c.h.b16 %v214
    %v1490 = vunpack.c.l.b16 %v215
    %v1491 = vunpack.c.h.b16 %v215
    %v1492 = vunpack.c.l.b16 %v216
    %v1493 = vunpack.c.h.b16 %v216
    %v1494 = vunpack.c.l.b16 %v217
    %v1495 = vunpack.c.h.b16 %v217
    %v1496 = vunpack.c.l.b16 %v218
    %v1497 = vunpack.c.h.b16 %v218
    %v1498 = vunpack.c.l.b16 %v219
    %v1499 = vunpack.c.h.b16 %v219
    %v1500 = vunpack.c.l.b16 %v220
    %v1501 = vunpack.c.h.b16 %v220
    %v1502 = vunpack.c.l.b16 %v221
    %v1503 = vunpack.c.h.b16 %v221
    %v1504 = vunpack.c.l.b16 %v222
    %v1505 = vunpack.c.h.b16 %v222
    %v1506 = vunpack.c.l.b16 %v223
    %v1507 = vunpack.c.h.b16 %v223
    %v1508 = vunpack.c.l.b16 %v224
    %v1509 = vunpack.c.h.b16 %v224
    %v1510 = vunpack.c.l.b16 %v225
    %v1511 = vunpack.c.h.b16 %v225
    %v1512 = vunpack.c.l.b16 %v226
    %v1513 = vunpack.c.h.b16 %v226
    %v1514 = vunpack.c.l.b16 %v227
    %v1515 = vunpack.c.h.b16 %v227
    %v1516 = vunpack.c.l.b16 %v228
    %v1517 = vunpack.c.h.b16 %v228
    %v1518 = vunpack.c.l.b16 %v229
    %v1519 = vunpack.c.h.b16 %v229
    %v1520 = vunpack.c.l.b16 %v230
    %v1521 = vunpack.c.h.b16 %v230
    %v1522 = vunpack.c.l.b16 %v231
    %v1523 = vunpack.c.h.b16 %v231
    %v1524 = vunpack.c.l.b16 %v232
    %v1525 = vunpack.c.h.b16 %v232
    %v1526 = vunpack.c.l.b16 %v233
    %v1527 = vunpack.c.h.b16 %v233
    %v1528 = vunpack.c.l.b16 %v234
    %v1529 = vunpack.c.h.b16 %v234
    %v1530 = vunpack.c.l.b16 %v235
    %v1531 = vunpack.c.h.b16 %v235
    %v1532 = vunpack.c.l.b16 %v236
    %v1533 = vunpack.c.h.b16 %v236
    %v1534 = vunpack.c.l.b16 %v237
    %v1535 = vunpack.c.h.b16 %v237
    %v1536 = vunpack.c.l.b16 %v238
    %v1537 = vunpack.c.h.b16 %v238
    %v1538 = vunpack.c.l.b16 %v239
    %v1539 = vunpack.c.h.b16 %v239
    %v1540 = vunpack.c.l.b16 %v240
    %v1541 = vunpack.c.h.b16 %v240
    %v1542 = vunpack.c.l.b16 %v241
    %v1543 = vunpack.c.h.b16 %v241
    %v1544 = vunpack.c.l.b16 %v242
    %v1545 = vunpack.c.h.b16 %v242
    %v1546 = vunpack.c.l.b16 %v243
    %v1547 = vunpack.c.h.b16 %v243
    %v1548 = vunpack.c.l.b16 %v244
    %v1549 = vunpack.c.h.b16 %v244
    %v1550 = vunpack.c.l.b16 %v245
    %v1551 = vunpack.c.h.b16 %v245
    %v1552 = vunpack.c.l.b16 %v246
    %v1553 = vunpack.c.h.b16 %v246
    %v1554 = vunpack.c.l.b16 %v247
    %v1555 = vunpack.c.h.b16 %v247
    %v1556 = vunpack.c.l.b16 %v248
    %v1557 = vunpack.c.h.b16 %v248
    %v1558 = vunpack.c.l.b16 %v249
    %v1559 = vunpack.c.h.b16 %v249
    %v1560 = vunpack.c.l.b16 %v250
    %v1561 = vunpack.c.h.b16 %v250
    %v1562 = vunpack.c.l.b16 %v251
    %v1563 = vunpack.c.h.b16 %v251
    %v1564 = vunpack.c.l.b16 %v252
    %v1565 = vunpack.c.h.b16 %v252
    %v1566 = vunpack.c.l.b16 %v253
    %v1567 = vunpack.c.h.b16 %v253
    %v1568 = vunpack.c.l.b16 %v254
    %v1569 = vunpack.c.h.b16 %v254
    %v1570 = vunpack.c.l.b16 %v255
    %v1571 = vunpack.c.h.b16 %v255
    %v1572 = vunpack.c.l.b16 %v256
    %v1573 = vunpack.c.h.b16 %v256
    %v1574 = vunpack.c.l.b16 %v257
    %v1575 = vunpack.c.h.b16 %v257
    %v1576 = vunpack.c.l.b16 %v258
    %v1577 = vunpack.c.h.b16 %v258
    %v1578 = vunpack.c.l.b16 %v259
    %v1579 = vunpack.c.h.b16 %v259
    %v1580 = vunpack.c.l.b16 %v260
    %v1581 = vunpack.c.h.b16 %v260
    %v1582 = vunpack.c.l.b16 %v261
    %v1583 = vunpack.c.h.b16 %v261
    %v1584 = vunpack.c.l.b16 %v262
    %v1585 = vunpack.c.h.b16 %v262
    %v1586 = vunpack.c.l.b16 %v263
    %v1587 = vunpack.c.h.b16 %v263
    %v1588 = vunpack.c.l.b16 %v264
    %v1589 = vunpack.c.h.b16 %v264
    %v1590 = vunpack.c.l.b16 %v265
    %v1591 = vunpack.c.h.b16 %v265
    %v1592 = vunpack.c.l.b16 %v266
    %v1593 = vunpack.c.h.b16 %v266
    %v1594 = vunpack.c.l.b16 %v267
    %v1595 = vunpack.c.h.b16 %v267
    %v1596 = vunpack.c.l.b16 %v268
    %v1597 = vunpack.c.h.b16 %v268
    %v1598 = vunpack.c.l.b16 %v269
    %v1599 = vunpack.c.h.b16 %v269
    %v1600 = vunpack.c.l.b16 %v270
    %v1601 = vunpack.c.h.b16 %v270
    %v1602 = vunpack.c.l.b16 %v271
    %v1603 = vunpack.c.h.b16 %v271
    %v1604 = vunpack.c.l.b16 %v272
    %v1605 = vunpack.c.h.b16 %v272
    %v1606 = vunpack.c.l.b16 %v273
    %v1607 = vunpack.c.h.b16 %v273
    %v1608 = vunpack.c.l.b16 %v274
    %v1609 = vunpack.c.h.b16 %v274
    %v1610 = vunpack.c.l.b16 %v275
    %v1611 = vunpack.c.h.b16 %v275
    %v1612 = vunpack.c.l.b16 %v276
    %v1613 = vunpack.c.h.b16 %v276
    %v1614 = vunpack.c.l.b16 %v277
    %v1615 = vunpack.c.h.b16 %v277
    %v1616 = vunpack.c.l.b16 %v278
    %v1617 = vunpack.c.h.b16 %v278
    %v1618 = vunpack.c.l.b16 %v279
    %v1619 = vunpack.c.h.b16 %v279
    %v1620 = vunpack.c.l.b16 %v280
    %v1621 = vunpack.c.h.b16 %v280
    %v1622 = vunpack.c.l.b16 %v281
    %v1623 = vunpack.c.h.b16 %v281
    %v1624 = vunpack.c.l.b16 %v282
    %v1625 = vunpack.c.h.b16 %v282
    %v1626 = vunpack.c.l.b16 %v283
    %v1627 = vunpack.c.h.b16 %v283
    %v1628 = vunpack.c.l.b16 %v284
    %v1629 = vunpack.c.h.b16 %v284
    %v1630 = vunpack.c.l.b16 %v285
    %v1631 = vunpack.c.h.b16 %v285
    %v1632 = vunpack.c.l.b16 %v286
    %v1633 = vunpack.c.h.b16 %v286
    %v1634 = vunpack.c.l.b16 %v287
    %v1635 = vunpack.c.h.b16 %v287
    %v1636 = vunpack.c.l.b16 %v288
    %v1637 = vunpack.c.h.b16 %v288
    %v1638 = vunpack.c.l.b16 %v289
    %v1639 = vunpack.c.h.b16 %v289
    %v1640 = vunpack.c.l.b16 %v290
    %v1641 = vunpack.c.h.b16 %v290
    %v1642 = vunpack.c.l.b16 %v291
    %v1643 = vunpack.c.h.b16 %v291
    %v1644 = vunpack.c.l.b16 %v292
    %v1645 = vunpack.c.h.b16 %v292
    %v1646 = vunpack.c.l.b16 %v293
    %v1647 = vunpack.c.h.b16 %v293
    %v1648 = vunpack.c.l.b16 %v294
    %v1649 = vunpack.c.h.b16 %v294
    %v1650 = vunpack.c.l.b16 %v295
    %v1651 = vunpack.c.h.b16 %v295
    %v1652 = vunpack.c.l.b16 %v296
    %v1653 = vunpack.c.h.b16 %v296
    %v1654 = vunpack.c.l.b16 %v297
    %v1655 = vunpack.c.h.b16 %v297
    %v1656 = vunpack.c.l.b16 %v298
    %v1657 = vunpack.c.h.b16 %v298
    %v1658 = vunpack.c.l.b16 %v299
    %v1659 = vunpack.c.h.b16 %v299
    %v1660 = vunpack.c.l.b16 %v300
    %v1661 = vunpack.c.h.b16 %v300
    %v1662 = vunpack.c.l.b16 %v301
    %v1663 = vunpack.c.h.b16 %v301
    %v1664 = vunpack.c.l.b16 %v302
    %v1665 = vunpack.c.h.b16 %v302
    %v1666 = vunpack.c.l.b16 %v303
    %v1667 = vunpack.c.h.b16 %v303
    %v1668 = vunpack.c.l.b16 %v304
    %v1669 = vunpack.c.h.b16 %v304
    %v1670 = vunpack.c.l.b16 %v305
    %v1671 = vunpack.c.h.b16 %v305
    %v1672 = vunpack.c.l.b16 %v306
    %v1673 = vunpack.c.h.b16 %v306
    %v1674 = vunpack.c.l.b16 %v307
    %v1675 = vunpack.c.h.b16 %v307
    %v1676 = vunpack.c.l.b16 %v308
    %v1677 = vunpack.c.h.b16 %v308
    %v1678 = vunpack.c.l.b16 %v309
    %v1679 = vunpack.c.h.b16 %v309
    %v1680 = vunpack.c.l.b16 %v310
    %v1681 = vunpack.c.h.b16 %v310
    %v1682 = vunpack.c.l.b16 %v311
    %v1683 = vunpack.c.h.b16 %v311
    %v1684 = vunpack.c.l.b16 %v312
    %v1685 = vunpack.c.h.b16 %v312
    %v1686 = vunpack.c.l.b16 %v313
    %v1687 = vunpack.c.h.b16 %v313
    %v1688 = vunpack.c.l.b16 %v314
    %v1689 = vunpack.c.h.b16 %v314
    %v1690 = vunpack.c.l.b16 %v315
    %v1691 = vunpack.c.h.b16 %v315
    %v1692 = vunpack.c.l.b16 %v316
    %v1693 = vunpack.c.h.b16 %v316
    %v1694 = vunpack.c.l.b16 %v317
    %v1695 = vunpack.c.h.b16 %v317
    %v1696 = vunpack.c.l.b16 %v318
    %v1697 = vunpack.c.h.b16 %v318
    %v1698 = vunpack.c.l.b16 %v319
    %v1699 = vunpack.c.h.b16 %v319
    %v1700 = vunpack.c.l.b16 %v320
    %v1701 = vunpack.c.h.b16 %v320
    %v1702 = vunpack.c.l.b16 %v321
    %v1703 = vunpack.c.h.b16 %v321
    %v1704 = vunpack.c.l.b16 %v322
    %v1705 = vunpack.c.h.b16 %v322
    %v1706 = vunpack.c.l.b16 %v323
    %v1707 = vunpack.c.h.b16 %v323
    %v1708 = vunpack.c.l.b16 %v324
    %v1709 = vunpack.c.h.b16 %v324
    %v1710 = vunpack.c.l.b16 %v325
    %v1711 = vunpack.c.h.b16 %v325
    %v1712 = vunpack.c.l.b16 %v326
    %v1713 = vunpack.c.h.b16 %v326
    %v1714 = vunpack.c.l.b16 %v327
    %v1715 = vunpack.c.h.b16 %v327
    %v1716 = vunpack.c.l.b16 %v328
    %v1717 = vunpack.c.h.b16 %v328
    %v1718 = vunpack.c.l.b16 %v329
    %v1719 = vunpack.c.h.b16 %v329
    %v1720 = vunpack.c.l.b16 %v330
    %v1721 = vunpack.c.h.b16 %v330
    %v1722 = vunpack.c.l.b16 %v331
    %v1723 = vunpack.c.h.b16 %v331
    %v1724 = vunpack.c.l.b16 %v332
    %v1725 = vunpack.c.h.b16 %v332
    %v1726 = vunpack.c.l.b16 %v333
    %v1727 = vunpack.c.h.b16 %v333
    %v1728 = vunpack.c.l.b16 %v334
    %v1729 = vunpack.c.h.b16 %v334
    %v1730 = vunpack.c.l.b16 %v335
    %v1731 = vunpack.c.h.b16 %v335
    %v1732 = vunpack.c.l.b16 %v336
    %v1733 = vunpack.c.h.b16 %v336
    %v1734 = vunpack.c.l.b16 %v337
    %v1735 = vunpack.c.h.b16 %v337
    %v1736 = vunpack.c.l.b16 %v338
    %v1737 = vunpack.c.h.b16 %v338
    %v1738 = vunpack.c.l.b16 %v339
    %v1739 = vunpack.c.h.b16 %v339
    %v1740 = vunpack.c.l.b16 %v340
    %v1741 = vunpack.c.h.b16 %v340
    %v1742 = vunpack.c.l.b16 %v341
    %v1743 = vunpack.c.h.b16 %v341
    %v1744 = vunpack.c.l.b16 %v342
    %v1745 = vunpack.c.h.b16 %v342
    %v1746 = vunpack.c.l.b16 %v343
    %v1747 = vunpack.c.h.b16 %v343
    %v1748 = vunpack.c.l.b16 %v344
    %v1749 = vunpack.c.h.b16 %v344
    %v1750 = vunpack.c.l.b16 %v345
    %v1751 = vunpack.c.h.b16 %v345
    %v1752 = vunpack.c.l.b16 %v346
    %v1753 = vunpack.c.h.b16 %v346
    %v1754 = vunpack.c.l.b16 %v347
    %v1755 = vunpack.c.h.b16 %v347
    %v1756 = vunpack.c.l.b16 %v348
    %v1757 = vunpack.c.h.b16 %v348
    %v1758 = vunpack.c.l.b16 %v349
    %v1759 = vunpack.c.h.b16 %v349
    %v1760 = vunpack.c.l.b16 %v350
    %v1761 = vunpack.c.h.b16 %v350
    %v1762 = vunpack.c.l.b16 %v351
    %v1763 = vunpack.c.h.b16 %v351
    %v1764 = vunpack.c.l.b16 %v352
    %v1765 = vunpack.c.h.b16 %v352
    %v1766 = vunpack.c.l.b16 %v353
    %v1767 = vunpack.c.h.b16 %v353
    %v1768 = vunpack.c.l.b16 %v354
    %v1769 = vunpack.c.h.b16 %v354
    %v1770 = vunpack.c.l.b16 %v355
    %v1771 = vunpack.c.h.b16 %v355
    %v1772 = vunpack.c.l.b16 %v356
    %v1773 = vunpack.c.h.b16 %v356
    %v1774 = vunpack.c.l.b16 %v357
    %v1775 = vunpack.c.h.b16 %v357
    %v1776 = vunpack.c.l.b16 %v358
    %v1777 = vunpack.c.h.b16 %v358
    %v1778 = vunpack.c.l.b16 %v359
    %v1779 = vunpack.c.h.b16 %v359
    %v1780 = vunpack.c.l.b16 %v360
    %v1781 = vunpack.c.h.b16 %v360
    %v1782 = vunpack.c.l.b16 %v361
    %v1783 = vunpack.c.h.b16 %v361
    %v1784 = vunpack.c.l.b16 %v362
    %v1785 = vunpack.c.h.b16 %v362
    %v1786 = vunpack.c.l.b16 %v363
    %v1787 = vunpack.c.h.b16 %v363
    %v1788 = vunpack.c.l.b16 %v364
    %v1789 = vunpack.c.h.b16 %v364
    %v1790 = vunpack.c.l.b16 %v365
    %v1791 = vunpack.c.h.b16 %v365
    %v1792 = vunpack.c.l.b16 %v366
    %v1793 = vunpack.c.h.b16 %v366
    %v1794 = vunpack.c.l.b16 %v367
    %v1795 = vunpack.c.h.b16 %v367
    %v1796 = vunpack.c.l.b16 %v368
    %v1797 = vunpack.c.h.b16 %v368
    %v1798 = vunpack.c.l.b16 %v369
    %v1799 = vunpack.c.h.b16 %v369
    %v1800 = vunpack.c.l.b16 %v370
    %v1801 = vunpack.c.h.b16 %v370
    %v1802 = vunpack.c.l.b16 %v371
    %v1803 = vunpack.c.h.b16 %v371
    %v1804 = vunpack.c.l.b16 %v372
    %v1805 = vunpack.c.h.b16 %v372
    %v1806 = vunpack.c.l.b16 %v373
    %v1807 = vunpack.c.h.b16 %v373
    %v1808 = vunpack.c.l.b16 %v374
    %v1809 = vunpack.c.h.b16 %v374
    %v1810 = vunpack.c.l.b16 %v375
    %v1811 = vunpack.c.h.b16 %v375
    %v1812 = vunpack.c.l.b16 %v376
    %v1813 = vunpack.c.h.b16 %v376
    %v1814 = vunpack.c.l.b16 %v377
    %v1815 = vunpack.c.h.b16 %v377
    %v1816 = vunpack.c.l.b16 %v378
    %v1817 = vunpack.c.h.b16 %v378
    %v1818 = vunpack.c.l.b16 %v379
    %v1819 = vunpack.c.h.b16 %v379
    %v1820 = vunpack.c.l.b16 %v380
    %v1821 = vunpack.c.h.b16 %v380
    %v1822 = vunpack.c.l.b16 %v381
    %v1823 = vunpack.c.h.b16 %v381
    %v1824 = vunpack.c.l.b16 %v382
    %v1825 = vunpack.c.h.b16 %v382
    %v1826 = vunpack.c.l.b16 %v383
    %v1827 = vunpack.c.h.b16 %v383
    %v1828 = vunpack.c.l.b16 %v384
    %v1829 = vunpack.c.h.b16 %v384
    %v1830 = vunpack.c.l.b16 %v385
    %v1831 = vunpack.c.h.b16 %v385
    %v1832 = vunpack.c.l.b16 %v386
    %v1833 = vunpack.c.h.b16 %v386
    %v1834 = vunpack.c.l.b16 %v387
    %v1835 = vunpack.c.h.b16 %v387
    %v1836 = vunpack.c.l.b16 %v388
    %v1837 = vunpack.c.h.b16 %v388
    %v1838 = vunpack.c.l.b16 %v389
    %v1839 = vunpack.c.h.b16 %v389
    %v1840 = vunpack.c.l.b16 %v390
    %v1841 = vunpack.c.h.b16 %v390
    %v1842 = vunpack.c.l.b16 %v391
    %v1843 = vunpack.c.h.b16 %v391
    %v1844 = vunpack.c.l.b16 %v392
    %v1845 = vunpack.c.h.b16 %v392
    %v1846 = vunpack.c.l.b16 %v393
    %v1847 = vunpack.c.h.b16 %v393
    %v1848 = vunpack.c.l.b16 %v394
    %v1849 = vunpack.c.h.b16 %v394
    %v1850 = vunpack.c.l.b16 %v395
    %v1851 = vunpack.c.h.b16 %v395
    %v1852 = vunpack.c.l.b16 %v396
    %v1853 = vunpack.c.h.b16 %v396
    %v1854 = vunpack.c.l.b16 %v397
    %v1855 = vunpack.c.h.b16 %v397
    %v1856 = vunpack.c.l.b16 %v398
    %v1857 = vunpack.c.h.b16 %v398
    %v1858 = vunpack.c.l.b16 %v399
    %v1859 = vunpack.c.h.b16 %v399
    %v1860 = vunpack.c.l.b16 %v400
    %v1861 = vunpack.c.h.b16 %v400
    %v1862 = vunpack.c.l.b16 %v401
    %v1863 = vunpack.c.h.b16 %v401
    %v1864 = vunpack.c.l.b16 %v402
    %v1865 = vunpack.c.h.b16 %v402
    %v1866 = vunpack.c.l.b16 %v403
    %v1867 = vunpack.c.h.b16 %v403
    %v1868 = vunpack.c.l.b16 %v404
    %v1869 = vunpack.c.h.b16 %v404
    %v1870 = vunpack.c.l.b16 %v405
    %v1871 = vunpack.c.h.b16 %v405
    %v1872 = vunpack.c.l.b16 %v406
    %v1873 = vunpack.c.h.b16 %v406
    %v1874 = vunpack.c.l.b16 %v407
    %v1875 = vunpack.c.h.b16 %v407
    %v1876 = vunpack.c.l.b16 %v408
    %v1877 = vunpack.c.h.b16 %v408
    %v1878 = vunpack.c.l.b16 %v409
    %v1879 = vunpack.c.h.b16 %v409
    %v1880 = vunpack.c.l.b16 %v410
    %v1881 = vunpack.c.h.b16 %v410
    %v1882 = vunpack.c.l.b16 %v411
    %v1883 = vunpack.c.h.b16 %v411
    %v1884 = vunpack.c.l.b16 %v412
    %v1885 = vunpack.c.h.b16 %v412
    %v1886 = vunpack.c.l.b16 %v413
    %v1887 = vunpack.c.h.b16 %v413
    %v1888 = vunpack.c.l.b16 %v414
    %v1889 = vunpack.c.h.b16 %v414
    %v1890 = vunpack.c.l.b16 %v415
    %v1891 = vunpack.c.h.b16 %v415
    %v1892 = vunpack.c.l.b16 %v416
    %v1893 = vunpack.c.h.b16 %v416
    %v1894 = vunpack.c.l.b16 %v417
    %v1895 = vunpack.c.h.b16 %v417
    %v1896 = vunpack.c.l.b16 %v418
    %v1897 = vunpack.c.h.b16 %v418
    %v1898 = vunpack.c.l.b16 %v419
    %v1899 = vunpack.c.h.b16 %v419
    %v1900 = vunpack.c.l.b16 %v420
    %v1901 = vunpack.c.h.b16 %v420
    %v1902 = vunpack.c.l.b16 %v421
    %v1903 = vunpack.c.h.b16 %v421
    %v1904 = vunpack.c.l.b16 %v422
    %v1905 = vunpack.c.h.b16 %v422
    %v1906 = vunpack.c.l.b16 %v423
    %v1907 = vunpack.c.h.b16 %v423
    %v1908 = vunpack.c.l.b16 %v424
    %v1909 = vunpack.c.h.b16 %v424
    %v1910 = vunpack.c.l.b16 %v425
    %v1911 = vunpack.c.h.b16 %v425
    %v1912 = vunpack.c.l.b16 %v426
    %v1913 = vunpack.c.h.b16 %v426
    %v1914 = vunpack.c.l.b16 %v427
    %v1915 = vunpack.c.h.b16 %v427
    %v1916 = vunpack.c.l.b16 %v428
    %v1917 = vunpack.c.h.b16 %v428
    %v1918 = vunpack.c.l.b16 %v429
    %v1919 = vunpack.c.h.b16 %v429
    %v1920 = vunpack.c.l.b16 %v430
    %v1921 = vunpack.c.h.b16 %v430
    %v1922 = vunpack.c.l.b16 %v431
    %v1923 = vunpack.c.h.b16 %v431
    %v1924 = vunpack.c.l.b16 %v432
    %v1925 = vunpack.c.h.b16 %v432
    %v1926 = vunpack.c.l.b16 %v433
    %v1927 = vunpack.c.h.b16 %v433
    %v1928 = vunpack.c.l.b16 %v434
    %v1929 = vunpack.c.h.b16 %v434
    %v1930 = vunpack.c.l.b16 %v435
    %v1931 = vunpack.c.h.b16 %v435
    %v1932 = vunpack.c.l.b16 %v436
    %v1933 = vunpack.c.h.b16 %v436
    %v1934 = vunpack.c.l.b16 %v437
    %v1935 = vunpack.c.h.b16 %v437
    %v1936 = vunpack.c.l.b16 %v438
    %v1937 = vunpack.c.h.b16 %v438
    %v1938 = vunpack.c.l.b16 %v439
    %v1939 = vunpack.c.h.b16 %v439
    %v1940 = vunpack.c.l.b16 %v440
    %v1941 = vunpack.c.h.b16 %v440
    %v1942 = vunpack.c.l.b16 %v441
    %v1943 = vunpack.c.h.b16 %v441
    %v1944 = vunpack.c.l.b16 %v442
    %v1945 = vunpack.c.h.b16 %v442
    %v1946 = vunpack.c.l.b16 %v443
    %v1947 = vunpack.c.h.b16 %v443
    %v1948 = vunpack.c.l.b16 %v444
    %v1949 = vunpack.c.h.b16 %v444
    %v1950 = vunpack.c.l.b16 %v445
    %v1951 = vunpack.c.h.b16 %v445
    %v1952 = vunpack.c.l.b16 %v446
    %v1953 = vunpack.c.h.b16 %v446
    %v1954 = vunpack.c.l.b16 %v447
    %v1955 = vunpack.c.h.b16 %v447
    %v1956 = vunpack.c.l.b16 %v448
    %v1957 = vunpack.c.h.b16 %v448
    %v1958 = vunpack.c.l.b16 %v449
    %v1959 = vunpack.c.h.b16 %v449
    %v1960 = vunpack.c.l.b16 %v450
    %v1961 = vunpack.c.h.b16 %v450
    %v1962 = vunpack.c.l.b16 %v451
    %v1963 = vunpack.c.h.b16 %v451
    %v1964 = vunpack.c.l.b16 %v452
    %v1965 = vunpack.c.h.b16 %v452
    %v1966 = vunpack.c.l.b16 %v453
    %v1967 = vunpack.c.h.b16 %v453
    %v1968 = vunpack.c.l.b16 %v454
    %v1969 = vunpack.c.h.b16 %v454
    %v1970 = vunpack.c.l.b16 %v455
    %v1971 = vunpack.c.h.b16 %v455
    %v1972 = vunpack.c.l.b16 %v456
    %v1973 = vunpack.c.h.b16 %v456
    %v1974 = vunpack.c.l.b16 %v457
    %v1975 = vunpack.c.h.b16 %v457
    %v1976 = vunpack.c.l.b16 %v458
    %v1977 = vunpack.c.h.b16 %v458
    %v1978 = vunpack.c.l.b16 %v459
    %v1979 = vunpack.c.h.b16 %v459
    %v1980 = vunpack.c.l.b16 %v460
    %v1981 = vunpack.c.h.b16 %v460
    %v1982 = vunpack.c.l.b16 %v461
    %v1983 = vunpack.c.h.b16 %v461
    %v1984 = vunpack.c.l.b16 %v462
    %v1985 = vunpack.c.h.b16 %v462
    %v1986 = vunpack.c.l.b16 %v463
    %v1987 = vunpack.c.h.b16 %v463
    %v1988 = vunpack.c.l.b16 %v464
    %v1989 = vunpack.c.h.b16 %v464
    %v1990 = vunpack.c.l.b16 %v465
    %v1991 = vunpack.c.h.b16 %v465
    %v1992 = vunpack.c.l.b16 %v466
    %v1993 = vunpack.c.h.b16 %v466
    %v1994 = vunpack.c.l.b16 %v467
    %v1995 = vunpack.c.h.b16 %v467
    %v1996 = vunpack.c.l.b16 %v468
    %v1997 = vunpack.c.h.b16 %v468
    %v1998 = vunpack.c.l.b16 %v469
    %v1999 = vunpack.c.h.b16 %v469
    %v2000 = vunpack.c.l.b16 %v470
    %v2001 = vunpack.c.h.b16 %v470
    %v2002 = vunpack.c.l.b16 %v471
    %v2003 = vunpack.c.h.b16 %v471
    %v2004 = vunpack.c.l.b16 %v472
    %v2005 = vunpack.c.h.b16 %v472
    %v2006 = vunpack.c.l.b16 %v473
    %v2007 = vunpack.c.h.b16 %v473
    %v2008 = vunpack.c.l.b16 %v474
    %v2009 = vunpack.c.h.b16 %v474
    %v2010 = vunpack.c.l.b16 %v475
    %v2011 = vunpack.c.h.b16 %v475
    %v2012 = vunpack.c.l.b16 %v476
    %v2013 = vunpack.c.h.b16 %v476
    %v2014 = vunpack.c.l.b16 %v477
    %v2015 = vunpack.c.h.b16 %v477
    %v2016 = vunpack.c.l.b16 %v478
    %v2017 = vunpack.c.h.b16 %v478
    %v2018 = vunpack.c.l.b16 %v479
    %v2019 = vunpack.c.h.b16 %v479
    %v2020 = vunpack.c.l.b16 %v480
    %v2021 = vunpack.c.h.b16 %v480
    %v2022 = vunpack.c.l.b16 %v481
    %v2023 = vunpack.c.h.b16 %v481
    %v2024 = vunpack.c.l.b16 %v482
    %v2025 = vunpack.c.h.b16 %v482
    %v2026 = vunpack.c.l.b16 %v483
    %v2027 = vunpack.c.h.b16 %v483
    %v2028 = vunpack.c.l.b16 %v484
    %v2029 = vunpack.c.h.b16 %v484
    %v2030 = vunpack.c.l.b16 %v485
    %v2031 = vunpack.c.h.b16 %v485
    %v2032 = vunpack.c.l.b16 %v486
    %v2033 = vunpack.c.h.b16 %v486
    %v2034 = vunpack.c.l.b16 %v487
    %v2035 = vunpack.c.h.b16 %v487
    %v2036 = vunpack.c.l.b16 %v488
    %v2037 = vunpack.c.h.b16 %v488
    %v2038 = vunpack.c.l.b16 %v489
    %v2039 = vunpack.c.h.b16 %v489
    %v2040 = vunpack.c.l.b16 %v490
    %v2041 = vunpack.c.h.b16 %v490
    %v2042 = vunpack.c.l.b16 %v491
    %v2043 = vunpack.c.h.b16 %v491
    %v2044 = vunpack.c.l.b16 %v492
    %v2045 = vunpack.c.h.b16 %v492
    %v2046 = vunpack.c.l.b16 %v493
    %v2047 = vunpack.c.h.b16 %v493
    %v2048 = vunpack.c.l.b16 %v494
    %v2049 = vunpack.c.h.b16 %v494
    %v2050 = vunpack.c.l.b16 %v495
    %v2051 = vunpack.c.h.b16 %v495
    %v2052 = vunpack.c.l.b16 %v496
    %v2053 = vunpack.c.h.b16 %v496
    %v2054 = vunpack.c.l.b16 %v497
    %v2055 = vunpack.c.h.b16 %v497
    %v2056 = vunpack.c.l.b16 %v498
    %v2057 = vunpack.c.h.b16 %v498
    %v2058 = vunpack.c.l.b16 %v499
    %v2059 = vunpack.c.h.b16 %v499
    %v2060 = vunpack.c.l.b16 %v500
    %v2061 = vunpack.c.h.b16 %v500
    %v2062 = vunpack.c.l.b16 %v501
    %v2063 = vunpack.c.h.b16 %v501
    %v2064 = vunpack.c.l.b16 %v502
    %v2065 = vunpack.c.h.b16 %v502
    %v2066 = vunpack.c.l.b16 %v503
    %v2067 = vunpack.c.h.b16 %v503
    %v2068 = vunpack.c.l.b16 %v504
    %v2069 = vunpack.c.h.b16 %v504
    %v2070 = vunpack.c.l.b16 %v505
    %v2071 = vunpack.c.h.b16 %v505
    %v2072 = vunpack.c.l.b16 %v506
    %v2073 = vunpack.c.h.b16 %v506
    %v2074 = vunpack.c.l.b16 %v507
    %v2075 = vunpack.c.h.b16 %v507
    %v2076 = vunpack.c.l.b16 %v508
    %v2077 = vunpack.c.h.b16 %v508
    %v2078 = vunpack.c.l.b16 %v509
    %v2079 = vunpack.c.h.b16 %v509
    %v2080 = vunpack.c.l.b16 %v510
    %v2081 = vunpack.c.h.b16 %v510
    %v2082 = vunpack.c.l.b16 %v511
    %v2083 = vunpack.c.h.b16 %v511
    %v2084 = vunpack.c.l.b16 %v512
    %v2085 = vunpack.c.h.b16 %v512
    %v2086 = vunpack.c.l.b16 %v513
    %v2087 = vunpack.c.h.b16 %v513
    %v2088 = vunpack.c.l.b16 %v514
    %v2089 = vunpack.c.h.b16 %v514
    %v2090 = vunpack.c.l.b16 %v515
    %v2091 = vunpack.c.h.b16 %v515
    %v2092 = vunpack.c.l.b16 %v516
    %v2093 = vunpack.c.h.b16 %v516
    %v2094 = vunpack.c.l.b16 %v517
    %v2095 = vunpack.c.h.b16 %v517
    %v2096 = vunpack.c.l.b16 %v518
    %v2097 = vunpack.c.h.b16 %v518
    %v2098 = vunpack.c.l.b16 %v519
    %v2099 = vunpack.c.h.b16 %v519
    %v2100 = vunpack.c.l.b16 %v520
    %v2101 = vunpack.c.h.b16 %v520
    %v2102 = vunpack.c.l.b16 %v521
    %v2103 = vunpack.c.h.b16 %v521
    %v2104 = vunpack.c.l.b16 %v522
    %v2105 = vunpack.c.h.b16 %v522
    %v2106 = vunpack.c.l.b16 %v523
    %v2107 = vunpack.c.h.b16 %v523
    %v2108 = vunpack.c.l.b16 %v524
    %v2109 = vunpack.c.h.b16 %v524
    %v2110 = vunpack.c.l.b16 %v525
    %v2111 = vunpack.c.h.b16 %v525
    %v2112 = vunpack.c.l.b16 %v526
    %v2113 = vunpack.c.h.b16 %v526
    %v2114 = vunpack.c.l.b16 %v527
    %v2115 = vunpack.c.h.b16 %v527
    %v2116 = vunpack.c.l.b16 %v528
    %v2117 = vunpack.c.h.b16 %v528
    %v2118 = vunpack.c.l.b16 %v529
    %v2119 = vunpack.c.h.b16 %v529
    %v2120 = vunpack.c.l.b16 %v530
    %v2121 = vunpack.c.h.b16 %v530
    %v2122 = vunpack.c.l.b16 %v531
    %v2123 = vunpack.c.h.b16 %v531
    %v2124 = vunpack.c.l.b16 %v532
    %v2125 = vunpack.c.h.b16 %v532
    %v2126 = vunpack.c.l.b16 %v533
    %v2127 = vunpack.c.h.b16 %v533
    %v2128 = vunpack.c.l.b16 %v534
    %v2129 = vunpack.c.h.b16 %v534
    %v2130 = vunpack.c.l.b16 %v535
    %v2131 = vunpack.c.h.b16 %v535
    %v2132 = vunpack.c.l.b16 %v536
    %v2133 = vunpack.c.h.b16 %v536
    %v2134 = vunpack.c.l.b16 %v537
    %v2135 = vunpack.c.h.b16 %v537
    %v2136 = vunpack.c.l.b16 %v538
    %v2137 = vunpack.c.h.b16 %v538
    %v2138 = vunpack.c.l.b16 %v539
    %v2139 = vunpack.c.h.b16 %v539
    %v2140 = vunpack.c.l.b16 %v540
    %v2141 = vunpack.c.h.b16 %v540
    %v2142 = vunpack.c.l.b16 %v541
    %v2143 = vunpack.c.h.b16 %v541
    %v2144 = vunpack.c.l.b16 %v542
    %v2145 = vunpack.c.h.b16 %v542
    %v2146 = vunpack.c.l.b16 %v543
    %v2147 = vunpack.c.h.b16 %v543
    %v2148 = vunpack.c.l.b16 %v544
    %v2149 = vunpack.c.h.b16 %v544
    %v2150 = vunpack.c.l.b16 %v545
    %v2151 = vunpack.c.h.b16 %v545
    %v2152 = vpack.c.b16 %v1136, %v1128
    %v2153 = vpack.c.b16 %v1137, %v1129
    %v2154 = vpack.c.b16 %v1138, %v1130
    %v2155 = vpack.c.b16 %v1139, %v1131
    %v2156 = vpack.c.b16 %v1140, %v1132
    %v2157 = vpack.c.b16 %v1141, %v1133
    %v2158 = vpack.c.b16 %v1142, %v1134
    %v2159 = vpack.c.b16 %v1143, %v1135
    %v2160 = vpack.c.b16 %v1152, %v1144
    %v2161 = vpack.c.b16 %v1153, %v1145
    %v2162 = vpack.c.b16 %v1154, %v1146
    %v2163 = vpack.c.b16 %v1155, %v1147
    %v2164 = vpack.c.b16 %v1156, %v1148
    %v2165 = vpack.c.b16 %v1157, %v1149
    %v2166 = vpack.c.b16 %v1158, %v1150
    %v2167 = vpack.c.b16 %v1159, %v1151
    %v2168 = vpack.c.b16 %v1168, %v1160
    %v2169 = vpack.c.b16 %v1169, %v1161
    %v2170 = vpack.c.b16 %v1170, %v1162
    %v2171 = vpack.c.b16 %v1171, %v1163
    %v2172 = vpack.c.b16 %v1172, %v1164
    %v2173 = vpack.c.b16 %v1173, %v1165
    %v2174 = vpack.c.b16 %v1174, %v1166
    %v2175 = vpack.c.b16 %v1175, %v1167
    %v2176 = vpack.c.b16 %v1184, %v1176
    %v2177 = vpack.c.b16 %v1185, %v1177
    %v2178 = vpack.c.b16 %v1186, %v1178
    %v2179 = vpack.c.b16 %v1187, %v1179
    %v2180 = vpack.c.b16 %v1188, %v1180
    %v2181 = vpack.c.b16 %v1189, %v1181
    %v2182 = vpack.c.b16 %v1190, %v1182
    %v2183 = vpack.c.b16 %v1191, %v1183
    %v2184 = vpack.c.b16 %v1200, %v1192
    %v2185 = vpack.c.b16 %v1201, %v1193
    %v2186 = vpack.c.b16 %v1202, %v1194
    %v2187 = vpack.c.b16 %v1203, %v1195
    %v2188 = vpack.c.b16 %v1204, %v1196
    %v2189 = vpack.c.b16 %v1205, %v1197
    %v2190 = vpack.c.b16 %v1206, %v1198
    %v2191 = vpack.c.b16 %v1207, %v1199
    %v2192 = vpack.c.b16 %v1216, %v1208
    %v2193 = vpack.c.b16 %v1217, %v1209
    %v2194 = vpack.c.b16 %v1218, %v1210
    %v2195 = vpack.c.b16 %v1219, %v1211
    %v2196 = vpack.c.b16 %v1220, %v1212
    %v2197 = vpack.c.b16 %v1221, %v1213
    %v2198 = vpack.c.b16 %v1222, %v1214
    %v2199 = vpack.c.b16 %v1223, %v1215
    %v2200 = vpack.c.b16 %v1232, %v1224
    %v2201 = vpack.c.b16 %v1233, %v1225
    %v2202 = vpack.c.b16 %v1234, %v1226
    %v2203 = vpack.c.b16 %v1235, %v1227
    %v2204 = vpack.c.b16 %v1236, %v1228
    %v2205 = vpack.c.b16 %v1237, %v1229
    %v2206 = vpack.c.b16 %v1238, %v1230
    %v2207 = vpack.c.b16 %v1239, %v1231
    %v2208 = vpack.c.b16 %v1248, %v1240
    %v2209 = vpack.c.b16 %v1249, %v1241
    %v2210 = vpack.c.b16 %v1250, %v1242
    %v2211 = vpack.c.b16 %v1251, %v1243
    %v2212 = vpack.c.b16 %v1252, %v1244
    %v2213 = vpack.c.b16 %v1253, %v1245
    %v2214 = vpack.c.b16 %v1254, %v1246
    %v2215 = vpack.c.b16 %v1255, %v1247
    %v2216 = vpack.c.b16 %v1264, %v1256
    %v2217 = vpack.c.b16 %v1265, %v1257
    %v2218 = vpack.c.b16 %v1266, %v1258
    %v2219 = vpack.c.b16 %v1267, %v1259
    %v2220 = vpack.c.b16 %v1268, %v1260
    %v2221 = vpack.c.b16 %v1269, %v1261
    %v2222 = vpack.c.b16 %v1270, %v1262
    %v2223 = vpack.c.b16 %v1271, %v1263
    %v2224 = vpack.c.b16 %v1280, %v1272
    %v2225 = vpack.c.b16 %v1281, %v1273
    %v2226 = vpack.c.b16 %v1282, %v1274
    %v2227 = vpack.c.b16 %v1283, %v1275
    %v2228 = vpack.c.b16 %v1284, %v1276
    %v2229 = vpack.c.b16 %v1285, %v1277
    %v2230 = vpack.c.b16 %v1286, %v1278
    %v2231 = vpack.c.b16 %v1287, %v1279
    %v2232 = vpack.c.b16 %v1296, %v1288
    %v2233 = vpack.c.b16 %v1297, %v1289
    %v2234 = vpack.c.b16 %v1298, %v1290
    %v2235 = vpack.c.b16 %v1299, %v1291
    %v2236 = vpack.c.b16 %v1300, %v1292
    %v2237 = vpack.c.b16 %v1301, %v1293
    %v2238 = vpack.c.b16 %v1302, %v1294
    %v2239 = vpack.c.b16 %v1303, %v1295
    %v2240 = vpack.c.b16 %v1312, %v1304
    %v2241 = vpack.c.b16 %v1313, %v1305
    %v2242 = vpack.c.b16 %v1314, %v1306
    %v2243 = vpack.c.b16 %v1315, %v1307
    %v2244 = vpack.c.b16 %v1316, %v1308
    %v2245 = vpack.c.b16 %v1317, %v1309
    %v2246 = vpack.c.b16 %v1318, %v1310
    %v2247 = vpack.c.b16 %v1319, %v1311
    %v2248 = vpack.c.b16 %v1328, %v1320
    %v2249 = vpack.c.b16 %v1329, %v1321
    %v2250 = vpack.c.b16 %v1330, %v1322
    %v2251 = vpack.c.b16 %v1331, %v1323
    %v2252 = vpack.c.b16 %v1332, %v1324
    %v2253 = vpack.c.b16 %v1333, %v1325
    %v2254 = vpack.c.b16 %v1334, %v1326
    %v2255 = vpack.c.b16 %v1335, %v1327
    %v2256 = vpack.c.b16 %v1344, %v1336
    %v2257 = vpack.c.b16 %v1345, %v1337
    %v2258 = vpack.c.b16 %v1346, %v1338
    %v2259 = vpack.c.b16 %v1347, %v1339
    %v2260 = vpack.c.b16 %v1348, %v1340
    %v2261 = vpack.c.b16 %v1349, %v1341
    %v2262 = vpack.c.b16 %v1350, %v1342
    %v2263 = vpack.c.b16 %v1351, %v1343
    %v2264 = vpack.c.b16 %v1360, %v1352
    %v2265 = vpack.c.b16 %v1361, %v1353
    %v2266 = vpack.c.b16 %v1362, %v1354
    %v2267 = vpack.c.b16 %v1363, %v1355
    %v2268 = vpack.c.b16 %v1364, %v1356
    %v2269 = vpack.c.b16 %v1365, %v1357
    %v2270 = vpack.c.b16 %v1366, %v1358
    %v2271 = vpack.c.b16 %v1367, %v1359
    %v2272 = vpack.c.b16 %v1376, %v1368
    %v2273 = vpack.c.b16 %v1377, %v1369
    %v2274 = vpack.c.b16 %v1378, %v1370
    %v2275 = vpack.c.b16 %v1379, %v1371
    %v2276 = vpack.c.b16 %v1380, %v1372
    %v2277 = vpack.c.b16 %v1381, %v1373
    %v2278 = vpack.c.b16 %v1382, %v1374
    %v2279 = vpack.c.b16 %v1383, %v1375
    %v2280 = vpack.c.b16 %v1392, %v1384
    %v2281 = vpack.c.b16 %v1393, %v1385
    %v2282 = vpack.c.b16 %v1394, %v1386
    %v2283 = vpack.c.b16 %v1395, %v1387
    %v2284 = vpack.c.b16 %v1396, %v1388
    %v2285 = vpack.c.b16 %v1397, %v1389
    %v2286 = vpack.c.b16 %v1398, %v1390
    %v2287 = vpack.c.b16 %v1399, %v1391
    %v2288 = vpack.c.b16 %v1408, %v1400
    %v2289 = vpack.c.b16 %v1409, %v1401
    %v2290 = vpack.c.b16 %v1410, %v1402
    %v2291 = vpack.c.b16 %v1411, %v1403
    %v2292 = vpack.c.b16 %v1412, %v1404
    %v2293 = vpack.c.b16 %v1413, %v1405
    %v2294 = vpack.c.b16 %v1414, %v1406
    %v2295 = vpack.c.b16 %v1415, %v1407
    %v2296 = vpack.c.b16 %v1424, %v1416
    %v2297 = vpack.c.b16 %v1425, %v1417
    %v2298 = vpack.c.b16 %v1426, %v1418
    %v2299 = vpack.c.b16 %v1427, %v1419
    %v2300 = vpack.c.b16 %v1428, %v1420
    %v2301 = vpack.c.b16 %v1429, %v1421
    %v2302 = vpack.c.b16 %v1430, %v1422
    %v2303 = vpack.c.b16 %v1431, %v1423
    %v2304 = vpack.c.b16 %v1440, %v1432
    %v2305 = vpack.c.b16 %v1441, %v1433
    %v2306 = vpack.c.b16 %v1442, %v1434
    %v2307 = vpack.c.b16 %v1443, %v1435
    %v2308 = vpack.c.b16 %v1444, %v1436
    %v2309 = vpack.c.b16 %v1445, %v1437
    %v2310 = vpack.c.b16 %v1446, %v1438
    %v2311 = vpack.c.b16 %v1447, %v1439
    %v2312 = vpack.c.b16 %v1456, %v1448
    %v2313 = vpack.c.b16 %v1457, %v1449
    %v2314 = vpack.c.b16 %v1458, %v1450
    %v2315 = vpack.c.b16 %v1459, %v1451
    %v2316 = vpack.c.b16 %v1460, %v1452
    %v2317 = vpack.c.b16 %v1461, %v1453
    %v2318 = vpack.c.b16 %v1462, %v1454
    %v2319 = vpack.c.b16 %v1463, %v1455
    %v2320 = vpack.c.b16 %v1472, %v1464
    %v2321 = vpack.c.b16 %v1473, %v1465
    %v2322 = vpack.c.b16 %v1474, %v1466
    %v2323 = vpack.c.b16 %v1475, %v1467
    %v2324 = vpack.c.b16 %v1476, %v1468
    %v2325 = vpack.c.b16 %v1477, %v1469
    %v2326 = vpack.c.b16 %v1478, %v1470
    %v2327 = vpack.c.b16 %v1479, %v1471
    %v2328 = vpack.c.b16 %v1488, %v1480
    %v2329 = vpack.c.b16 %v1489, %v1481
    %v2330 = vpack.c.b16 %v1490, %v1482
    %v2331 = vpack.c.b16 %v1491, %v1483
    %v2332 = vpack.c.b16 %v1492, %v1484
    %v2333 = vpack.c.b16 %v1493, %v1485
    %v2334 = vpack.c.b16 %v1494, %v1486
    %v2335 = vpack.c.b16 %v1495, %v1487
    %v2336 = vpack.c.b16 %v1504, %v1496
    %v2337 = vpack.c.b16 %v1505, %v1497
    %v2338 = vpack.c.b16 %v1506, %v1498
    %v2339 = vpack.c.b16 %v1507, %v1499
    %v2340 = vpack.c.b16 %v1508, %v1500
    %v2341 = vpack.c.b16 %v1509, %v1501
    %v2342 = vpack.c.b16 %v1510, %v1502
    %v2343 = vpack.c.b16 %v1511, %v1503
    %v2344 = vpack.c.b16 %v1520, %v1512
    %v2345 = vpack.c.b16 %v1521, %v1513
    %v2346 = vpack.c.b16 %v1522, %v1514
    %v2347 = vpack.c.b16 %v1523, %v1515
    %v2348 = vpack.c.b16 %v1524, %v1516
    %v2349 = vpack.c.b16 %v1525, %v1517
    %v2350 = vpack.c.b16 %v1526, %v1518
    %v2351 = vpack.c.b16 %v1527, %v1519
    %v2352 = vpack.c.b16 %v1536, %v1528
    %v2353 = vpack.c.b16 %v1537, %v1529
    %v2354 = vpack.c.b16 %v1538, %v1530
    %v2355 = vpack.c.b16 %v1539, %v1531
    %v2356 = vpack.c.b16 %v1540, %v1532
    %v2357 = vpack.c.b16 %v1541, %v1533
    %v2358 = vpack.c.b16 %v1542, %v1534
    %v2359 = vpack.c.b16 %v1543, %v1535
    %v2360 = vpack.c.b16 %v1552, %v1544
    %v2361 = vpack.c.b16 %v1553, %v1545
    %v2362 = vpack.c.b16 %v1554, %v1546
    %v2363 = vpack.c.b16 %v1555, %v1547
    %v2364 = vpack.c.b16 %v1556, %v1548
    %v2365 = vpack.c.b16 %v1557, %v1549
    %v2366 = vpack.c.b16 %v1558, %v1550
    %v2367 = vpack.c.b16 %v1559, %v1551
    %v2368 = vpack.c.b16 %v1568, %v1560
    %v2369 = vpack.c.b16 %v1569, %v1561
    %v2370 = vpack.c.b16 %v1570, %v1562
    %v2371 = vpack.c.b16 %v1571, %v1563
    %v2372 = vpack.c.b16 %v1572, %v1564
    %v2373 = vpack.c.b16 %v1573, %v1565
    %v2374 = vpack.c.b16 %v1574, %v1566
    %v2375 = vpack.c.b16 %v1575, %v1567
    %v2376 = vpack.c.b16 %v1584, %v1576
    %v2377 = vpack.c.b16 %v1585, %v1577
    %v2378 = vpack.c.b16 %v1586, %v1578
    %v2379 = vpack.c.b16 %v1587, %v1579
    %v2380 = vpack.c.b16 %v1588, %v1580
    %v2381 = vpack.c.b16 %v1589, %v1581
    %v2382 = vpack.c.b16 %v1590, %v1582
    %v2383 = vpack.c.b16 %v1591, %v1583
    %v2384 = vpack.c.b16 %v1600, %v1592
    %v2385 = vpack.c.b16 %v1601, %v1593
    %v2386 = vpack.c.b16 %v1602, %v1594
    %v2387 = vpack.c.b16 %v1603, %v1595
    %v2388 = vpack.c.b16 %v1604, %v1596
    %v2389 = vpack.c.b16 %v1605, %v1597
    %v2390 = vpack.c.b16 %v1606, %v1598
    %v2391 = vpack.c.b16 %v1607, %v1599
    %v2392 = vpack.c.b16 %v1616, %v1608
    %v2393 = vpack.c.b16 %v1617, %v1609
    %v2394 = vpack.c.b16 %v1618, %v1610
    %v2395 = vpack.c.b16 %v1619, %v1611
    %v2396 = vpack.c.b16 %v1620, %v1612
    %v2397 = vpack.c.b16 %v1621, %v1613
    %v2398 = vpack.c.b16 %v1622, %v1614
    %v2399 = vpack.c.b16 %v1623, %v1615
    %v2400 = vpack.c.b16 %v1632, %v1624
    %v2401 = vpack.c.b16 %v1633, %v1625
    %v2402 = vpack.c.b16 %v1634, %v1626
    %v2403 = vpack.c.b16 %v1635, %v1627
    %v2404 = vpack.c.b16 %v1636, %v1628
    %v2405 = vpack.c.b16 %v1637, %v1629
    %v2406 = vpack.c.b16 %v1638, %v1630
    %v2407 = vpack.c.b16 %v1639, %v1631
    %v2408 = vpack.c.b16 %v1648, %v1640
    %v2409 = vpack.c.b16 %v1649, %v1641
    %v2410 = vpack.c.b16 %v1650, %v1642
    %v2411 = vpack.c.b16 %v1651, %v1643
    %v2412 = vpack.c.b16 %v1652, %v1644
    %v2413 = vpack.c.b16 %v1653, %v1645
    %v2414 = vpack.c.b16 %v1654, %v1646
    %v2415 = vpack.c.b16 %v1655, %v1647
    %v2416 = vpack.c.b16 %v1664, %v1656
    %v2417 = vpack.c.b16 %v1665, %v1657
    %v2418 = vpack.c.b16 %v1666, %v1658
    %v2419 = vpack.c.b16 %v1667, %v1659
    %v2420 = vpack.c.b16 %v1668, %v1660
    %v2421 = vpack.c.b16 %v1669, %v1661
    %v2422 = vpack.c.b16 %v1670, %v1662
    %v2423 = vpack.c.b16 %v1671, %v1663
    %v2424 = vpack.c.b16 %v1680, %v1672
    %v2425 = vpack.c.b16 %v1681, %v1673
    %v2426 = vpack.c.b16 %v1682, %v1674
    %v2427 = vpack.c.b16 %v1683, %v1675
    %v2428 = vpack.c.b16 %v1684, %v1676
    %v2429 = vpack.c.b16 %v1685, %v1677
    %v2430 = vpack.c.b16 %v1686, %v1678
    %v2431 = vpack.c.b16 %v1687, %v1679
    %v2432 = vpack.c.b16 %v1696, %v1688
    %v2433 = vpack.c.b16 %v1697, %v1689
    %v2434 = vpack.c.b16 %v1698, %v1690
    %v2435 = vpack.c.b16 %v1699, %v1691
    %v2436 = vpack.c.b16 %v1700, %v1692
    %v2437 = vpack.c.b16 %v1701, %v1693
    %v2438 = vpack.c.b16 %v1702, %v1694
    %v2439 = vpack.c.b16 %v1703, %v1695
    %v2440 = vpack.c.b16 %v1712, %v1704
    %v2441 = vpack.c.b16 %v1713, %v1705
    %v2442 = vpack.c.b16 %v1714, %v1706
    %v2443 = vpack.c.b16 %v1715, %v1707
    %v2444 = vpack.c.b16 %v1716, %v1708
    %v2445 = vpack.c.b16 %v1717, %v1709
    %v2446 = vpack.c.b16 %v1718, %v1710
    %v2447 = vpack.c.b16 %v1719, %v1711
    %v2448 = vpack.c.b16 %v1728, %v1720
    %v2449 = vpack.c.b16 %v1729, %v1721
    %v2450 = vpack.c.b16 %v1730, %v1722
    %v2451 = vpack.c.b16 %v1731, %v1723
    %v2452 = vpack.c.b16 %v1732, %v1724
    %v2453 = vpack.c.b16 %v1733, %v1725
    %v2454 = vpack.c.b16 %v1734, %v1726
    %v2455 = vpack.c.b16 %v1735, %v1727
    %v2456 = vpack.c.b16 %v1744, %v1736
    %v2457 = vpack.c.b16 %v1745, %v1737
    %v2458 = vpack.c.b16 %v1746, %v1738
    %v2459 = vpack.c.b16 %v1747, %v1739
    %v2460 = vpack.c.b16 %v1748, %v1740
    %v2461 = vpack.c.b16 %v1749, %v1741
    %v2462 = vpack.c.b16 %v1750, %v1742
    %v2463 = vpack.c.b16 %v1751, %v1743
    %v2464 = vpack.c.b16 %v1760, %v1752
    %v2465 = vpack.c.b16 %v1761, %v1753
    %v2466 = vpack.c.b16 %v1762, %v1754
    %v2467 = vpack.c.b16 %v1763, %v1755
    %v2468 = vpack.c.b16 %v1764, %v1756
    %v2469 = vpack.c.b16 %v1765, %v1757
    %v2470 = vpack.c.b16 %v1766, %v1758
    %v2471 = vpack.c.b16 %v1767, %v1759
    %v2472 = vpack.c.b16 %v1776, %v1768
    %v2473 = vpack.c.b16 %v1777, %v1769
    %v2474 = vpack.c.b16 %v1778, %v1770
    %v2475 = vpack.c.b16 %v1779, %v1771
    %v2476 = vpack.c.b16 %v1780, %v1772
    %v2477 = vpack.c.b16 %v1781, %v1773
    %v2478 = vpack.c.b16 %v1782, %v1774
    %v2479 = vpack.c.b16 %v1783, %v1775
    %v2480 = vpack.c.b16 %v1792, %v1784
    %v2481 = vpack.c.b16 %v1793, %v1785
    %v2482 = vpack.c.b16 %v1794, %v1786
    %v2483 = vpack.c.b16 %v1795, %v1787
    %v2484 = vpack.c.b16 %v1796, %v1788
    %v2485 = vpack.c.b16 %v1797, %v1789
    %v2486 = vpack.c.b16 %v1798, %v1790
    %v2487 = vpack.c.b16 %v1799, %v1791
    %v2488 = vpack.c.b16 %v1808, %v1800
    %v2489 = vpack.c.b16 %v1809, %v1801
    %v2490 = vpack.c.b16 %v1810, %v1802
    %v2491 = vpack.c.b16 %v1811, %v1803
    %v2492 = vpack.c.b16 %v1812, %v1804
    %v2493 = vpack.c.b16 %v1813, %v1805
    %v2494 = vpack.c.b16 %v1814, %v1806
    %v2495 = vpack.c.b16 %v1815, %v1807
    %v2496 = vpack.c.b16 %v1824, %v1816
    %v2497 = vpack.c.b16 %v1825, %v1817
    %v2498 = vpack.c.b16 %v1826, %v1818
    %v2499 = vpack.c.b16 %v1827, %v1819
    %v2500 = vpack.c.b16 %v1828, %v1820
    %v2501 = vpack.c.b16 %v1829, %v1821
    %v2502 = vpack.c.b16 %v1830, %v1822
    %v2503 = vpack.c.b16 %v1831, %v1823
    %v2504 = vpack.c.b16 %v1840, %v1832
    %v2505 = vpack.c.b16 %v1841, %v1833
    %v2506 = vpack.c.b16 %v1842, %v1834
    %v2507 = vpack.c.b16 %v1843, %v1835
    %v2508 = vpack.c.b16 %v1844, %v1836
    %v2509 = vpack.c.b16 %v1845, %v1837
    %v2510 = vpack.c.b16 %v1846, %v1838
    %v2511 = vpack.c.b16 %v1847, %v1839
    %v2512 = vpack.c.b16 %v1856, %v1848
    %v2513 = vpack.c.b16 %v1857, %v1849
    %v2514 = vpack.c.b16 %v1858, %v1850
    %v2515 = vpack.c.b16 %v1859, %v1851
    %v2516 = vpack.c.b16 %v1860, %v1852
    %v2517 = vpack.c.b16 %v1861, %v1853
    %v2518 = vpack.c.b16 %v1862, %v1854
    %v2519 = vpack.c.b16 %v1863, %v1855
    %v2520 = vpack.c.b16 %v1872, %v1864
    %v2521 = vpack.c.b16 %v1873, %v1865
    %v2522 = vpack.c.b16 %v1874, %v1866
    %v2523 = vpack.c.b16 %v1875, %v1867
    %v2524 = vpack.c.b16 %v1876, %v1868
    %v2525 = vpack.c.b16 %v1877, %v1869
    %v2526 = vpack.c.b16 %v1878, %v1870
    %v2527 = vpack.c.b16 %v1879, %v1871
    %v2528 = vpack.c.b16 %v1888, %v1880
    %v2529 = vpack.c.b16 %v1889, %v1881
    %v2530 = vpack.c.b16 %v1890, %v1882
    %v2531 = vpack.c.b16 %v1891, %v1883
    %v2532 = vpack.c.b16 %v1892, %v1884
    %v2533 = vpack.c.b16 %v1893, %v1885
    %v2534 = vpack.c.b16 %v1894, %v1886
    %v2535 = vpack.c.b16 %v1895, %v1887
    %v2536 = vpack.c.b16 %v1904, %v1896
    %v2537 = vpack.c.b16 %v1905, %v1897
    %v2538 = vpack.c.b16 %v1906, %v1898
    %v2539 = vpack.c.b16 %v1907, %v1899
    %v2540 = vpack.c.b16 %v1908, %v1900
    %v2541 = vpack.c.b16 %v1909, %v1901
    %v2542 = vpack.c.b16 %v1910, %v1902
    %v2543 = vpack.c.b16 %v1911, %v1903
    %v2544 = vpack.c.b16 %v1920, %v1912
    %v2545 = vpack.c.b16 %v1921, %v1913
    %v2546 = vpack.c.b16 %v1922, %v1914
    %v2547 = vpack.c.b16 %v1923, %v1915
    %v2548 = vpack.c.b16 %v1924, %v1916
    %v2549 = vpack.c.b16 %v1925, %v1917
    %v2550 = vpack.c.b16 %v1926, %v1918
    %v2551 = vpack.c.b16 %v1927, %v1919
    %v2552 = vpack.c.b16 %v1936, %v1928
    %v2553 = vpack.c.b16 %v1937, %v1929
    %v2554 = vpack.c.b16 %v1938, %v1930
    %v2555 = vpack.c.b16 %v1939, %v1931
    %v2556 = vpack.c.b16 %v1940, %v1932
    %v2557 = vpack.c.b16 %v1941, %v1933
    %v2558 = vpack.c.b16 %v1942, %v1934
    %v2559 = vpack.c.b16 %v1943, %v1935
    %v2560 = vpack.c.b16 %v1952, %v1944
    %v2561 = vpack.c.b16 %v1953, %v1945
    %v2562 = vpack.c.b16 %v1954, %v1946
    %v2563 = vpack.c.b16 %v1955, %v1947
    %v2564 = vpack.c.b16 %v1956, %v1948
    %v2565 = vpack.c.b16 %v1957, %v1949
    %v2566 = vpack.c.b16 %v1958, %v1950
    %v2567 = vpack.c.b16 %v1959, %v1951
    %v2568 = vpack.c.b16 %v1968, %v1960
    %v2569 = vpack.c.b16 %v1969, %v1961
    %v2570 = vpack.c.b16 %v1970, %v1962
    %v2571 = vpack.c.b16 %v1971, %v1963
    %v2572 = vpack.c.b16 %v1972, %v1964
    %v2573 = vpack.c.b16 %v1973, %v1965
    %v2574 = vpack.c.b16 %v1974, %v1966
    %v2575 = vpack.c.b16 %v1975, %v1967
    %v2576 = vpack.c.b16 %v1984, %v1976
    %v2577 = vpack.c.b16 %v1985, %v1977
    %v2578 = vpack.c.b16 %v1986, %v1978
    %v2579 = vpack.c.b16 %v1987, %v1979
    %v2580 = vpack.c.b16 %v1988, %v1980
    %v2581 = vpack.c.b16 %v1989, %v1981
    %v2582 = vpack.c.b16 %v1990, %v1982
    %v2583 = vpack.c.b16 %v1991, %v1983
    %v2584 = vpack.c.b16 %v2000, %v1992
    %v2585 = vpack.c.b16 %v2001, %v1993
    %v2586 = vpack.c.b16 %v2002, %v1994
    %v2587 = vpack.c.b16 %v2003, %v1995
    %v2588 = vpack.c.b16 %v2004, %v1996
    %v2589 = vpack.c.b16 %v2005, %v1997
    %v2590 = vpack.c.b16 %v2006, %v1998
    %v2591 = vpack.c.b16 %v2007, %v1999
    %v2592 = vpack.c.b16 %v2016, %v2008
    %v2593 = vpack.c.b16 %v2017, %v2009
    %v2594 = vpack.c.b16 %v2018, %v2010
    %v2595 = vpack.c.b16 %v2019, %v2011
    %v2596 = vpack.c.b16 %v2020, %v2012
    %v2597 = vpack.c.b16 %v2021, %v2013
    %v2598 = vpack.c.b16 %v2022, %v2014
    %v2599 = vpack.c.b16 %v2023, %v2015
    %v2600 = vpack.c.b16 %v2032, %v2024
    %v2601 = vpack.c.b16 %v2033, %v2025
    %v2602 = vpack.c.b16 %v2034, %v2026
    %v2603 = vpack.c.b16 %v2035, %v2027
    %v2604 = vpack.c.b16 %v2036, %v2028
    %v2605 = vpack.c.b16 %v2037, %v2029
    %v2606 = vpack.c.b16 %v2038, %v2030
    %v2607 = vpack.c.b16 %v2039, %v2031
    %v2608 = vpack.c.b16 %v2048, %v2040
    %v2609 = vpack.c.b16 %v2049, %v2041
    %v2610 = vpack.c.b16 %v2050, %v2042
    %v2611 = vpack.c.b16 %v2051, %v2043
    %v2612 = vpack.c.b16 %v2052, %v2044
    %v2613 = vpack.c.b16 %v2053, %v2045
    %v2614 = vpack.c.b16 %v2054, %v2046
    %v2615 = vpack.c.b16 %v2055, %v2047
    %v2616 = vpack.c.b16 %v2064, %v2056
    %v2617 = vpack.c.b16 %v2065, %v2057
    %v2618 = vpack.c.b16 %v2066, %v2058
    %v2619 = vpack.c.b16 %v2067, %v2059
    %v2620 = vpack.c.b16 %v2068, %v2060
    %v2621 = vpack.c.b16 %v2069, %v2061
    %v2622 = vpack.c.b16 %v2070, %v2062
    %v2623 = vpack.c.b16 %v2071, %v2063
    %v2624 = vpack.c.b16 %v2080, %v2072
    %v2625 = vpack.c.b16 %v2081, %v2073
    %v2626 = vpack.c.b16 %v2082, %v2074
    %v2627 = vpack.c.b16 %v2083, %v2075
    %v2628 = vpack.c.b16 %v2084, %v2076
    %v2629 = vpack.c.b16 %v2085, %v2077
    %v2630 = vpack.c.b16 %v2086, %v2078
    %v2631 = vpack.c.b16 %v2087, %v2079
    %v2632 = vpack.c.b16 %v2096, %v2088
    %v2633 = vpack.c.b16 %v2097, %v2089
    %v2634 = vpack.c.b16 %v2098, %v2090
    %v2635 = vpack.c.b16 %v2099, %v2091
    %v2636 = vpack.c.b16 %v2100, %v2092
    %v2637 = vpack.c.b16 %v2101, %v2093
    %v2638 = vpack.c.b16 %v2102, %v2094
    %v2639 = vpack.c.b16 %v2103, %v2095
    %v2640 = vpack.c.b16 %v2112, %v2104
    %v2641 = vpack.c.b16 %v2113, %v2105
    %v2642 = vpack.c.b16 %v2114, %v2106
    %v2643 = vpack.c.b16 %v2115, %v2107
    %v2644 = vpack.c.b16 %v2116, %v2108
    %v2645 = vpack.c.b16 %v2117, %v2109
    %v2646 = vpack.c.b16 %v2118, %v2110
    %v2647 = vpack.c.b16 %v2119, %v2111
    %v2648 = vpack.c.b16 %v2128, %v2120
    %v2649 = vpack.c.b16 %v2129, %v2121
    %v2650 = vpack.c.b16 %v2130, %v2122
    %v2651 = vpack.c.b16 %v2131, %v2123
    %v2652 = vpack.c.b16 %v2132, %v2124
    %v2653 = vpack.c.b16 %v2133, %v2125
    %v2654 = vpack.c.b16 %v2134, %v2126
    %v2655 = vpack.c.b16 %v2135, %v2127
    %v2656 = vpack.c.b16 %v2144, %v2136
    %v2657 = vpack.c.b16 %v2145, %v2137
    %v2658 = vpack.c.b16 %v2146, %v2138
    %v2659 = vpack.c.b16 %v2147, %v2139
    %v2660 = vpack.c.b16 %v2148, %v2140
    %v2661 = vpack.c.b16 %v2149, %v2141
    %v2662 = vpack.c.b16 %v2150, %v2142
    %v2663 = vpack.c.b16 %v2151, %v2143
    %3176 = vmatprep.subr.bf16.mxu0 %v2153
    %3177 = vmatpush1.bf16.msra.mxu0 %v2152
    %3178 = vmatprep.subr.bf16.mxu0 %v2161
    %3179 = vmatpush1.bf16.msra.mxu0 %v2160
    %3180 = vmatprep.subr.bf16.mxu0 %v2169
    %3181 = vmatpush1.bf16.msra.mxu0 %v2168
    %3182 = vmatprep.subr.bf16.mxu0 %v2177
    %3183 = vmatpush1.bf16.msra.mxu0 %v2176
    %3184 = vmatprep.subr.bf16.mxu0 %v2185
    %3185 = vmatpush1.bf16.msra.mxu0 %v2184
    %3186 = vmatprep.subr.bf16.mxu0 %v2193
    %3187 = vmatpush1.bf16.msra.mxu0 %v2192
    %3188 = vmatprep.subr.bf16.mxu0 %v2201
    %3189 = vmatpush1.bf16.msra.mxu0 %v2200
    %3190 = vmatprep.subr.bf16.mxu0 %v2209
    %3191 = vmatpush1.bf16.msra.mxu0 %v2208
    %3192 = vmatprep.subr.bf16.mxu0 %v2217
    %3193 = vmatpush1.bf16.msra.mxu0 %v2216
    %3194 = vmatprep.subr.bf16.mxu0 %v2225
    %3195 = vmatpush1.bf16.msra.mxu0 %v2224
    %3196 = vmatprep.subr.bf16.mxu0 %v2233
    %3197 = vmatpush1.bf16.msra.mxu0 %v2232
    %3198 = vmatprep.subr.bf16.mxu0 %v2241
    %3199 = vmatpush1.bf16.msra.mxu0 %v2240
    %3200 = vmatprep.subr.bf16.mxu0 %v2249
    %3201 = vmatpush1.bf16.msra.mxu0 %v2248
    %3202 = vmatprep.subr.bf16.mxu0 %v2257
    %3203 = vmatpush1.bf16.msra.mxu0 %v2256
    %3204 = vmatprep.subr.bf16.mxu0 %v2265
    %3205 = vmatpush1.bf16.msra.mxu0 %v2264
    %3206 = vmatprep.subr.bf16.mxu0 %v2273
    %3207 = vmatpush1.bf16.msra.mxu0 %v2272
    %3208 = vmatprep.mubr.bf16.mxu0 %v601
    %3209 = vmatmul.mubr.bf16.gmra.mrb[0].mxu0 %v600
    %v3210 = vpop.f32.mrb[0].mxu0
    %v3211 = vadd.f32 %v551, %v3210
    %v3212 = vpop.f32.mrb[0].mxu0
    %v3213 = vadd.f32 %v555, %v3212
    %v3214 = vpop.f32.mrb[0].mxu0
    %v3215 = vpop.f32.mrb[0].mxu0
    %3216 = vdwg.mxu0
    %3217 = vmatprep.subr.bf16.mxu0 %v2281
    %3218 = vmatpush1.bf16.msra.mxu0 %v2280
    %3219 = vmatprep.subr.bf16.mxu0 %v2289
    %3220 = vmatpush1.bf16.msra.mxu0 %v2288
    %3221 = vmatprep.subr.bf16.mxu0 %v2297
    %3222 = vmatpush1.bf16.msra.mxu0 %v2296
    %3223 = vmatprep.subr.bf16.mxu0 %v2305
    %3224 = vmatpush1.bf16.msra.mxu0 %v2304
    %3225 = vmatprep.subr.bf16.mxu0 %v2313
    %3226 = vmatpush1.bf16.msra.mxu0 %v2312
    %3227 = vmatprep.subr.bf16.mxu0 %v2321
    %3228 = vmatpush1.bf16.msra.mxu0 %v2320
    %3229 = vmatprep.subr.bf16.mxu0 %v2329
    %3230 = vmatpush1.bf16.msra.mxu0 %v2328
    %3231 = vmatprep.subr.bf16.mxu0 %v2337
    %3232 = vmatpush1.bf16.msra.mxu0 %v2336
    %3233 = vmatprep.subr.bf16.mxu0 %v2345
    %3234 = vmatpush1.bf16.msra.mxu0 %v2344
    %3235 = vmatprep.subr.bf16.mxu0 %v2353
    %3236 = vmatpush1.bf16.msra.mxu0 %v2352
    %3237 = vmatprep.subr.bf16.mxu0 %v2361
    %3238 = vmatpush1.bf16.msra.mxu0 %v2360
    %3239 = vmatprep.subr.bf16.mxu0 %v2369
    %3240 = vmatpush1.bf16.msra.mxu0 %v2368
    %3241 = vmatprep.subr.bf16.mxu0 %v2377
    %3242 = vmatpush1.bf16.msra.mxu0 %v2376
    %3243 = vmatprep.subr.bf16.mxu0 %v2385
    %3244 = vmatpush1.bf16.msra.mxu0 %v2384
    %3245 = vmatprep.subr.bf16.mxu0 %v2393
    %3246 = vmatpush1.bf16.msra.mxu0 %v2392
    %3247 = vmatprep.subr.bf16.mxu0 %v2401
    %3248 = vmatpush1.bf16.msra.mxu0 %v2400
    %3249 = vmatprep.mubr.bf16.mxu0 %v603
    %3250 = vmatmul.mubr.bf16.gmra.mrb[0].mxu0 %v602
    %v3251 = vpop.f32.mrb[0].mxu0
    %v3252 = vadd.f32 %v3211, %v3251
    %v3253 = vpop.f32.mrb[0].mxu0
    %v3254 = vadd.f32 %v3213, %v3253
    %v3255 = vpop.f32.mrb[0].mxu0
    %v3256 = vpop.f32.mrb[0].mxu0
    %3257 = vdwg.mxu0
    %3258 = vmatprep.subr.bf16.mxu0 %v2409
    %3259 = vmatpush1.bf16.msra.mxu0 %v2408
    %3260 = vmatprep.subr.bf16.mxu0 %v2417
    %3261 = vmatpush1.bf16.msra.mxu0 %v2416
    %3262 = vmatprep.subr.bf16.mxu0 %v2425
    %3263 = vmatpush1.bf16.msra.mxu0 %v2424
    %3264 = vmatprep.subr.bf16.mxu0 %v2433
    %3265 = vmatpush1.bf16.msra.mxu0 %v2432
    %3266 = vmatprep.subr.bf16.mxu0 %v2441
    %3267 = vmatpush1.bf16.msra.mxu0 %v2440
    %3268 = vmatprep.subr.bf16.mxu0 %v2449
    %3269 = vmatpush1.bf16.msra.mxu0 %v2448
    %3270 = vmatprep.subr.bf16.mxu0 %v2457
    %3271 = vmatpush1.bf16.msra.mxu0 %v2456
    %3272 = vmatprep.subr.bf16.mxu0 %v2465
    %3273 = vmatpush1.bf16.msra.mxu0 %v2464
    %3274 = vmatprep.subr.bf16.mxu0 %v2473
    %3275 = vmatpush1.bf16.msra.mxu0 %v2472
    %3276 = vmatprep.subr.bf16.mxu0 %v2481
    %3277 = vmatpush1.bf16.msra.mxu0 %v2480
    %3278 = vmatprep.subr.bf16.mxu0 %v2489
    %3279 = vmatpush1.bf16.msra.mxu0 %v2488
    %3280 = vmatprep.subr.bf16.mxu0 %v2497
    %3281 = vmatpush1.bf16.msra.mxu0 %v2496
    %3282 = vmatprep.subr.bf16.mxu0 %v2505
    %3283 = vmatpush1.bf16.msra.mxu0 %v2504
    %3284 = vmatprep.subr.bf16.mxu0 %v2513
    %3285 = vmatpush1.bf16.msra.mxu0 %v2512
    %3286 = vmatprep.subr.bf16.mxu0 %v2521
    %3287 = vmatpush1.bf16.msra.mxu0 %v2520
    %3288 = vmatprep.subr.bf16.mxu0 %v2529
    %3289 = vmatpush1.bf16.msra.mxu0 %v2528
    %3290 = vmatprep.mubr.bf16.mxu0 %v605
    %3291 = vmatmul.mubr.bf16.gmra.mrb[0].mxu0 %v604
    %v3292 = vpop.f32.mrb[0].mxu0
    %v3293 = vadd.f32 %v3252, %v3292
    %v3294 = vpop.f32.mrb[0].mxu0
    %v3295 = vadd.f32 %v3254, %v3294
    %v3296 = vpop.f32.mrb[0].mxu0
    %v3297 = vpop.f32.mrb[0].mxu0
    %3298 = vdwg.mxu0
    %3299 = vmatprep.subr.bf16.mxu0 %v2537
    %3300 = vmatpush1.bf16.msra.mxu0 %v2536
    %3301 = vmatprep.subr.bf16.mxu0 %v2545
    %3302 = vmatpush1.bf16.msra.mxu0 %v2544
    %3303 = vmatprep.subr.bf16.mxu0 %v2553
    %3304 = vmatpush1.bf16.msra.mxu0 %v2552
    %3305 = vmatprep.subr.bf16.mxu0 %v2561
    %3306 = vmatpush1.bf16.msra.mxu0 %v2560
    %3307 = vmatprep.subr.bf16.mxu0 %v2569
    %3308 = vmatpush1.bf16.msra.mxu0 %v2568
    %3309 = vmatprep.subr.bf16.mxu0 %v2577
    %3310 = vmatpush1.bf16.msra.mxu0 %v2576
    %3311 = vmatprep.subr.bf16.mxu0 %v2585
    %3312 = vmatpush1.bf16.msra.mxu0 %v2584
    %3313 = vmatprep.subr.bf16.mxu0 %v2593
    %3314 = vmatpush1.bf16.msra.mxu0 %v2592
    %3315 = vmatprep.subr.bf16.mxu0 %v2601
    %3316 = vmatpush1.bf16.msra.mxu0 %v2600
    %3317 = vmatprep.subr.bf16.mxu0 %v2609
    %3318 = vmatpush1.bf16.msra.mxu0 %v2608
    %3319 = vmatprep.subr.bf16.mxu0 %v2617
    %3320 = vmatpush1.bf16.msra.mxu0 %v2616
    %3321 = vmatprep.subr.bf16.mxu0 %v2625
    %3322 = vmatpush1.bf16.msra.mxu0 %v2624
    %3323 = vmatprep.subr.bf16.mxu0 %v2633
    %3324 = vmatpush1.bf16.msra.mxu0 %v2632
    %3325 = vmatprep.subr.bf16.mxu0 %v2641
    %3326 = vmatpush1.bf16.msra.mxu0 %v2640
    %3327 = vmatprep.subr.bf16.mxu0 %v2649
    %3328 = vmatpush1.bf16.msra.mxu0 %v2648
    %3329 = vmatprep.subr.bf16.mxu0 %v2657
    %3330 = vmatpush1.bf16.msra.mxu0 %v2656
    %3331 = vmatprep.mubr.bf16.mxu0 %v607
    %3332 = vmatmul.mubr.bf16.gmra.mrb[0].mxu0 %v606
    %v3333 = vpop.f32.mrb[0].mxu0
    %v3334 = vadd.f32 %v3293, %v3333
    %v3335 = vpop.f32.mrb[0].mxu0
    %v3336 = vadd.f32 %v3295, %v3335
    %v3337 = vpop.f32.mrb[0].mxu0
    %v3338 = vpop.f32.mrb[0].mxu0
    %3339 = vdwg.mxu0
    %3340 = vmatprep.subr.bf16.mxu0 %v2155
    %3341 = vmatpush1.bf16.msra.mxu0 %v2154
    %3342 = vmatprep.subr.bf16.mxu0 %v2163
    %3343 = vmatpush1.bf16.msra.mxu0 %v2162
    %3344 = vmatprep.subr.bf16.mxu0 %v2171
    %3345 = vmatpush1.bf16.msra.mxu0 %v2170
    %3346 = vmatprep.subr.bf16.mxu0 %v2179
    %3347 = vmatpush1.bf16.msra.mxu0 %v2178
    %3348 = vmatprep.subr.bf16.mxu0 %v2187
    %3349 = vmatpush1.bf16.msra.mxu0 %v2186
    %3350 = vmatprep.subr.bf16.mxu0 %v2195
    %3351 = vmatpush1.bf16.msra.mxu0 %v2194
    %3352 = vmatprep.subr.bf16.mxu0 %v2203
    %3353 = vmatpush1.bf16.msra.mxu0 %v2202
    %3354 = vmatprep.subr.bf16.mxu0 %v2211
    %3355 = vmatpush1.bf16.msra.mxu0 %v2210
    %3356 = vmatprep.subr.bf16.mxu0 %v2219
    %3357 = vmatpush1.bf16.msra.mxu0 %v2218
    %3358 = vmatprep.subr.bf16.mxu0 %v2227
    %3359 = vmatpush1.bf16.msra.mxu0 %v2226
    %3360 = vmatprep.subr.bf16.mxu0 %v2235
    %3361 = vmatpush1.bf16.msra.mxu0 %v2234
    %3362 = vmatprep.subr.bf16.mxu0 %v2243
    %3363 = vmatpush1.bf16.msra.mxu0 %v2242
    %3364 = vmatprep.subr.bf16.mxu0 %v2251
    %3365 = vmatpush1.bf16.msra.mxu0 %v2250
    %3366 = vmatprep.subr.bf16.mxu0 %v2259
    %3367 = vmatpush1.bf16.msra.mxu0 %v2258
    %3368 = vmatprep.subr.bf16.mxu0 %v2267
    %3369 = vmatpush1.bf16.msra.mxu0 %v2266
    %3370 = vmatprep.subr.bf16.mxu0 %v2275
    %3371 = vmatpush1.bf16.msra.mxu0 %v2274
    %3372 = vmatprep.mubr.bf16.mxu0 %v601
    %3373 = vmatmul.mubr.bf16.gmra.mrb[0].mxu0 %v600
    %v3374 = vpop.f32.mrb[0].mxu0
    %v3375 = vadd.f32 %v559, %v3374
    %v3376 = vpop.f32.mrb[0].mxu0
    %v3377 = vadd.f32 %v563, %v3376
    %v3378 = vpop.f32.mrb[0].mxu0
    %v3379 = vpop.f32.mrb[0].mxu0
    %3380 = vdwg.mxu0
    %3381 = vmatprep.subr.bf16.mxu0 %v2283
    %3382 = vmatpush1.bf16.msra.mxu0 %v2282
    %3383 = vmatprep.subr.bf16.mxu0 %v2291
    %3384 = vmatpush1.bf16.msra.mxu0 %v2290
    %3385 = vmatprep.subr.bf16.mxu0 %v2299
    %3386 = vmatpush1.bf16.msra.mxu0 %v2298
    %3387 = vmatprep.subr.bf16.mxu0 %v2307
    %3388 = vmatpush1.bf16.msra.mxu0 %v2306
    %3389 = vmatprep.subr.bf16.mxu0 %v2315
    %3390 = vmatpush1.bf16.msra.mxu0 %v2314
    %3391 = vmatprep.subr.bf16.mxu0 %v2323
    %3392 = vmatpush1.bf16.msra.mxu0 %v2322
    %3393 = vmatprep.subr.bf16.mxu0 %v2331
    %3394 = vmatpush1.bf16.msra.mxu0 %v2330
    %3395 = vmatprep.subr.bf16.mxu0 %v2339
    %3396 = vmatpush1.bf16.msra.mxu0 %v2338
    %3397 = vmatprep.subr.bf16.mxu0 %v2347
    %3398 = vmatpush1.bf16.msra.mxu0 %v2346
    %3399 = vmatprep.subr.bf16.mxu0 %v2355
    %3400 = vmatpush1.bf16.msra.mxu0 %v2354
    %3401 = vmatprep.subr.bf16.mxu0 %v2363
    %3402 = vmatpush1.bf16.msra.mxu0 %v2362
    %3403 = vmatprep.subr.bf16.mxu0 %v2371
    %3404 = vmatpush1.bf16.msra.mxu0 %v2370
    %3405 = vmatprep.subr.bf16.mxu0 %v2379
    %3406 = vmatpush1.bf16.msra.mxu0 %v2378
    %3407 = vmatprep.subr.bf16.mxu0 %v2387
    %3408 = vmatpush1.bf16.msra.mxu0 %v2386
    %3409 = vmatprep.subr.bf16.mxu0 %v2395
    %3410 = vmatpush1.bf16.msra.mxu0 %v2394
    %3411 = vmatprep.subr.bf16.mxu0 %v2403
    %3412 = vmatpush1.bf16.msra.mxu0 %v2402
    %3413 = vmatprep.mubr.bf16.mxu0 %v603
    %3414 = vmatmul.mubr.bf16.gmra.mrb[0].mxu0 %v602
    %v3415 = vpop.f32.mrb[0].mxu0
    %v3416 = vadd.f32 %v3375, %v3415
    %v3417 = vpop.f32.mrb[0].mxu0
    %v3418 = vadd.f32 %v3377, %v3417
    %v3419 = vpop.f32.mrb[0].mxu0
    %v3420 = vpop.f32.mrb[0].mxu0
    %3421 = vdwg.mxu0
    %3422 = vmatprep.subr.bf16.mxu0 %v2411
    %3423 = vmatpush1.bf16.msra.mxu0 %v2410
    %3424 = vmatprep.subr.bf16.mxu0 %v2419
    %3425 = vmatpush1.bf16.msra.mxu0 %v2418
    %3426 = vmatprep.subr.bf16.mxu0 %v2427
    %3427 = vmatpush1.bf16.msra.mxu0 %v2426
    %3428 = vmatprep.subr.bf16.mxu0 %v2435
    %3429 = vmatpush1.bf16.msra.mxu0 %v2434
    %3430 = vmatprep.subr.bf16.mxu0 %v2443
    %3431 = vmatpush1.bf16.msra.mxu0 %v2442
    %3432 = vmatprep.subr.bf16.mxu0 %v2451
    %3433 = vmatpush1.bf16.msra.mxu0 %v2450
    %3434 = vmatprep.subr.bf16.mxu0 %v2459
    %3435 = vmatpush1.bf16.msra.mxu0 %v2458
    %3436 = vmatprep.subr.bf16.mxu0 %v2467
    %3437 = vmatpush1.bf16.msra.mxu0 %v2466
    %3438 = vmatprep.subr.bf16.mxu0 %v2475
    %3439 = vmatpush1.bf16.msra.mxu0 %v2474
    %3440 = vmatprep.subr.bf16.mxu0 %v2483
    %3441 = vmatpush1.bf16.msra.mxu0 %v2482
    %3442 = vmatprep.subr.bf16.mxu0 %v2491
    %3443 = vmatpush1.bf16.msra.mxu0 %v2490
    %3444 = vmatprep.subr.bf16.mxu0 %v2499
    %3445 = vmatpush1.bf16.msra.mxu0 %v2498
    %3446 = vmatprep.subr.bf16.mxu0 %v2507
    %3447 = vmatpush1.bf16.msra.mxu0 %v2506
    %3448 = vmatprep.subr.bf16.mxu0 %v2515
    %3449 = vmatpush1.bf16.msra.mxu0 %v2514
    %3450 = vmatprep.subr.bf16.mxu0 %v2523
    %3451 = vmatpush1.bf16.msra.mxu0 %v2522
    %3452 = vmatprep.subr.bf16.mxu0 %v2531
    %3453 = vmatpush1.bf16.msra.mxu0 %v2530
    %3454 = vmatprep.mubr.bf16.mxu0 %v605
    %3455 = vmatmul.mubr.bf16.gmra.mrb[0].mxu0 %v604
    %v3456 = vpop.f32.mrb[0].mxu0
    %v3457 = vadd.f32 %v3416, %v3456
    %v3458 = vpop.f32.mrb[0].mxu0
    %v3459 = vadd.f32 %v3418, %v3458
    %v3460 = vpop.f32.mrb[0].mxu0
    %v3461 = vpop.f32.mrb[0].mxu0
    %3462 = vdwg.mxu0
    %3463 = vmatprep.subr.bf16.mxu0 %v2539
    %3464 = vmatpush1.bf16.msra.mxu0 %v2538
    %3465 = vmatprep.subr.bf16.mxu0 %v2547
    %3466 = vmatpush1.bf16.msra.mxu0 %v2546
    %3467 = vmatprep.subr.bf16.mxu0 %v2555
    %3468 = vmatpush1.bf16.msra.mxu0 %v2554
    %3469 = vmatprep.subr.bf16.mxu0 %v2563
    %3470 = vmatpush1.bf16.msra.mxu0 %v2562
    %3471 = vmatprep.subr.bf16.mxu0 %v2571
    %3472 = vmatpush1.bf16.msra.mxu0 %v2570
    %3473 = vmatprep.subr.bf16.mxu0 %v2579
    %3474 = vmatpush1.bf16.msra.mxu0 %v2578
    %3475 = vmatprep.subr.bf16.mxu0 %v2587
    %3476 = vmatpush1.bf16.msra.mxu0 %v2586
    %3477 = vmatprep.subr.bf16.mxu0 %v2595
    %3478 = vmatpush1.bf16.msra.mxu0 %v2594
    %3479 = vmatprep.subr.bf16.mxu0 %v2603
    %3480 = vmatpush1.bf16.msra.mxu0 %v2602
    %3481 = vmatprep.subr.bf16.mxu0 %v2611
    %3482 = vmatpush1.bf16.msra.mxu0 %v2610
    %3483 = vmatprep.subr.bf16.mxu0 %v2619
    %3484 = vmatpush1.bf16.msra.mxu0 %v2618
    %3485 = vmatprep.subr.bf16.mxu0 %v2627
    %3486 = vmatpush1.bf16.msra.mxu0 %v2626
    %3487 = vmatprep.subr.bf16.mxu0 %v2635
    %3488 = vmatpush1.bf16.msra.mxu0 %v2634
    %3489 = vmatprep.subr.bf16.mxu0 %v2643
    %3490 = vmatpush1.bf16.msra.mxu0 %v2642
    %3491 = vmatprep.subr.bf16.mxu0 %v2651
    %3492 = vmatpush1.bf16.msra.mxu0 %v2650
    %3493 = vmatprep.subr.bf16.mxu0 %v2659
    %3494 = vmatpush1.bf16.msra.mxu0 %v2658
    %3495 = vmatprep.mubr.bf16.mxu0 %v607
    %3496 = vmatmul.mubr.bf16.gmra.mrb[0].mxu0 %v606
    %v3497 = vpop.f32.mrb[0].mxu0
    %v3498 = vadd.f32 %v3457, %v3497
    %v3499 = vpop.f32.mrb[0].mxu0
    %v3500 = vadd.f32 %v3459, %v3499
    %v3501 = vpop.f32.mrb[0].mxu0
    %v3502 = vpop.f32.mrb[0].mxu0
    %3503 = vdwg.mxu0
    %3504 = vmatprep.subr.bf16.mxu0 %v2157
    %3505 = vmatpush1.bf16.msra.mxu0 %v2156
    %3506 = vmatprep.subr.bf16.mxu0 %v2165
    %3507 = vmatpush1.bf16.msra.mxu0 %v2164
    %3508 = vmatprep.subr.bf16.mxu0 %v2173
    %3509 = vmatpush1.bf16.msra.mxu0 %v2172
    %3510 = vmatprep.subr.bf16.mxu0 %v2181
    %3511 = vmatpush1.bf16.msra.mxu0 %v2180
    %3512 = vmatprep.subr.bf16.mxu0 %v2189
    %3513 = vmatpush1.bf16.msra.mxu0 %v2188
    %3514 = vmatprep.subr.bf16.mxu0 %v2197
    %3515 = vmatpush1.bf16.msra.mxu0 %v2196
    %3516 = vmatprep.subr.bf16.mxu0 %v2205
    %3517 = vmatpush1.bf16.msra.mxu0 %v2204
    %3518 = vmatprep.subr.bf16.mxu0 %v2213
    %3519 = vmatpush1.bf16.msra.mxu0 %v2212
    %3520 = vmatprep.subr.bf16.mxu0 %v2221
    %3521 = vmatpush1.bf16.msra.mxu0 %v2220
    %3522 = vmatprep.subr.bf16.mxu0 %v2229
    %3523 = vmatpush1.bf16.msra.mxu0 %v2228
    %3524 = vmatprep.subr.bf16.mxu0 %v2237
    %3525 = vmatpush1.bf16.msra.mxu0 %v2236
    %3526 = vmatprep.subr.bf16.mxu0 %v2245
    %3527 = vmatpush1.bf16.msra.mxu0 %v2244
    %3528 = vmatprep.subr.bf16.mxu0 %v2253
    %3529 = vmatpush1.bf16.msra.mxu0 %v2252
    %3530 = vmatprep.subr.bf16.mxu0 %v2261
    %3531 = vmatpush1.bf16.msra.mxu0 %v2260
    %3532 = vmatprep.subr.bf16.mxu0 %v2269
    %3533 = vmatpush1.bf16.msra.mxu0 %v2268
    %3534 = vmatprep.subr.bf16.mxu0 %v2277
    %3535 = vmatpush1.bf16.msra.mxu0 %v2276
    %3536 = vmatprep.mubr.bf16.mxu0 %v601
    %3537 = vmatmul.mubr.bf16.gmra.mrb[0].mxu0 %v600
    %v3538 = vpop.f32.mrb[0].mxu0
    %v3539 = vadd.f32 %v567, %v3538
    %v3540 = vpop.f32.mrb[0].mxu0
    %v3541 = vadd.f32 %v571, %v3540
    %v3542 = vpop.f32.mrb[0].mxu0
    %v3543 = vpop.f32.mrb[0].mxu0
    %3544 = vdwg.mxu0
    %3545 = vmatprep.subr.bf16.mxu0 %v2285
    %3546 = vmatpush1.bf16.msra.mxu0 %v2284
    %3547 = vmatprep.subr.bf16.mxu0 %v2293
    %3548 = vmatpush1.bf16.msra.mxu0 %v2292
    %3549 = vmatprep.subr.bf16.mxu0 %v2301
    %3550 = vmatpush1.bf16.msra.mxu0 %v2300
    %3551 = vmatprep.subr.bf16.mxu0 %v2309
    %3552 = vmatpush1.bf16.msra.mxu0 %v2308
    %3553 = vmatprep.subr.bf16.mxu0 %v2317
    %3554 = vmatpush1.bf16.msra.mxu0 %v2316
    %3555 = vmatprep.subr.bf16.mxu0 %v2325
    %3556 = vmatpush1.bf16.msra.mxu0 %v2324
    %3557 = vmatprep.subr.bf16.mxu0 %v2333
    %3558 = vmatpush1.bf16.msra.mxu0 %v2332
    %3559 = vmatprep.subr.bf16.mxu0 %v2341
    %3560 = vmatpush1.bf16.msra.mxu0 %v2340
    %3561 = vmatprep.subr.bf16.mxu0 %v2349
    %3562 = vmatpush1.bf16.msra.mxu0 %v2348
    %3563 = vmatprep.subr.bf16.mxu0 %v2357
    %3564 = vmatpush1.bf16.msra.mxu0 %v2356
    %3565 = vmatprep.subr.bf16.mxu0 %v2365
    %3566 = vmatpush1.bf16.msra.mxu0 %v2364
    %3567 = vmatprep.subr.bf16.mxu0 %v2373
    %3568 = vmatpush1.bf16.msra.mxu0 %v2372
    %3569 = vmatprep.subr.bf16.mxu0 %v2381
    %3570 = vmatpush1.bf16.msra.mxu0 %v2380
    %3571 = vmatprep.subr.bf16.mxu0 %v2389
    %3572 = vmatpush1.bf16.msra.mxu0 %v2388
    %3573 = vmatprep.subr.bf16.mxu0 %v2397
    %3574 = vmatpush1.bf16.msra.mxu0 %v2396
    %3575 = vmatprep.subr.bf16.mxu0 %v2405
    %3576 = vmatpush1.bf16.msra.mxu0 %v2404
    %3577 = vmatprep.mubr.bf16.mxu0 %v603
    %3578 = vmatmul.mubr.bf16.gmra.mrb[0].mxu0 %v602
    %v3579 = vpop.f32.mrb[0].mxu0
    %v3580 = vadd.f32 %v3539, %v3579
    %v3581 = vpop.f32.mrb[0].mxu0
    %v3582 = vadd.f32 %v3541, %v3581
    %v3583 = vpop.f32.mrb[0].mxu0
    %v3584 = vpop.f32.mrb[0].mxu0
    %3585 = vdwg.mxu0
    %3586 = vmatprep.subr.bf16.mxu0 %v2413
    %3587 = vmatpush1.bf16.msra.mxu0 %v2412
    %3588 = vmatprep.subr.bf16.mxu0 %v2421
    %3589 = vmatpush1.bf16.msra.mxu0 %v2420
    %3590 = vmatprep.subr.bf16.mxu0 %v2429
    %3591 = vmatpush1.bf16.msra.mxu0 %v2428
    %3592 = vmatprep.subr.bf16.mxu0 %v2437
    %3593 = vmatpush1.bf16.msra.mxu0 %v2436
    %3594 = vmatprep.subr.bf16.mxu0 %v2445
    %3595 = vmatpush1.bf16.msra.mxu0 %v2444
    %3596 = vmatprep.subr.bf16.mxu0 %v2453
    %3597 = vmatpush1.bf16.msra.mxu0 %v2452
    %3598 = vmatprep.subr.bf16.mxu0 %v2461
    %3599 = vmatpush1.bf16.msra.mxu0 %v2460
    %3600 = vmatprep.subr.bf16.mxu0 %v2469
    %3601 = vmatpush1.bf16.msra.mxu0 %v2468
    %3602 = vmatprep.subr.bf16.mxu0 %v2477
    %3603 = vmatpush1.bf16.msra.mxu0 %v2476
    %3604 = vmatprep.subr.bf16.mxu0 %v2485
    %3605 = vmatpush1.bf16.msra.mxu0 %v2484
    %3606 = vmatprep.subr.bf16.mxu0 %v2493
    %3607 = vmatpush1.bf16.msra.mxu0 %v2492
    %3608 = vmatprep.subr.bf16.mxu0 %v2501
    %3609 = vmatpush1.bf16.msra.mxu0 %v2500
    %3610 = vmatprep.subr.bf16.mxu0 %v2509
    %3611 = vmatpush1.bf16.msra.mxu0 %v2508
    %3612 = vmatprep.subr.bf16.mxu0 %v2517
    %3613 = vmatpush1.bf16.msra.mxu0 %v2516
    %3614 = vmatprep.subr.bf16.mxu0 %v2525
    %3615 = vmatpush1.bf16.msra.mxu0 %v2524
    %3616 = vmatprep.subr.bf16.mxu0 %v2533
    %3617 = vmatpush1.bf16.msra.mxu0 %v2532
    %3618 = vmatprep.mubr.bf16.mxu0 %v605
    %3619 = vmatmul.mubr.bf16.gmra.mrb[0].mxu0 %v604
    %v3620 = vpop.f32.mrb[0].mxu0
    %v3621 = vadd.f32 %v3580, %v3620
    %v3622 = vpop.f32.mrb[0].mxu0
    %v3623 = vadd.f32 %v3582, %v3622
    %v3624 = vpop.f32.mrb[0].mxu0
    %v3625 = vpop.f32.mrb[0].mxu0
    %3626 = vdwg.mxu0
    %3627 = vmatprep.subr.bf16.mxu0 %v2541
    %3628 = vmatpush1.bf16.msra.mxu0 %v2540
    %3629 = vmatprep.subr.bf16.mxu0 %v2549
    %3630 = vmatpush1.bf16.msra.mxu0 %v2548
    %3631 = vmatprep.subr.bf16.mxu0 %v2557
    %3632 = vmatpush1.bf16.msra.mxu0 %v2556
    %3633 = vmatprep.subr.bf16.mxu0 %v2565
    %3634 = vmatpush1.bf16.msra.mxu0 %v2564
    %3635 = vmatprep.subr.bf16.mxu0 %v2573
    %3636 = vmatpush1.bf16.msra.mxu0 %v2572
    %3637 = vmatprep.subr.bf16.mxu0 %v2581
    %3638 = vmatpush1.bf16.msra.mxu0 %v2580
    %3639 = vmatprep.subr.bf16.mxu0 %v2589
    %3640 = vmatpush1.bf16.msra.mxu0 %v2588
    %3641 = vmatprep.subr.bf16.mxu0 %v2597
    %3642 = vmatpush1.bf16.msra.mxu0 %v2596
    %3643 = vmatprep.subr.bf16.mxu0 %v2605
    %3644 = vmatpush1.bf16.msra.mxu0 %v2604
    %3645 = vmatprep.subr.bf16.mxu0 %v2613
    %3646 = vmatpush1.bf16.msra.mxu0 %v2612
    %3647 = vmatprep.subr.bf16.mxu0 %v2621
    %3648 = vmatpush1.bf16.msra.mxu0 %v2620
    %3649 = vmatprep.subr.bf16.mxu0 %v2629
    %3650 = vmatpush1.bf16.msra.mxu0 %v2628
    %3651 = vmatprep.subr.bf16.mxu0 %v2637
    %3652 = vmatpush1.bf16.msra.mxu0 %v2636
    %3653 = vmatprep.subr.bf16.mxu0 %v2645
    %3654 = vmatpush1.bf16.msra.mxu0 %v2644
    %3655 = vmatprep.subr.bf16.mxu0 %v2653
    %3656 = vmatpush1.bf16.msra.mxu0 %v2652
    %3657 = vmatprep.subr.bf16.mxu0 %v2661
    %3658 = vmatpush1.bf16.msra.mxu0 %v2660
    %3659 = vmatprep.mubr.bf16.mxu0 %v607
    %3660 = vmatmul.mubr.bf16.gmra.mrb[0].mxu0 %v606
    %v3661 = vpop.f32.mrb[0].mxu0
    %v3662 = vadd.f32 %v3621, %v3661
    %v3663 = vpop.f32.mrb[0].mxu0
    %v3664 = vadd.f32 %v3623, %v3663
    %v3665 = vpop.f32.mrb[0].mxu0
    %v3666 = vpop.f32.mrb[0].mxu0
    %3667 = vdwg.mxu0
    %3668 = vmatprep.subr.bf16.mxu0 %v2159
    %3669 = vmatpush1.bf16.msra.mxu0 %v2158
    %3670 = vmatprep.subr.bf16.mxu0 %v2167
    %3671 = vmatpush1.bf16.msra.mxu0 %v2166
    %3672 = vmatprep.subr.bf16.mxu0 %v2175
    %3673 = vmatpush1.bf16.msra.mxu0 %v2174
    %3674 = vmatprep.subr.bf16.mxu0 %v2183
    %3675 = vmatpush1.bf16.msra.mxu0 %v2182
    %3676 = vmatprep.subr.bf16.mxu0 %v2191
    %3677 = vmatpush1.bf16.msra.mxu0 %v2190
    %3678 = vmatprep.subr.bf16.mxu0 %v2199
    %3679 = vmatpush1.bf16.msra.mxu0 %v2198
    %3680 = vmatprep.subr.bf16.mxu0 %v2207
    %3681 = vmatpush1.bf16.msra.mxu0 %v2206
    %3682 = vmatprep.subr.bf16.mxu0 %v2215
    %3683 = vmatpush1.bf16.msra.mxu0 %v2214
    %3684 = vmatprep.subr.bf16.mxu0 %v2223
    %3685 = vmatpush1.bf16.msra.mxu0 %v2222
    %3686 = vmatprep.subr.bf16.mxu0 %v2231
    %3687 = vmatpush1.bf16.msra.mxu0 %v2230
    %3688 = vmatprep.subr.bf16.mxu0 %v2239
    %3689 = vmatpush1.bf16.msra.mxu0 %v2238
    %3690 = vmatprep.subr.bf16.mxu0 %v2247
    %3691 = vmatpush1.bf16.msra.mxu0 %v2246
    %3692 = vmatprep.subr.bf16.mxu0 %v2255
    %3693 = vmatpush1.bf16.msra.mxu0 %v2254
    %3694 = vmatprep.subr.bf16.mxu0 %v2263
    %3695 = vmatpush1.bf16.msra.mxu0 %v2262
    %3696 = vmatprep.subr.bf16.mxu0 %v2271
    %3697 = vmatpush1.bf16.msra.mxu0 %v2270
    %3698 = vmatprep.subr.bf16.mxu0 %v2279
    %3699 = vmatpush1.bf16.msra.mxu0 %v2278
    %3700 = vmatprep.mubr.bf16.mxu0 %v601
    %3701 = vmatmul.mubr.bf16.gmra.mrb[0].mxu0 %v600
    %v3702 = vpop.f32.mrb[0].mxu0
    %v3703 = vadd.f32 %v575, %v3702
    %v3704 = vpop.f32.mrb[0].mxu0
    %v3705 = vadd.f32 %v579, %v3704
    %v3706 = vpop.f32.mrb[0].mxu0
    %v3707 = vpop.f32.mrb[0].mxu0
    %3708 = vdwg.mxu0
    %3709 = vmatprep.subr.bf16.mxu0 %v2287
    %3710 = vmatpush1.bf16.msra.mxu0 %v2286
    %3711 = vmatprep.subr.bf16.mxu0 %v2295
    %3712 = vmatpush1.bf16.msra.mxu0 %v2294
    %3713 = vmatprep.subr.bf16.mxu0 %v2303
    %3714 = vmatpush1.bf16.msra.mxu0 %v2302
    %3715 = vmatprep.subr.bf16.mxu0 %v2311
    %3716 = vmatpush1.bf16.msra.mxu0 %v2310
    %3717 = vmatprep.subr.bf16.mxu0 %v2319
    %3718 = vmatpush1.bf16.msra.mxu0 %v2318
    %3719 = vmatprep.subr.bf16.mxu0 %v2327
    %3720 = vmatpush1.bf16.msra.mxu0 %v2326
    %3721 = vmatprep.subr.bf16.mxu0 %v2335
    %3722 = vmatpush1.bf16.msra.mxu0 %v2334
    %3723 = vmatprep.subr.bf16.mxu0 %v2343
    %3724 = vmatpush1.bf16.msra.mxu0 %v2342
    %3725 = vmatprep.subr.bf16.mxu0 %v2351
    %3726 = vmatpush1.bf16.msra.mxu0 %v2350
    %3727 = vmatprep.subr.bf16.mxu0 %v2359
    %3728 = vmatpush1.bf16.msra.mxu0 %v2358
    %3729 = vmatprep.subr.bf16.mxu0 %v2367
    %3730 = vmatpush1.bf16.msra.mxu0 %v2366
    %3731 = vmatprep.subr.bf16.mxu0 %v2375
    %3732 = vmatpush1.bf16.msra.mxu0 %v2374
    %3733 = vmatprep.subr.bf16.mxu0 %v2383
    %3734 = vmatpush1.bf16.msra.mxu0 %v2382
    %3735 = vmatprep.subr.bf16.mxu0 %v2391
    %3736 = vmatpush1.bf16.msra.mxu0 %v2390
    %3737 = vmatprep.subr.bf16.mxu0 %v2399
    %3738 = vmatpush1.bf16.msra.mxu0 %v2398
    %3739 = vmatprep.subr.bf16.mxu0 %v2407
    %3740 = vmatpush1.bf16.msra.mxu0 %v2406
    %3741 = vmatprep.mubr.bf16.mxu0 %v603
    %3742 = vmatmul.mubr.bf16.gmra.mrb[0].mxu0 %v602
    %v3743 = vpop.f32.mrb[0].mxu0
    %v3744 = vadd.f32 %v3703, %v3743
    %v3745 = vpop.f32.mrb[0].mxu0
    %v3746 = vadd.f32 %v3705, %v3745
    %v3747 = vpop.f32.mrb[0].mxu0
    %v3748 = vpop.f32.mrb[0].mxu0
    %3749 = vdwg.mxu0
    %3750 = vmatprep.subr.bf16.mxu0 %v2415
    %3751 = vmatpush1.bf16.msra.mxu0 %v2414
    %3752 = vmatprep.subr.bf16.mxu0 %v2423
    %3753 = vmatpush1.bf16.msra.mxu0 %v2422
    %3754 = vmatprep.subr.bf16.mxu0 %v2431
    %3755 = vmatpush1.bf16.msra.mxu0 %v2430
    %3756 = vmatprep.subr.bf16.mxu0 %v2439
    %3757 = vmatpush1.bf16.msra.mxu0 %v2438
    %3758 = vmatprep.subr.bf16.mxu0 %v2447
    %3759 = vmatpush1.bf16.msra.mxu0 %v2446
    %3760 = vmatprep.subr.bf16.mxu0 %v2455
    %3761 = vmatpush1.bf16.msra.mxu0 %v2454
    %3762 = vmatprep.subr.bf16.mxu0 %v2463
    %3763 = vmatpush1.bf16.msra.mxu0 %v2462
    %3764 = vmatprep.subr.bf16.mxu0 %v2471
    %3765 = vmatpush1.bf16.msra.mxu0 %v2470
    %3766 = vmatprep.subr.bf16.mxu0 %v2479
    %3767 = vmatpush1.bf16.msra.mxu0 %v2478
    %3768 = vmatprep.subr.bf16.mxu0 %v2487
    %3769 = vmatpush1.bf16.msra.mxu0 %v2486
    %3770 = vmatprep.subr.bf16.mxu0 %v2495
    %3771 = vmatpush1.bf16.msra.mxu0 %v2494
    %3772 = vmatprep.subr.bf16.mxu0 %v2503
    %3773 = vmatpush1.bf16.msra.mxu0 %v2502
    %3774 = vmatprep.subr.bf16.mxu0 %v2511
    %3775 = vmatpush1.bf16.msra.mxu0 %v2510
    %3776 = vmatprep.subr.bf16.mxu0 %v2519
    %3777 = vmatpush1.bf16.msra.mxu0 %v2518
    %3778 = vmatprep.subr.bf16.mxu0 %v2527
    %3779 = vmatpush1.bf16.msra.mxu0 %v2526
    %3780 = vmatprep.subr.bf16.mxu0 %v2535
    %3781 = vmatpush1.bf16.msra.mxu0 %v2534
    %3782 = vmatprep.mubr.bf16.mxu0 %v605
    %3783 = vmatmul.mubr.bf16.gmra.mrb[0].mxu0 %v604
    %v3784 = vpop.f32.mrb[0].mxu0
    %v3785 = vadd.f32 %v3744, %v3784
    %v3786 = vpop.f32.mrb[0].mxu0
    %v3787 = vadd.f32 %v3746, %v3786
    %v3788 = vpop.f32.mrb[0].mxu0
    %v3789 = vpop.f32.mrb[0].mxu0
    %3790 = vdwg.mxu0
    %3791 = vmatprep.subr.bf16.mxu0 %v2543
    %3792 = vmatpush1.bf16.msra.mxu0 %v2542
    %3793 = vmatprep.subr.bf16.mxu0 %v2551
    %3794 = vmatpush1.bf16.msra.mxu0 %v2550
    %3795 = vmatprep.subr.bf16.mxu0 %v2559
    %3796 = vmatpush1.bf16.msra.mxu0 %v2558
    %3797 = vmatprep.subr.bf16.mxu0 %v2567
    %3798 = vmatpush1.bf16.msra.mxu0 %v2566
    %3799 = vmatprep.subr.bf16.mxu0 %v2575
    %3800 = vmatpush1.bf16.msra.mxu0 %v2574
    %3801 = vmatprep.subr.bf16.mxu0 %v2583
    %3802 = vmatpush1.bf16.msra.mxu0 %v2582
    %3803 = vmatprep.subr.bf16.mxu0 %v2591
    %3804 = vmatpush1.bf16.msra.mxu0 %v2590
    %3805 = vmatprep.subr.bf16.mxu0 %v2599
    %3806 = vmatpush1.bf16.msra.mxu0 %v2598
    %3807 = vmatprep.subr.bf16.mxu0 %v2607
    %3808 = vmatpush1.bf16.msra.mxu0 %v2606
    %3809 = vmatprep.subr.bf16.mxu0 %v2615
    %3810 = vmatpush1.bf16.msra.mxu0 %v2614
    %3811 = vmatprep.subr.bf16.mxu0 %v2623
    %3812 = vmatpush1.bf16.msra.mxu0 %v2622
    %3813 = vmatprep.subr.bf16.mxu0 %v2631
    %3814 = vmatpush1.bf16.msra.mxu0 %v2630
    %3815 = vmatprep.subr.bf16.mxu0 %v2639
    %3816 = vmatpush1.bf16.msra.mxu0 %v2638
    %3817 = vmatprep.subr.bf16.mxu0 %v2647
    %3818 = vmatpush1.bf16.msra.mxu0 %v2646
    %3819 = vmatprep.subr.bf16.mxu0 %v2655
    %3820 = vmatpush1.bf16.msra.mxu0 %v2654
    %3821 = vmatprep.subr.bf16.mxu0 %v2663
    %3822 = vmatpush1.bf16.msra.mxu0 %v2662
    %3823 = vmatprep.mubr.bf16.mxu0 %v607
    %3824 = vmatmul.mubr.bf16.gmra.mrb[0].mxu0 %v606
    %v3825 = vpop.f32.mrb[0].mxu0
    %v3826 = vadd.f32 %v3785, %v3825
    %v3827 = vpop.f32.mrb[0].mxu0
    %v3828 = vadd.f32 %v3787, %v3827
    %v3829 = vpop.f32.mrb[0].mxu0
    %v3830 = vpop.f32.mrb[0].mxu0
    %3831 = vdwg.mxu0
    %v3832 = vld [vmem:[%s1] sm:$0xff]
    %v3833 = vld [vmem:[%s5] sm:$0xff]
    %v3834 = vld [vmem:[%s5 + $0x8] sm:$0xff]
    %v3835 = vld [vmem:[%s5 + $0x10] sm:$0xff]
    %v3836 = vld [vmem:[%s5 + $0x18] sm:$0xff]
    %v3837 = vld [vmem:[%s5 + $0x20] sm:$0xff]
    %v3838 = vld [vmem:[%s5 + $0x28] sm:$0xff]
    %v3839 = vld [vmem:[%s5 + $0x30] sm:$0xff]
    %v3840 = vld [vmem:[%s5 + $0x38] sm:$0xff]
    %v3841 = vld [vmem:[%s5 + $0x40] sm:$0xff]
    %v3842 = vld [vmem:[%s5 + $0x48] sm:$0xff]
    %v3843 = vld [vmem:[%s5 + $0x50] sm:$0xff]
    %v3844 = vld [vmem:[%s5 + $0x58] sm:$0xff]
    %v3845 = vld [vmem:[%s5 + $0x60] sm:$0xff]
    %v3846 = vld [vmem:[%s5 + $0x68] sm:$0xff]
    %v3847 = vld [vmem:[%s5 + $0x70] sm:$0xff]
    %v3848 = vld [vmem:[%s5 + $0x78] sm:$0xff]
    %v3849 = vld [vmem:[%s5 + $0x80] sm:$0xff]
    %v3850 = vld [vmem:[%s5 + $0x88] sm:$0xff]
    %v3851 = vld [vmem:[%s5 + $0x90] sm:$0xff]
    %v3852 = vld [vmem:[%s5 + $0x98] sm:$0xff]
    %v3853 = vld [vmem:[%s5 + $0xa0] sm:$0xff]
    %v3854 = vld [vmem:[%s5 + $0xa8] sm:$0xff]
    %v3855 = vld [vmem:[%s5 + $0xb0] sm:$0xff]
    %v3856 = vld [vmem:[%s5 + $0xb8] sm:$0xff]
    %v3857 = vld [vmem:[%s5 + $0xc0] sm:$0xff]
    %v3858 = vld [vmem:[%s5 + $0xc8] sm:$0xff]
    %v3859 = vld [vmem:[%s5 + $0xd0] sm:$0xff]
    %v3860 = vld [vmem:[%s5 + $0xd8] sm:$0xff]
    %v3861 = vld [vmem:[%s5 + $0xe0] sm:$0xff]
    %v3862 = vld [vmem:[%s5 + $0xe8] sm:$0xff]
    %v3863 = vld [vmem:[%s5 + $0xf0] sm:$0xff]
    %v3864 = vld [vmem:[%s5 + $0xf8] sm:$0xff]
    %v3865 = vld [vmem:[%s5 + $0x100] sm:$0xff]
    %v3866 = vld [vmem:[%s5 + $0x108] sm:$0xff]
    %v3867 = vld [vmem:[%s5 + $0x110] sm:$0xff]
    %v3868 = vld [vmem:[%s5 + $0x118] sm:$0xff]
    %v3869 = vld [vmem:[%s5 + $0x120] sm:$0xff]
    %v3870 = vld [vmem:[%s5 + $0x128] sm:$0xff]
    %v3871 = vld [vmem:[%s5 + $0x130] sm:$0xff]
    %v3872 = vld [vmem:[%s5 + $0x138] sm:$0xff]
    %v3873 = vld [vmem:[%s5 + $0x140] sm:$0xff]
    %v3874 = vld [vmem:[%s5 + $0x148] sm:$0xff]
    %v3875 = vld [vmem:[%s5 + $0x150] sm:$0xff]
    %v3876 = vld [vmem:[%s5 + $0x158] sm:$0xff]
    %v3877 = vld [vmem:[%s5 + $0x160] sm:$0xff]
    %v3878 = vld [vmem:[%s5 + $0x168] sm:$0xff]
    %v3879 = vld [vmem:[%s5 + $0x170] sm:$0xff]
    %v3880 = vld [vmem:[%s5 + $0x178] sm:$0xff]
    %v3881 = vld [vmem:[%s5 + $0x180] sm:$0xff]
    %v3882 = vld [vmem:[%s5 + $0x188] sm:$0xff]
    %v3883 = vld [vmem:[%s5 + $0x190] sm:$0xff]
    %v3884 = vld [vmem:[%s5 + $0x198] sm:$0xff]
    %v3885 = vld [vmem:[%s5 + $0x1a0] sm:$0xff]
    %v3886 = vld [vmem:[%s5 + $0x1a8] sm:$0xff]
    %v3887 = vld [vmem:[%s5 + $0x1b0] sm:$0xff]
    %v3888 = vld [vmem:[%s5 + $0x1b8] sm:$0xff]
    %v3889 = vld [vmem:[%s5 + $0x1c0] sm:$0xff]
    %v3890 = vld [vmem:[%s5 + $0x1c8] sm:$0xff]
    %v3891 = vld [vmem:[%s5 + $0x1d0] sm:$0xff]
    %v3892 = vld [vmem:[%s5 + $0x1d8] sm:$0xff]
    %v3893 = vld [vmem:[%s5 + $0x1e0] sm:$0xff]
    %v3894 = vld [vmem:[%s5 + $0x1e8] sm:$0xff]
    %v3895 = vld [vmem:[%s5 + $0x1f0] sm:$0xff]
    %v3896 = vld [vmem:[%s5 + $0x1f8] sm:$0xff]
    %v3897 = vld [vmem:[%s5 + $0x200] sm:$0xff]
    %v3898 = vld [vmem:[%s5 + $0x208] sm:$0xff]
    %v3899 = vld [vmem:[%s5 + $0x210] sm:$0xff]
    %v3900 = vld [vmem:[%s5 + $0x218] sm:$0xff]
    %v3901 = vld [vmem:[%s5 + $0x220] sm:$0xff]
    %v3902 = vld [vmem:[%s5 + $0x228] sm:$0xff]
    %v3903 = vld [vmem:[%s5 + $0x230] sm:$0xff]
    %v3904 = vld [vmem:[%s5 + $0x238] sm:$0xff]
    %v3905 = vld [vmem:[%s5 + $0x240] sm:$0xff]
    %v3906 = vld [vmem:[%s5 + $0x248] sm:$0xff]
    %v3907 = vld [vmem:[%s5 + $0x250] sm:$0xff]
    %v3908 = vld [vmem:[%s5 + $0x258] sm:$0xff]
    %v3909 = vld [vmem:[%s5 + $0x260] sm:$0xff]
    %v3910 = vld [vmem:[%s5 + $0x268] sm:$0xff]
    %v3911 = vld [vmem:[%s5 + $0x270] sm:$0xff]
    %v3912 = vld [vmem:[%s5 + $0x278] sm:$0xff]
    %v3913 = vld [vmem:[%s5 + $0x280] sm:$0xff]
    %v3914 = vld [vmem:[%s5 + $0x288] sm:$0xff]
    %v3915 = vld [vmem:[%s5 + $0x290] sm:$0xff]
    %v3916 = vld [vmem:[%s5 + $0x298] sm:$0xff]
    %v3917 = vld [vmem:[%s5 + $0x2a0] sm:$0xff]
    %v3918 = vld [vmem:[%s5 + $0x2a8] sm:$0xff]
    %v3919 = vld [vmem:[%s5 + $0x2b0] sm:$0xff]
    %v3920 = vld [vmem:[%s5 + $0x2b8] sm:$0xff]
    %v3921 = vld [vmem:[%s5 + $0x2c0] sm:$0xff]
    %v3922 = vld [vmem:[%s5 + $0x2c8] sm:$0xff]
    %v3923 = vld [vmem:[%s5 + $0x2d0] sm:$0xff]
    %v3924 = vld [vmem:[%s5 + $0x2d8] sm:$0xff]
    %v3925 = vld [vmem:[%s5 + $0x2e0] sm:$0xff]
    %v3926 = vld [vmem:[%s5 + $0x2e8] sm:$0xff]
    %v3927 = vld [vmem:[%s5 + $0x2f0] sm:$0xff]
    %v3928 = vld [vmem:[%s5 + $0x2f8] sm:$0xff]
    %v3929 = vld [vmem:[%s5 + $0x300] sm:$0xff]
    %v3930 = vld [vmem:[%s5 + $0x308] sm:$0xff]
    %v3931 = vld [vmem:[%s5 + $0x310] sm:$0xff]
    %v3932 = vld [vmem:[%s5 + $0x318] sm:$0xff]
    %v3933 = vld [vmem:[%s5 + $0x320] sm:$0xff]
    %v3934 = vld [vmem:[%s5 + $0x328] sm:$0xff]
    %v3935 = vld [vmem:[%s5 + $0x330] sm:$0xff]
    %v3936 = vld [vmem:[%s5 + $0x338] sm:$0xff]
    %v3937 = vld [vmem:[%s5 + $0x340] sm:$0xff]
    %v3938 = vld [vmem:[%s5 + $0x348] sm:$0xff]
    %v3939 = vld [vmem:[%s5 + $0x350] sm:$0xff]
    %v3940 = vld [vmem:[%s5 + $0x358] sm:$0xff]
    %v3941 = vld [vmem:[%s5 + $0x360] sm:$0xff]
    %v3942 = vld [vmem:[%s5 + $0x368] sm:$0xff]
    %v3943 = vld [vmem:[%s5 + $0x370] sm:$0xff]
    %v3944 = vld [vmem:[%s5 + $0x378] sm:$0xff]
    %v3945 = vld [vmem:[%s5 + $0x380] sm:$0xff]
    %v3946 = vld [vmem:[%s5 + $0x388] sm:$0xff]
    %v3947 = vld [vmem:[%s5 + $0x390] sm:$0xff]
    %v3948 = vld [vmem:[%s5 + $0x398] sm:$0xff]
    %v3949 = vld [vmem:[%s5 + $0x3a0] sm:$0xff]
    %v3950 = vld [vmem:[%s5 + $0x3a8] sm:$0xff]
    %v3951 = vld [vmem:[%s5 + $0x3b0] sm:$0xff]
    %v3952 = vld [vmem:[%s5 + $0x3b8] sm:$0xff]
    %v3953 = vld [vmem:[%s5 + $0x3c0] sm:$0xff]
    %v3954 = vld [vmem:[%s5 + $0x3c8] sm:$0xff]
    %v3955 = vld [vmem:[%s5 + $0x3d0] sm:$0xff]
    %v3956 = vld [vmem:[%s5 + $0x3d8] sm:$0xff]
    %v3957 = vld [vmem:[%s5 + $0x3e0] sm:$0xff]
    %v3958 = vld [vmem:[%s5 + $0x3e8] sm:$0xff]
    %v3959 = vld [vmem:[%s5 + $0x3f0] sm:$0xff]
    %v3960 = vld [vmem:[%s5 + $0x3f8] sm:$0xff]
    %v3961 = vld [vmem:[%s7] sm:$0xff]
    %v3963 = vlaneseq
    %v3964 = vshrl.u32 %v3963, 7
    %v3965 = vsub.s32 0, %v3964
    %v3966 = vrot.slane %v3961, %v3965
    %v3967 = vlaneseq
    %v3968 = vshrl.u32 %v3967, 7
    %v3969 = vsub.s32 1, %v3968
    %v3970 = vrot.slane %v3961, %v3969
    %v3971 = vlaneseq
    %v3972 = vshrl.u32 %v3971, 7
    %v3973 = vsub.s32 2, %v3972
    %v3974 = vrot.slane %v3961, %v3973
    %v3975 = vlaneseq
    %v3976 = vshrl.u32 %v3975, 7
    %v3977 = vsub.s32 3, %v3976
    %v3978 = vrot.slane %v3961, %v3977
    %v3979 = vlaneseq
    %v3980 = vshrl.u32 %v3979, 7
    %v3981 = vsub.s32 4, %v3980
    %v3982 = vrot.slane %v3961, %v3981
    %v3983 = vlaneseq
    %v3984 = vshrl.u32 %v3983, 7
    %v3985 = vsub.s32 5, %v3984
    %v3986 = vrot.slane %v3961, %v3985
    %v3987 = vlaneseq
    %v3988 = vshrl.u32 %v3987, 7
    %v3989 = vsub.s32 6, %v3988
    %v3990 = vrot.slane %v3961, %v3989
    %v3991 = vlaneseq
    %v3992 = vshrl.u32 %v3991, 7
    %v3993 = vsub.s32 7, %v3992
    %v3994 = vrot.slane %v3961, %v3993
    %v4004 = vunpack.c.l.b16 %v3832
    %v4005 = vunpack.c.h.b16 %v3832
    %v4006 = vpack.c.b16 %v4004, %v4004
    %v4007 = vpack.c.b16 %v4005, %v4005
    %v4138 = vunpack.c.l.b16 %v3833
    %v4139 = vunpack.c.h.b16 %v3833
    %v4140 = vunpack.c.l.b16 %v3834
    %v4141 = vunpack.c.h.b16 %v3834
    %v4142 = vunpack.c.l.b16 %v3835
    %v4143 = vunpack.c.h.b16 %v3835
    %v4144 = vunpack.c.l.b16 %v3836
    %v4145 = vunpack.c.h.b16 %v3836
    %v4146 = vunpack.c.l.b16 %v3837
    %v4147 = vunpack.c.h.b16 %v3837
    %v4148 = vunpack.c.l.b16 %v3838
    %v4149 = vunpack.c.h.b16 %v3838
    %v4150 = vunpack.c.l.b16 %v3839
    %v4151 = vunpack.c.h.b16 %v3839
    %v4152 = vunpack.c.l.b16 %v3840
    %v4153 = vunpack.c.h.b16 %v3840
    %v4154 = vunpack.c.l.b16 %v3841
    %v4155 = vunpack.c.h.b16 %v3841
    %v4156 = vunpack.c.l.b16 %v3842
    %v4157 = vunpack.c.h.b16 %v3842
    %v4158 = vunpack.c.l.b16 %v3843
    %v4159 = vunpack.c.h.b16 %v3843
    %v4160 = vunpack.c.l.b16 %v3844
    %v4161 = vunpack.c.h.b16 %v3844
    %v4162 = vunpack.c.l.b16 %v3845
    %v4163 = vunpack.c.h.b16 %v3845
    %v4164 = vunpack.c.l.b16 %v3846
    %v4165 = vunpack.c.h.b16 %v3846
    %v4166 = vunpack.c.l.b16 %v3847
    %v4167 = vunpack.c.h.b16 %v3847
    %v4168 = vunpack.c.l.b16 %v3848
    %v4169 = vunpack.c.h.b16 %v3848
    %v4170 = vunpack.c.l.b16 %v3849
    %v4171 = vunpack.c.h.b16 %v3849
    %v4172 = vunpack.c.l.b16 %v3850
    %v4173 = vunpack.c.h.b16 %v3850
    %v4174 = vunpack.c.l.b16 %v3851
    %v4175 = vunpack.c.h.b16 %v3851
    %v4176 = vunpack.c.l.b16 %v3852
    %v4177 = vunpack.c.h.b16 %v3852
    %v4178 = vunpack.c.l.b16 %v3853
    %v4179 = vunpack.c.h.b16 %v3853
    %v4180 = vunpack.c.l.b16 %v3854
    %v4181 = vunpack.c.h.b16 %v3854
    %v4182 = vunpack.c.l.b16 %v3855
    %v4183 = vunpack.c.h.b16 %v3855
    %v4184 = vunpack.c.l.b16 %v3856
    %v4185 = vunpack.c.h.b16 %v3856
    %v4186 = vunpack.c.l.b16 %v3857
    %v4187 = vunpack.c.h.b16 %v3857
    %v4188 = vunpack.c.l.b16 %v3858
    %v4189 = vunpack.c.h.b16 %v3858
    %v4190 = vunpack.c.l.b16 %v3859
    %v4191 = vunpack.c.h.b16 %v3859
    %v4192 = vunpack.c.l.b16 %v3860
    %v4193 = vunpack.c.h.b16 %v3860
    %v4194 = vunpack.c.l.b16 %v3861
    %v4195 = vunpack.c.h.b16 %v3861
    %v4196 = vunpack.c.l.b16 %v3862
    %v4197 = vunpack.c.h.b16 %v3862
    %v4198 = vunpack.c.l.b16 %v3863
    %v4199 = vunpack.c.h.b16 %v3863
    %v4200 = vunpack.c.l.b16 %v3864
    %v4201 = vunpack.c.h.b16 %v3864
    %v4202 = vunpack.c.l.b16 %v3865
    %v4203 = vunpack.c.h.b16 %v3865
    %v4204 = vunpack.c.l.b16 %v3866
    %v4205 = vunpack.c.h.b16 %v3866
    %v4206 = vunpack.c.l.b16 %v3867
    %v4207 = vunpack.c.h.b16 %v3867
    %v4208 = vunpack.c.l.b16 %v3868
    %v4209 = vunpack.c.h.b16 %v3868
    %v4210 = vunpack.c.l.b16 %v3869
    %v4211 = vunpack.c.h.b16 %v3869
    %v4212 = vunpack.c.l.b16 %v3870
    %v4213 = vunpack.c.h.b16 %v3870
    %v4214 = vunpack.c.l.b16 %v3871
    %v4215 = vunpack.c.h.b16 %v3871
    %v4216 = vunpack.c.l.b16 %v3872
    %v4217 = vunpack.c.h.b16 %v3872
    %v4218 = vunpack.c.l.b16 %v3873
    %v4219 = vunpack.c.h.b16 %v3873
    %v4220 = vunpack.c.l.b16 %v3874
    %v4221 = vunpack.c.h.b16 %v3874
    %v4222 = vunpack.c.l.b16 %v3875
    %v4223 = vunpack.c.h.b16 %v3875
    %v4224 = vunpack.c.l.b16 %v3876
    %v4225 = vunpack.c.h.b16 %v3876
    %v4226 = vunpack.c.l.b16 %v3877
    %v4227 = vunpack.c.h.b16 %v3877
    %v4228 = vunpack.c.l.b16 %v3878
    %v4229 = vunpack.c.h.b16 %v3878
    %v4230 = vunpack.c.l.b16 %v3879
    %v4231 = vunpack.c.h.b16 %v3879
    %v4232 = vunpack.c.l.b16 %v3880
    %v4233 = vunpack.c.h.b16 %v3880
    %v4234 = vunpack.c.l.b16 %v3881
    %v4235 = vunpack.c.h.b16 %v3881
    %v4236 = vunpack.c.l.b16 %v3882
    %v4237 = vunpack.c.h.b16 %v3882
    %v4238 = vunpack.c.l.b16 %v3883
    %v4239 = vunpack.c.h.b16 %v3883
    %v4240 = vunpack.c.l.b16 %v3884
    %v4241 = vunpack.c.h.b16 %v3884
    %v4242 = vunpack.c.l.b16 %v3885
    %v4243 = vunpack.c.h.b16 %v3885
    %v4244 = vunpack.c.l.b16 %v3886
    %v4245 = vunpack.c.h.b16 %v3886
    %v4246 = vunpack.c.l.b16 %v3887
    %v4247 = vunpack.c.h.b16 %v3887
    %v4248 = vunpack.c.l.b16 %v3888
    %v4249 = vunpack.c.h.b16 %v3888
    %v4250 = vunpack.c.l.b16 %v3889
    %v4251 = vunpack.c.h.b16 %v3889
    %v4252 = vunpack.c.l.b16 %v3890
    %v4253 = vunpack.c.h.b16 %v3890
    %v4254 = vunpack.c.l.b16 %v3891
    %v4255 = vunpack.c.h.b16 %v3891
    %v4256 = vunpack.c.l.b16 %v3892
    %v4257 = vunpack.c.h.b16 %v3892
    %v4258 = vunpack.c.l.b16 %v3893
    %v4259 = vunpack.c.h.b16 %v3893
    %v4260 = vunpack.c.l.b16 %v3894
    %v4261 = vunpack.c.h.b16 %v3894
    %v4262 = vunpack.c.l.b16 %v3895
    %v4263 = vunpack.c.h.b16 %v3895
    %v4264 = vunpack.c.l.b16 %v3896
    %v4265 = vunpack.c.h.b16 %v3896
    %v4266 = vunpack.c.l.b16 %v3897
    %v4267 = vunpack.c.h.b16 %v3897
    %v4268 = vunpack.c.l.b16 %v3898
    %v4269 = vunpack.c.h.b16 %v3898
    %v4270 = vunpack.c.l.b16 %v3899
    %v4271 = vunpack.c.h.b16 %v3899
    %v4272 = vunpack.c.l.b16 %v3900
    %v4273 = vunpack.c.h.b16 %v3900
    %v4274 = vunpack.c.l.b16 %v3901
    %v4275 = vunpack.c.h.b16 %v3901
    %v4276 = vunpack.c.l.b16 %v3902
    %v4277 = vunpack.c.h.b16 %v3902
    %v4278 = vunpack.c.l.b16 %v3903
    %v4279 = vunpack.c.h.b16 %v3903
    %v4280 = vunpack.c.l.b16 %v3904
    %v4281 = vunpack.c.h.b16 %v3904
    %v4282 = vunpack.c.l.b16 %v3905
    %v4283 = vunpack.c.h.b16 %v3905
    %v4284 = vunpack.c.l.b16 %v3906
    %v4285 = vunpack.c.h.b16 %v3906
    %v4286 = vunpack.c.l.b16 %v3907
    %v4287 = vunpack.c.h.b16 %v3907
    %v4288 = vunpack.c.l.b16 %v3908
    %v4289 = vunpack.c.h.b16 %v3908
    %v4290 = vunpack.c.l.b16 %v3909
    %v4291 = vunpack.c.h.b16 %v3909
    %v4292 = vunpack.c.l.b16 %v3910
    %v4293 = vunpack.c.h.b16 %v3910
    %v4294 = vunpack.c.l.b16 %v3911
    %v4295 = vunpack.c.h.b16 %v3911
    %v4296 = vunpack.c.l.b16 %v3912
    %v4297 = vunpack.c.h.b16 %v3912
    %v4298 = vunpack.c.l.b16 %v3913
    %v4299 = vunpack.c.h.b16 %v3913
    %v4300 = vunpack.c.l.b16 %v3914
    %v4301 = vunpack.c.h.b16 %v3914
    %v4302 = vunpack.c.l.b16 %v3915
    %v4303 = vunpack.c.h.b16 %v3915
    %v4304 = vunpack.c.l.b16 %v3916
    %v4305 = vunpack.c.h.b16 %v3916
    %v4306 = vunpack.c.l.b16 %v3917
    %v4307 = vunpack.c.h.b16 %v3917
    %v4308 = vunpack.c.l.b16 %v3918
    %v4309 = vunpack.c.h.b16 %v3918
    %v4310 = vunpack.c.l.b16 %v3919
    %v4311 = vunpack.c.h.b16 %v3919
    %v4312 = vunpack.c.l.b16 %v3920
    %v4313 = vunpack.c.h.b16 %v3920
    %v4314 = vunpack.c.l.b16 %v3921
    %v4315 = vunpack.c.h.b16 %v3921
    %v4316 = vunpack.c.l.b16 %v3922
    %v4317 = vunpack.c.h.b16 %v3922
    %v4318 = vunpack.c.l.b16 %v3923
    %v4319 = vunpack.c.h.b16 %v3923
    %v4320 = vunpack.c.l.b16 %v3924
    %v4321 = vunpack.c.h.b16 %v3924
    %v4322 = vunpack.c.l.b16 %v3925
    %v4323 = vunpack.c.h.b16 %v3925
    %v4324 = vunpack.c.l.b16 %v3926
    %v4325 = vunpack.c.h.b16 %v3926
    %v4326 = vunpack.c.l.b16 %v3927
    %v4327 = vunpack.c.h.b16 %v3927
    %v4328 = vunpack.c.l.b16 %v3928
    %v4329 = vunpack.c.h.b16 %v3928
    %v4330 = vunpack.c.l.b16 %v3929
    %v4331 = vunpack.c.h.b16 %v3929
    %v4332 = vunpack.c.l.b16 %v3930
    %v4333 = vunpack.c.h.b16 %v3930
    %v4334 = vunpack.c.l.b16 %v3931
    %v4335 = vunpack.c.h.b16 %v3931
    %v4336 = vunpack.c.l.b16 %v3932
    %v4337 = vunpack.c.h.b16 %v3932
    %v4338 = vunpack.c.l.b16 %v3933
    %v4339 = vunpack.c.h.b16 %v3933
    %v4340 = vunpack.c.l.b16 %v3934
    %v4341 = vunpack.c.h.b16 %v3934
    %v4342 = vunpack.c.l.b16 %v3935
    %v4343 = vunpack.c.h.b16 %v3935
    %v4344 = vunpack.c.l.b16 %v3936
    %v4345 = vunpack.c.h.b16 %v3936
    %v4346 = vunpack.c.l.b16 %v3937
    %v4347 = vunpack.c.h.b16 %v3937
    %v4348 = vunpack.c.l.b16 %v3938
    %v4349 = vunpack.c.h.b16 %v3938
    %v4350 = vunpack.c.l.b16 %v3939
    %v4351 = vunpack.c.h.b16 %v3939
    %v4352 = vunpack.c.l.b16 %v3940
    %v4353 = vunpack.c.h.b16 %v3940
    %v4354 = vunpack.c.l.b16 %v3941
    %v4355 = vunpack.c.h.b16 %v3941
    %v4356 = vunpack.c.l.b16 %v3942
    %v4357 = vunpack.c.h.b16 %v3942
    %v4358 = vunpack.c.l.b16 %v3943
    %v4359 = vunpack.c.h.b16 %v3943
    %v4360 = vunpack.c.l.b16 %v3944
    %v4361 = vunpack.c.h.b16 %v3944
    %v4362 = vunpack.c.l.b16 %v3945
    %v4363 = vunpack.c.h.b16 %v3945
    %v4364 = vunpack.c.l.b16 %v3946
    %v4365 = vunpack.c.h.b16 %v3946
    %v4366 = vunpack.c.l.b16 %v3947
    %v4367 = vunpack.c.h.b16 %v3947
    %v4368 = vunpack.c.l.b16 %v3948
    %v4369 = vunpack.c.h.b16 %v3948
    %v4370 = vunpack.c.l.b16 %v3949
    %v4371 = vunpack.c.h.b16 %v3949
    %v4372 = vunpack.c.l.b16 %v3950
    %v4373 = vunpack.c.h.b16 %v3950
    %v4374 = vunpack.c.l.b16 %v3951
    %v4375 = vunpack.c.h.b16 %v3951
    %v4376 = vunpack.c.l.b16 %v3952
    %v4377 = vunpack.c.h.b16 %v3952
    %v4378 = vunpack.c.l.b16 %v3953
    %v4379 = vunpack.c.h.b16 %v3953
    %v4380 = vunpack.c.l.b16 %v3954
    %v4381 = vunpack.c.h.b16 %v3954
    %v4382 = vunpack.c.l.b16 %v3955
    %v4383 = vunpack.c.h.b16 %v3955
    %v4384 = vunpack.c.l.b16 %v3956
    %v4385 = vunpack.c.h.b16 %v3956
    %v4386 = vunpack.c.l.b16 %v3957
    %v4387 = vunpack.c.h.b16 %v3957
    %v4388 = vunpack.c.l.b16 %v3958
    %v4389 = vunpack.c.h.b16 %v3958
    %v4390 = vunpack.c.l.b16 %v3959
    %v4391 = vunpack.c.h.b16 %v3959
    %v4392 = vunpack.c.l.b16 %v3960
    %v4393 = vunpack.c.h.b16 %v3960
    %v4394 = vpack.c.b16 %v4146, %v4138
    %v4395 = vpack.c.b16 %v4147, %v4139
    %v4396 = vpack.c.b16 %v4148, %v4140
    %v4397 = vpack.c.b16 %v4149, %v4141
    %v4398 = vpack.c.b16 %v4150, %v4142
    %v4399 = vpack.c.b16 %v4151, %v4143
    %v4400 = vpack.c.b16 %v4152, %v4144
    %v4401 = vpack.c.b16 %v4153, %v4145
    %v4402 = vpack.c.b16 %v4162, %v4154
    %v4403 = vpack.c.b16 %v4163, %v4155
    %v4404 = vpack.c.b16 %v4164, %v4156
    %v4405 = vpack.c.b16 %v4165, %v4157
    %v4406 = vpack.c.b16 %v4166, %v4158
    %v4407 = vpack.c.b16 %v4167, %v4159
    %v4408 = vpack.c.b16 %v4168, %v4160
    %v4409 = vpack.c.b16 %v4169, %v4161
    %v4410 = vpack.c.b16 %v4178, %v4170
    %v4411 = vpack.c.b16 %v4179, %v4171
    %v4412 = vpack.c.b16 %v4180, %v4172
    %v4413 = vpack.c.b16 %v4181, %v4173
    %v4414 = vpack.c.b16 %v4182, %v4174
    %v4415 = vpack.c.b16 %v4183, %v4175
    %v4416 = vpack.c.b16 %v4184, %v4176
    %v4417 = vpack.c.b16 %v4185, %v4177
    %v4418 = vpack.c.b16 %v4194, %v4186
    %v4419 = vpack.c.b16 %v4195, %v4187
    %v4420 = vpack.c.b16 %v4196, %v4188
    %v4421 = vpack.c.b16 %v4197, %v4189
    %v4422 = vpack.c.b16 %v4198, %v4190
    %v4423 = vpack.c.b16 %v4199, %v4191
    %v4424 = vpack.c.b16 %v4200, %v4192
    %v4425 = vpack.c.b16 %v4201, %v4193
    %v4426 = vpack.c.b16 %v4210, %v4202
    %v4427 = vpack.c.b16 %v4211, %v4203
    %v4428 = vpack.c.b16 %v4212, %v4204
    %v4429 = vpack.c.b16 %v4213, %v4205
    %v4430 = vpack.c.b16 %v4214, %v4206
    %v4431 = vpack.c.b16 %v4215, %v4207
    %v4432 = vpack.c.b16 %v4216, %v4208
    %v4433 = vpack.c.b16 %v4217, %v4209
    %v4434 = vpack.c.b16 %v4226, %v4218
    %v4435 = vpack.c.b16 %v4227, %v4219
    %v4436 = vpack.c.b16 %v4228, %v4220
    %v4437 = vpack.c.b16 %v4229, %v4221
    %v4438 = vpack.c.b16 %v4230, %v4222
    %v4439 = vpack.c.b16 %v4231, %v4223
    %v4440 = vpack.c.b16 %v4232, %v4224
    %v4441 = vpack.c.b16 %v4233, %v4225
    %v4442 = vpack.c.b16 %v4242, %v4234
    %v4443 = vpack.c.b16 %v4243, %v4235
    %v4444 = vpack.c.b16 %v4244, %v4236
    %v4445 = vpack.c.b16 %v4245, %v4237
    %v4446 = vpack.c.b16 %v4246, %v4238
    %v4447 = vpack.c.b16 %v4247, %v4239
    %v4448 = vpack.c.b16 %v4248, %v4240
    %v4449 = vpack.c.b16 %v4249, %v4241
    %v4450 = vpack.c.b16 %v4258, %v4250
    %v4451 = vpack.c.b16 %v4259, %v4251
    %v4452 = vpack.c.b16 %v4260, %v4252
    %v4453 = vpack.c.b16 %v4261, %v4253
    %v4454 = vpack.c.b16 %v4262, %v4254
    %v4455 = vpack.c.b16 %v4263, %v4255
    %v4456 = vpack.c.b16 %v4264, %v4256
    %v4457 = vpack.c.b16 %v4265, %v4257
    %v4458 = vpack.c.b16 %v4274, %v4266
    %v4459 = vpack.c.b16 %v4275, %v4267
    %v4460 = vpack.c.b16 %v4276, %v4268
    %v4461 = vpack.c.b16 %v4277, %v4269
    %v4462 = vpack.c.b16 %v4278, %v4270
    %v4463 = vpack.c.b16 %v4279, %v4271
    %v4464 = vpack.c.b16 %v4280, %v4272
    %v4465 = vpack.c.b16 %v4281, %v4273
    %v4466 = vpack.c.b16 %v4290, %v4282
    %v4467 = vpack.c.b16 %v4291, %v4283
    %v4468 = vpack.c.b16 %v4292, %v4284
    %v4469 = vpack.c.b16 %v4293, %v4285
    %v4470 = vpack.c.b16 %v4294, %v4286
    %v4471 = vpack.c.b16 %v4295, %v4287
    %v4472 = vpack.c.b16 %v4296, %v4288
    %v4473 = vpack.c.b16 %v4297, %v4289
    %v4474 = vpack.c.b16 %v4306, %v4298
    %v4475 = vpack.c.b16 %v4307, %v4299
    %v4476 = vpack.c.b16 %v4308, %v4300
    %v4477 = vpack.c.b16 %v4309, %v4301
    %v4478 = vpack.c.b16 %v4310, %v4302
    %v4479 = vpack.c.b16 %v4311, %v4303
    %v4480 = vpack.c.b16 %v4312, %v4304
    %v4481 = vpack.c.b16 %v4313, %v4305
    %v4482 = vpack.c.b16 %v4322, %v4314
    %v4483 = vpack.c.b16 %v4323, %v4315
    %v4484 = vpack.c.b16 %v4324, %v4316
    %v4485 = vpack.c.b16 %v4325, %v4317
    %v4486 = vpack.c.b16 %v4326, %v4318
    %v4487 = vpack.c.b16 %v4327, %v4319
    %v4488 = vpack.c.b16 %v4328, %v4320
    %v4489 = vpack.c.b16 %v4329, %v4321
    %v4490 = vpack.c.b16 %v4338, %v4330
    %v4491 = vpack.c.b16 %v4339, %v4331
    %v4492 = vpack.c.b16 %v4340, %v4332
    %v4493 = vpack.c.b16 %v4341, %v4333
    %v4494 = vpack.c.b16 %v4342, %v4334
    %v4495 = vpack.c.b16 %v4343, %v4335
    %v4496 = vpack.c.b16 %v4344, %v4336
    %v4497 = vpack.c.b16 %v4345, %v4337
    %v4498 = vpack.c.b16 %v4354, %v4346
    %v4499 = vpack.c.b16 %v4355, %v4347
    %v4500 = vpack.c.b16 %v4356, %v4348
    %v4501 = vpack.c.b16 %v4357, %v4349
    %v4502 = vpack.c.b16 %v4358, %v4350
    %v4503 = vpack.c.b16 %v4359, %v4351
    %v4504 = vpack.c.b16 %v4360, %v4352
    %v4505 = vpack.c.b16 %v4361, %v4353
    %v4506 = vpack.c.b16 %v4370, %v4362
    %v4507 = vpack.c.b16 %v4371, %v4363
    %v4508 = vpack.c.b16 %v4372, %v4364
    %v4509 = vpack.c.b16 %v4373, %v4365
    %v4510 = vpack.c.b16 %v4374, %v4366
    %v4511 = vpack.c.b16 %v4375, %v4367
    %v4512 = vpack.c.b16 %v4376, %v4368
    %v4513 = vpack.c.b16 %v4377, %v4369
    %v4514 = vpack.c.b16 %v4386, %v4378
    %v4515 = vpack.c.b16 %v4387, %v4379
    %v4516 = vpack.c.b16 %v4388, %v4380
    %v4517 = vpack.c.b16 %v4389, %v4381
    %v4518 = vpack.c.b16 %v4390, %v4382
    %v4519 = vpack.c.b16 %v4391, %v4383
    %v4520 = vpack.c.b16 %v4392, %v4384
    %v4521 = vpack.c.b16 %v4393, %v4385
    %4650 = vmatprep.subr.bf16.mxu0 %v4395
    %4651 = vmatpush1.bf16.msra.mxu0 %v4394
    %4652 = vmatprep.subr.bf16.mxu0 %v4403
    %4653 = vmatpush1.bf16.msra.mxu0 %v4402
    %4654 = vmatprep.subr.bf16.mxu0 %v4411
    %4655 = vmatpush1.bf16.msra.mxu0 %v4410
    %4656 = vmatprep.subr.bf16.mxu0 %v4419
    %4657 = vmatpush1.bf16.msra.mxu0 %v4418
    %4658 = vmatprep.subr.bf16.mxu0 %v4427
    %4659 = vmatpush1.bf16.msra.mxu0 %v4426
    %4660 = vmatprep.subr.bf16.mxu0 %v4435
    %4661 = vmatpush1.bf16.msra.mxu0 %v4434
    %4662 = vmatprep.subr.bf16.mxu0 %v4443
    %4663 = vmatpush1.bf16.msra.mxu0 %v4442
    %4664 = vmatprep.subr.bf16.mxu0 %v4451
    %4665 = vmatpush1.bf16.msra.mxu0 %v4450
    %4666 = vmatprep.subr.bf16.mxu0 %v4459
    %4667 = vmatpush1.bf16.msra.mxu0 %v4458
    %4668 = vmatprep.subr.bf16.mxu0 %v4467
    %4669 = vmatpush1.bf16.msra.mxu0 %v4466
    %4670 = vmatprep.subr.bf16.mxu0 %v4475
    %4671 = vmatpush1.bf16.msra.mxu0 %v4474
    %4672 = vmatprep.subr.bf16.mxu0 %v4483
    %4673 = vmatpush1.bf16.msra.mxu0 %v4482
    %4674 = vmatprep.subr.bf16.mxu0 %v4491
    %4675 = vmatpush1.bf16.msra.mxu0 %v4490
    %4676 = vmatprep.subr.bf16.mxu0 %v4499
    %4677 = vmatpush1.bf16.msra.mxu0 %v4498
    %4678 = vmatprep.subr.bf16.mxu0 %v4507
    %4679 = vmatpush1.bf16.msra.mxu0 %v4506
    %4680 = vmatprep.subr.bf16.mxu0 %v4515
    %4681 = vmatpush1.bf16.msra.mxu0 %v4514
    %4682 = vmatprep.mubr.bf16.mxu0 %v4007
    %4683 = vmatmul.mubr.bf16.gmra.mrb[0].mxu0 %v4006
    %v4684 = vpop.f32.mrb[0].mxu0
    %v4685 = vadd.f32 %v3966, %v4684
    %v4686 = vpop.f32.mrb[0].mxu0
    %v4687 = vadd.f32 %v3970, %v4686
    %v4688 = vpop.f32.mrb[0].mxu0
    %v4689 = vpop.f32.mrb[0].mxu0
    %4690 = vdwg.mxu0
    %4691 = vmatprep.subr.bf16.mxu0 %v4397
    %4692 = vmatpush1.bf16.msra.mxu0 %v4396
    %4693 = vmatprep.subr.bf16.mxu0 %v4405
    %4694 = vmatpush1.bf16.msra.mxu0 %v4404
    %4695 = vmatprep.subr.bf16.mxu0 %v4413
    %4696 = vmatpush1.bf16.msra.mxu0 %v4412
    %4697 = vmatprep.subr.bf16.mxu0 %v4421
    %4698 = vmatpush1.bf16.msra.mxu0 %v4420
    %4699 = vmatprep.subr.bf16.mxu0 %v4429
    %4700 = vmatpush1.bf16.msra.mxu0 %v4428
    %4701 = vmatprep.subr.bf16.mxu0 %v4437
    %4702 = vmatpush1.bf16.msra.mxu0 %v4436
    %4703 = vmatprep.subr.bf16.mxu0 %v4445
    %4704 = vmatpush1.bf16.msra.mxu0 %v4444
    %4705 = vmatprep.subr.bf16.mxu0 %v4453
    %4706 = vmatpush1.bf16.msra.mxu0 %v4452
    %4707 = vmatprep.subr.bf16.mxu0 %v4461
    %4708 = vmatpush1.bf16.msra.mxu0 %v4460
    %4709 = vmatprep.subr.bf16.mxu0 %v4469
    %4710 = vmatpush1.bf16.msra.mxu0 %v4468
    %4711 = vmatprep.subr.bf16.mxu0 %v4477
    %4712 = vmatpush1.bf16.msra.mxu0 %v4476
    %4713 = vmatprep.subr.bf16.mxu0 %v4485
    %4714 = vmatpush1.bf16.msra.mxu0 %v4484
    %4715 = vmatprep.subr.bf16.mxu0 %v4493
    %4716 = vmatpush1.bf16.msra.mxu0 %v4492
    %4717 = vmatprep.subr.bf16.mxu0 %v4501
    %4718 = vmatpush1.bf16.msra.mxu0 %v4500
    %4719 = vmatprep.subr.bf16.mxu0 %v4509
    %4720 = vmatpush1.bf16.msra.mxu0 %v4508
    %4721 = vmatprep.subr.bf16.mxu0 %v4517
    %4722 = vmatpush1.bf16.msra.mxu0 %v4516
    %4723 = vmatprep.mubr.bf16.mxu0 %v4007
    %4724 = vmatmul.mubr.bf16.gmra.mrb[0].mxu0 %v4006
    %v4725 = vpop.f32.mrb[0].mxu0
    %v4726 = vadd.f32 %v3974, %v4725
    %v4727 = vpop.f32.mrb[0].mxu0
    %v4728 = vadd.f32 %v3978, %v4727
    %v4729 = vpop.f32.mrb[0].mxu0
    %v4730 = vpop.f32.mrb[0].mxu0
    %4731 = vdwg.mxu0
    %4732 = vmatprep.subr.bf16.mxu0 %v4399
    %4733 = vmatpush1.bf16.msra.mxu0 %v4398
    %4734 = vmatprep.subr.bf16.mxu0 %v4407
    %4735 = vmatpush1.bf16.msra.mxu0 %v4406
    %4736 = vmatprep.subr.bf16.mxu0 %v4415
    %4737 = vmatpush1.bf16.msra.mxu0 %v4414
    %4738 = vmatprep.subr.bf16.mxu0 %v4423
    %4739 = vmatpush1.bf16.msra.mxu0 %v4422
    %4740 = vmatprep.subr.bf16.mxu0 %v4431
    %4741 = vmatpush1.bf16.msra.mxu0 %v4430
    %4742 = vmatprep.subr.bf16.mxu0 %v4439
    %4743 = vmatpush1.bf16.msra.mxu0 %v4438
    %4744 = vmatprep.subr.bf16.mxu0 %v4447
    %4745 = vmatpush1.bf16.msra.mxu0 %v4446
    %4746 = vmatprep.subr.bf16.mxu0 %v4455
    %4747 = vmatpush1.bf16.msra.mxu0 %v4454
    %4748 = vmatprep.subr.bf16.mxu0 %v4463
    %4749 = vmatpush1.bf16.msra.mxu0 %v4462
    %4750 = vmatprep.subr.bf16.mxu0 %v4471
    %4751 = vmatpush1.bf16.msra.mxu0 %v4470
    %4752 = vmatprep.subr.bf16.mxu0 %v4479
    %4753 = vmatpush1.bf16.msra.mxu0 %v4478
    %4754 = vmatprep.subr.bf16.mxu0 %v4487
    %4755 = vmatpush1.bf16.msra.mxu0 %v4486
    %4756 = vmatprep.subr.bf16.mxu0 %v4495
    %4757 = vmatpush1.bf16.msra.mxu0 %v4494
    %4758 = vmatprep.subr.bf16.mxu0 %v4503
    %4759 = vmatpush1.bf16.msra.mxu0 %v4502
    %4760 = vmatprep.subr.bf16.mxu0 %v4511
    %4761 = vmatpush1.bf16.msra.mxu0 %v4510
    %4762 = vmatprep.subr.bf16.mxu0 %v4519
    %4763 = vmatpush1.bf16.msra.mxu0 %v4518
    %4764 = vmatprep.mubr.bf16.mxu0 %v4007
    %4765 = vmatmul.mubr.bf16.gmra.mrb[0].mxu0 %v4006
    %v4766 = vpop.f32.mrb[0].mxu0
    %v4767 = vadd.f32 %v3982, %v4766
    %v4768 = vpop.f32.mrb[0].mxu0
    %v4769 = vadd.f32 %v3986, %v4768
    %v4770 = vpop.f32.mrb[0].mxu0
    %v4771 = vpop.f32.mrb[0].mxu0
    %4772 = vdwg.mxu0
    %4773 = vmatprep.subr.bf16.mxu0 %v4401
    %4774 = vmatpush1.bf16.msra.mxu0 %v4400
    %4775 = vmatprep.subr.bf16.mxu0 %v4409
    %4776 = vmatpush1.bf16.msra.mxu0 %v4408
    %4777 = vmatprep.subr.bf16.mxu0 %v4417
    %4778 = vmatpush1.bf16.msra.mxu0 %v4416
    %4779 = vmatprep.subr.bf16.mxu0 %v4425
    %4780 = vmatpush1.bf16.msra.mxu0 %v4424
    %4781 = vmatprep.subr.bf16.mxu0 %v4433
    %4782 = vmatpush1.bf16.msra.mxu0 %v4432
    %4783 = vmatprep.subr.bf16.mxu0 %v4441
    %4784 = vmatpush1.bf16.msra.mxu0 %v4440
    %4785 = vmatprep.subr.bf16.mxu0 %v4449
    %4786 = vmatpush1.bf16.msra.mxu0 %v4448
    %4787 = vmatprep.subr.bf16.mxu0 %v4457
    %4788 = vmatpush1.bf16.msra.mxu0 %v4456
    %4789 = vmatprep.subr.bf16.mxu0 %v4465
    %4790 = vmatpush1.bf16.msra.mxu0 %v4464
    %4791 = vmatprep.subr.bf16.mxu0 %v4473
    %4792 = vmatpush1.bf16.msra.mxu0 %v4472
    %4793 = vmatprep.subr.bf16.mxu0 %v4481
    %4794 = vmatpush1.bf16.msra.mxu0 %v4480
    %4795 = vmatprep.subr.bf16.mxu0 %v4489
    %4796 = vmatpush1.bf16.msra.mxu0 %v4488
    %4797 = vmatprep.subr.bf16.mxu0 %v4497
    %4798 = vmatpush1.bf16.msra.mxu0 %v4496
    %4799 = vmatprep.subr.bf16.mxu0 %v4505
    %4800 = vmatpush1.bf16.msra.mxu0 %v4504
    %4801 = vmatprep.subr.bf16.mxu0 %v4513
    %4802 = vmatpush1.bf16.msra.mxu0 %v4512
    %4803 = vmatprep.subr.bf16.mxu0 %v4521
    %4804 = vmatpush1.bf16.msra.mxu0 %v4520
    %4805 = vmatprep.mubr.bf16.mxu0 %v4007
    %4806 = vmatmul.mubr.bf16.gmra.mrb[0].mxu0 %v4006
    %v4807 = vpop.f32.mrb[0].mxu0
    %v4808 = vadd.f32 %v3990, %v4807
    %v4809 = vpop.f32.mrb[0].mxu0
    %v4810 = vadd.f32 %v3994, %v4809
    %v4811 = vpop.f32.mrb[0].mxu0
    %v4812 = vpop.f32.mrb[0].mxu0
    %4813 = vdwg.mxu0
    %4814 = vst [vmem:[#allocation2] sm:$0xff] %v3334
    %4815 = vst [vmem:[#allocation2 + $0x8] sm:$0xff] %v3336
    %4816 = vst [vmem:[#allocation2 + $0x10] sm:$0xff] %v3498
    %4817 = vst [vmem:[#allocation2 + $0x18] sm:$0xff] %v3500
    %4818 = vst [vmem:[#allocation2 + $0x20] sm:$0xff] %v3662
    %4819 = vst [vmem:[#allocation2 + $0x28] sm:$0xff] %v3664
    %4820 = vst [vmem:[#allocation2 + $0x30] sm:$0xff] %v3826
    %4821 = vst [vmem:[#allocation2 + $0x38] sm:$0xff] %v3828
    %4822 = vst [vmem:[#allocation2 + $0x40] sm:$0xff] %v4685
    %4823 = vst [vmem:[#allocation2 + $0x48] sm:$0xff] %v4687
    %4824 = vst [vmem:[#allocation2 + $0x50] sm:$0xff] %v4726
    %4825 = vst [vmem:[#allocation2 + $0x58] sm:$0xff] %v4728
    %4826 = vst [vmem:[#allocation2 + $0x60] sm:$0xff] %v4767
    %4827 = vst [vmem:[#allocation2 + $0x68] sm:$0xff] %v4769
    %4828 = vst [vmem:[#allocation2 + $0x70] sm:$0xff] %v4808
    %4829 = vst [vmem:[#allocation2 + $0x78] sm:$0xff] %v4810
    %v4830 = vld [vmem:[%s2] sm:$0xff]
    %v4831 = vld [vmem:[%s2 + $0x8] sm:$0xff]
    %v4832 = vld [vmem:[%s2 + $0x10] sm:$0xff]
    %v4833 = vld [vmem:[%s2 + $0x18] sm:$0xff]
    %4834 = vst [vmem:[#allocation2 + $0x80] sm:$0xff] %v4830
    %4835 = vst [vmem:[#allocation2 + $0x88] sm:$0xff] %v4831
    %4836 = vst [vmem:[#allocation2 + $0x90] sm:$0xff] %v4832
    %4837 = vst [vmem:[#allocation2 + $0x98] sm:$0xff] %v4833
    %v4838 = vld [vmem:[%s3] sm:$0xff]
    %4840 = vset.pattern.permute.xlu0 0
    %4841 = vperm.xlu0 %4840, %v4838
    %v4842 = vpop.permute.xlu0 %4841
    %4844 = vst [vmem:[#allocation2 + $0xa0] sm:$0xff] %v4842
    %4845 = vst [vmem:[#allocation2 + $0xa8] sm:$0xff] %v4842
    %4846 = vst [vmem:[#allocation2 + $0xb0] sm:$0xff] %v4842
    %4847 = vst [vmem:[#allocation2 + $0xb8] sm:$0xff] %v4842
    // Predicated region
    $region34: #{aggre_forward.1} parent=1 // pred_check
      _
    $region35: #{aggre_forward.1} parent=1 // pred_check_branch
      %4849 = sbr.rel (0) target = $region37
    $region36: #{aggre_forward.1} parent=1 // pred_region
      %s4851 = ssub.s32 3072, 3072
      %4852 = vsyncadd [#allocation3], %s4851
      %s4854 = sshll.u32 [#allocation2], 4
      %s4855 = int_to_ptr.vmem [resolvable:$true] %s4854
      %4857 = dma.vmem_to_hbm [thread:$0]  %s4855, 3072, %s8, [#allocation3]
    $region37: #{aggre_forward.1} parent=1 // pred_fallthru
      _
    // Predicated region
    $region38: #{aggre_forward.1} parent=1 // pred_check
      _
    $region39: #{aggre_forward.1} parent=1 // pred_check_branch
      %4859 = sbr.rel (0) target = $region41
    $region40: #{aggre_forward.1} parent=1 // pred_region
      %4860 = dma.done [#allocation3], 3072
    $region41: #{aggre_forward.1} parent=1 // pred_fallthru
      _
    %4861 = vsyncpa [#allocation3], 1

</llo_original>
